<compile_context>
chip_gen: v7x
topology: tpu7x:2x2x1
jax: 0.10.0
libtpu: 0.0.40
codegen_flags: <defaults>
</compile_context>

<pallas_src>
import numpy as np
import jax
import jax.numpy as jnp
from jax.experimental import pallas as pl
from jax.experimental.pallas import tpu as pltpu


def _cmul(ar, ai, br, bi, bs):
    """(ar + i*ai) @ (br + i*bi); bs = br + bi is a precomputed constant."""
    p1 = jnp.dot(ar, br, preferred_element_type=jnp.float32)
    p2 = jnp.dot(ai, bi, preferred_element_type=jnp.float32)
    p3 = jnp.dot(ar + ai, bs, preferred_element_type=jnp.float32)
    return p1 - p2, p3 - p1 - p2


def _cmul_conj(ar, ai, br, bi, bs):
    """(ar + i*ai) @ conj(br + i*bi); reuses the same constants (no -bi copy)."""
    p1 = jnp.dot(ar, br, preferred_element_type=jnp.float32)
    p2 = jnp.dot(ai, bi, preferred_element_type=jnp.float32)
    p3 = jnp.dot(ai - ar, bs, preferred_element_type=jnp.float32)
    return p1 + p2, p3 + p1 - p2


def _dc_kernel(x_ref, m_ref, k0t_ref,
               fhr_ref, fhi_ref, fhs_ref,
               fwr_ref, fwi_ref, fws_ref,
               o_ref):
    B = x_ref.shape[0]
    H = x_ref.shape[2]
    W = x_ref.shape[3]
    BH = B * H
    BW = B * W

    fhr = fhr_ref[...]
    fhi = fhi_ref[...]
    fhs = fhs_ref[...]
    fwr = fwr_ref[...]
    fwi = fwi_ref[...]
    fws = fws_ref[...]

    x = x_ref[...]                                   # (B, 2, H, W)
    xr = x[:, 0, :, :].reshape(BH, W)
    xi = x[:, 1, :, :].reshape(BH, W)

    # ---- forward ortho 2-D DFT ----
    # W-side:  T = X @ F_W                                           (B*H, W)
    tr, ti = _cmul(xr, xi, fwr, fwi, fws)
    # per-image transpose (XLU): (B,H,W) -> (B,W,H) -> (B*W, H)
    trt = jnp.swapaxes(tr.reshape(B, H, W), 1, 2).reshape(BW, H)
    tit = jnp.swapaxes(ti.reshape(B, H, W), 1, 2).reshape(BW, H)
    # H-side (F_H symmetric):  K^T = T^T @ F_H                        (B*W, H)
    krt, kit = _cmul(trt, tit, fhr, fhi, fhs)

    # ---- data consistency (in the transposed k-space layout) ----
    # k_dc = k + mask * (k0 - k)  ==  (1-mask)*k + mask*k0
    k0t = k0t_ref[...]                               # (B, 2, W, H)
    m = m_ref[...][:, 0, :, :]                       # (B or 1, W, H)
    kr3 = krt.reshape(B, W, H)
    ki3 = kit.reshape(B, W, H)
    kdr = (kr3 + m * (k0t[:, 0, :, :] - kr3)).reshape(BW, H)
    kdi = (ki3 + m * (k0t[:, 1, :, :] - ki3)).reshape(BW, H)

    # ---- inverse ortho 2-D DFT ----
    # H-side:  T2^T = Kd^T @ conj(F_H)                                (B*W, H)
    t2rt, t2it = _cmul_conj(kdr, kdi, fhr, fhi, fhs)
    # transpose back: (B,W,H) -> (B,H,W) -> (B*H, W)
    t2r = jnp.swapaxes(t2rt.reshape(B, W, H), 1, 2).reshape(BH, W)
    t2i = jnp.swapaxes(t2it.reshape(B, W, H), 1, 2).reshape(BH, W)
    # W-side:  out = T2 @ conj(F_W)                                   (B*H, W)
    outr, outi = _cmul_conj(t2r, t2i, fwr, fwi, fws)

    o_ref[:, 0, :, :] = outr.reshape(B, H, W)
    o_ref[:, 1, :, :] = outi.reshape(B, H, W)


def _dft_matrix(n):
    """Ortho-normalized DFT matrix (real, imag) as float64 numpy (trace-time)."""
    idx = np.arange(n, dtype=np.float64)
    ang = -2.0 * np.pi * np.outer(idx, idx) / n
    scale = 1.0 / np.sqrt(float(n))
    return np.cos(ang) * scale, np.sin(ang) * scale


def _chip_info():
    """Best-effort (vmem_capacity_bytes, tensorcores sharing a 'parallel' grid)."""
    vmem_cap = 128 * 1024 * 1024
    num_tc = 1
    try:
        kind = jax.devices()[0].device_kind.lower()
    except Exception:
        kind = ""
    if ("v7" in kind) or ("v4" in kind) or ("v5p" in kind):
        vmem_cap = 64 * 1024 * 1024
        num_tc = 2
    try:
        info = pltpu.get_tpu_info()
        cap = getattr(info, "vmem_capacity_bytes", None)
        if cap:
            vmem_cap = int(cap)
    except Exception:
        pass
    return vmem_cap, num_tc


def _vmem_need(b, H, W, mask_batched):
    mb = b if mask_batched else 1
    blocks = 8 * (6 * b + mb) * H * W        # double-buffered f32 I/O blocks
    consts = 24 * (H * H + W * W)            # double-buffered DFT constants
    live = 64 * b * H * W                    # in-flight f32 intermediates
    return blocks + consts + live + (2 << 20)


def _pick_batch_tile(N, H, W, mask_batched, vmem_budget, num_tc):
    divisors = [d for d in range(1, N + 1) if N % d == 0]
    fitting = [d for d in divisors if _vmem_need(d, H, W, mask_batched) <= vmem_budget]
    if not fitting:
        return 1
    if num_tc <= 1:
        return max(fitting)                  # single TC: fewest grid steps that fit
    row_target = max(1, 256 // max(H, 1))    # ~256 MXU rows per step on v6e/v7x-class
    candidates = [d for d in fitting if d <= row_target] or [min(fitting)]
    best = max(candidates)
    even = [d for d in candidates if (N // d) % num_tc == 0 and (N // d) >= num_tc]
    if even and max(even) * H >= 64:
        best = max(even)                     # keep both v7x TensorCores busy
    return best


@jax.jit
def data_consistency_layer(im_recon, mask, k0):
    """
    im_recon: (N, 2, H, W) float32  pseudo-complex image
    mask:     (N or 1, 1, H, W) float32  sampling pattern (broadcast over real/imag)
    k0:       (N, 2, H, W) float32  pseudo-complex sampled k-space
    returns:  (N, 2, H, W) float32  data-consistent image
    """
    N, C, H, W = im_recon.shape
    assert C == 2 and k0.shape == im_recon.shape

    im_recon = im_recon.astype(jnp.float32)
    k0 = k0.astype(jnp.float32)
    mask = mask.astype(jnp.float32)
    if mask.ndim == 3:
        mask = mask[:, None]
    assert mask.shape[1] == 1 and mask.shape[-2:] == (H, W)
    assert mask.shape[0] in (1, N)
    mask_batched = mask.shape[0] == N and N != 1
    Nm = N if mask_batched else 1
    mask = mask[:Nm]

    # k-space inputs are used in the transposed (H-last) stage of the kernel.
    k0_t = jnp.swapaxes(k0, -1, -2)          # (N, 2, W, H)   cheap XLA transpose
    mask_t = jnp.swapaxes(mask, -1, -2)      # (Nm, 1, W, H)

    # DFT constants (and their Karatsuba sums) -- trace-time, host precomputed.
    fh_r64, fh_i64 = _dft_matrix(H)
    fw_r64, fw_i64 = _dft_matrix(W)
    fh_r = jnp.asarray(fh_r64.astype(np.float32))
    fh_i = jnp.asarray(fh_i64.astype(np.float32))
    fh_s = jnp.asarray((fh_r64 + fh_i64).astype(np.float32))
    fw_r = jnp.asarray(fw_r64.astype(np.float32))
    fw_i = jnp.asarray(fw_i64.astype(np.float32))
    fw_s = jnp.asarray((fw_r64 + fw_i64).astype(np.float32))

    vmem_cap, num_tc = _chip_info()
    budget = int(0.8 * vmem_cap)             # leave headroom for Mosaic scratch/sems
    B = _pick_batch_tile(N, H, W, mask_batched, budget, num_tc)
    steps = N // B

    x_spec = pl.BlockSpec((B, 2, H, W), lambda b: (b, 0, 0, 0))
    k0t_spec = pl.BlockSpec((B, 2, W, H), lambda b: (b, 0, 0, 0))
    if mask_batched:
        m_spec = pl.BlockSpec((B, 1, W, H), lambda b: (b, 0, 0, 0))
    else:
        m_spec = pl.BlockSpec((1, 1, W, H), lambda b: (0, 0, 0, 0))
    fh_spec = pl.BlockSpec((H, H), lambda b: (0, 0))
    fw_spec = pl.BlockSpec((W, W), lambda b: (0, 0))

    need = _vmem_need(B, H, W, mask_batched)
    vmem_limit = int(min(budget, max(need + (8 << 20), 32 << 20)))

    # Advisory cost estimate: 4 complex matmuls/image (Karatsuba: 3 real each).
    flops = 12 * N * H * W * (H + W)
    bytes_accessed = 4 * (3 * N * 2 * H * W + Nm * H * W) + 4 * 3 * (H * H + W * W)

    out = pl.pallas_call(
        _dc_kernel,
        out_shape=jax.ShapeDtypeStruct((N, 2, H, W), jnp.float32),
        grid_spec=pltpu.PrefetchScalarGridSpec(
            num_scalar_prefetch=0,
            grid=(steps,),
            in_specs=[x_spec, m_spec, k0t_spec,
                      fh_spec, fh_spec, fh_spec,
                      fw_spec, fw_spec, fw_spec],
            out_specs=x_spec,
        ),
        compiler_params=pltpu.CompilerParams(
            dimension_semantics=("parallel",),
            vmem_limit_bytes=vmem_limit,
        ),
        cost_estimate=pl.CostEstimate(
            flops=int(flops), transcendentals=0, bytes_accessed=int(bytes_accessed)),
    )(im_recon, mask_t, k0_t, fh_r, fh_i, fh_s, fw_r, fw_i, fw_s)

    return out


def _reference(im_recon, mask, k0):
    """Pure-JAX reference (mirrors the PyTorch module with ortho FFTs)."""
    x = im_recon[:, 0] + 1j * im_recon[:, 1]
    k = jnp.fft.fft2(x, norm="ortho")
    k0c = k0[:, 0] + 1j * k0[:, 1]
    m = mask[:, 0]
    k_dc = (1.0 - m) * k + m * k0c
    im_dc = jnp.fft.ifft2(k_dc, norm="ortho")
    return jnp.stack([im_dc.real, im_dc.imag], axis=1).astype(jnp.float32)


if __name__ == "__main__":
    key = jax.random.PRNGKey(0)
    k1, k2, k3 = jax.random.split(key, 3)

    N, H, W = 8, 16, 16
    im_recon = jax.random.normal(k1, (N, 2, H, W), dtype=jnp.float32)
    k0 = jax.random.normal(k2, (N, 2, H, W), dtype=jnp.float32)
    mask = (jax.random.uniform(k3, (N, 1, H, W)) < 0.4).astype(jnp.float32)

    out = data_consistency_layer(im_recon, mask, k0)
    out = jax.block_until_ready(out)

    ref = _reference(im_recon, mask, k0)
    assert out.shape == (N, 2, H, W)
    err = float(jnp.max(jnp.abs(out - ref)))
    assert err < 1e-3, f"mismatch vs JAX FFT reference: {err}"

    print("KERNEL_OK")
</pallas_src>

<mosaic_0001>
module attributes {stable_mosaic.version = 11 : i64} {
  func.func @_dc_kernel(%arg0: i32, %arg1: memref<8x2x16x16xf32, #tpu.memory_space<vmem>>, %arg2: memref<8x1x16x16xf32, #tpu.memory_space<vmem>>, %arg3: memref<8x2x16x16xf32, #tpu.memory_space<vmem>>, %arg4: memref<16x16xf32, #tpu.memory_space<vmem>>, %arg5: memref<16x16xf32, #tpu.memory_space<vmem>>, %arg6: memref<16x16xf32, #tpu.memory_space<vmem>>, %arg7: memref<16x16xf32, #tpu.memory_space<vmem>>, %arg8: memref<16x16xf32, #tpu.memory_space<vmem>>, %arg9: memref<16x16xf32, #tpu.memory_space<vmem>>, %arg10: memref<8x2x16x16xf32, #tpu.memory_space<vmem>>) attributes {dimension_semantics = [#tpu.dimension_semantics<parallel>], iteration_bounds = array<i64: 1>, scalar_prefetch = 0 : i64, scratch_operands = 0 : i64, tpu.core_type = #tpu.core_type<tc>, window_params = [{transform_indices = @transform_0, window_bounds = array<i64: 8, 2, 16, 16>}, {transform_indices = @transform_1, window_bounds = array<i64: 8, 1, 16, 16>}, {transform_indices = @transform_2, window_bounds = array<i64: 8, 2, 16, 16>}, {pipeline_mode = #tpu.pipeline_mode<synchronous>, transform_indices = @transform_3, window_bounds = array<i64: 16, 16>}, {pipeline_mode = #tpu.pipeline_mode<synchronous>, transform_indices = @transform_4, window_bounds = array<i64: 16, 16>}, {pipeline_mode = #tpu.pipeline_mode<synchronous>, transform_indices = @transform_5, window_bounds = array<i64: 16, 16>}, {pipeline_mode = #tpu.pipeline_mode<synchronous>, transform_indices = @transform_6, window_bounds = array<i64: 16, 16>}, {pipeline_mode = #tpu.pipeline_mode<synchronous>, transform_indices = @transform_7, window_bounds = array<i64: 16, 16>}, {pipeline_mode = #tpu.pipeline_mode<synchronous>, transform_indices = @transform_8, window_bounds = array<i64: 16, 16>}, {transform_indices = @transform_9, window_bounds = array<i64: 8, 2, 16, 16>}]} {
    %c0 = arith.constant 0 : index
    %c0_0 = arith.constant 0 : index
    %0 = vector.load %arg4[%c0, %c0_0] : memref<16x16xf32, #tpu.memory_space<vmem>>, vector<16x16xf32>
    %c0_1 = arith.constant 0 : index
    %c0_2 = arith.constant 0 : index
    %1 = vector.load %arg5[%c0_1, %c0_2] : memref<16x16xf32, #tpu.memory_space<vmem>>, vector<16x16xf32>
    %c0_3 = arith.constant 0 : index
    %c0_4 = arith.constant 0 : index
    %2 = vector.load %arg6[%c0_3, %c0_4] : memref<16x16xf32, #tpu.memory_space<vmem>>, vector<16x16xf32>
    %c0_5 = arith.constant 0 : index
    %c0_6 = arith.constant 0 : index
    %3 = vector.load %arg7[%c0_5, %c0_6] : memref<16x16xf32, #tpu.memory_space<vmem>>, vector<16x16xf32>
    %c0_7 = arith.constant 0 : index
    %c0_8 = arith.constant 0 : index
    %4 = vector.load %arg8[%c0_7, %c0_8] : memref<16x16xf32, #tpu.memory_space<vmem>>, vector<16x16xf32>
    %c0_9 = arith.constant 0 : index
    %c0_10 = arith.constant 0 : index
    %5 = vector.load %arg9[%c0_9, %c0_10] : memref<16x16xf32, #tpu.memory_space<vmem>>, vector<16x16xf32>
    %c0_11 = arith.constant 0 : index
    %c0_12 = arith.constant 0 : index
    %c0_13 = arith.constant 0 : index
    %c0_14 = arith.constant 0 : index
    %6 = vector.load %arg1[%c0_11, %c0_12, %c0_13, %c0_14] : memref<8x2x16x16xf32, #tpu.memory_space<vmem>>, vector<8x2x16x16xf32>
    %7 = vector.extract_strided_slice %6 {offsets = [0, 0, 0, 0], sizes = [8, 1, 16, 16], strides = [1, 1, 1, 1]} : vector<8x2x16x16xf32> to vector<8x1x16x16xf32>
    %8 = vector.shape_cast %7 : vector<8x1x16x16xf32> to vector<8x16x16xf32>
    %9 = vector.shape_cast %8 : vector<8x16x16xf32> to vector<128x16xf32>
    %10 = vector.extract_strided_slice %6 {offsets = [0, 1, 0, 0], sizes = [8, 1, 16, 16], strides = [1, 1, 1, 1]} : vector<8x2x16x16xf32> to vector<8x1x16x16xf32>
    %11 = vector.shape_cast %10 : vector<8x1x16x16xf32> to vector<8x16x16xf32>
    %12 = vector.shape_cast %11 : vector<8x16x16xf32> to vector<128x16xf32>
    %cst = arith.constant dense<0.000000e+00> : vector<128x16xf32>
    %13 = tpu.matmul %9, %3, %cst {dimension_numbers = #tpu.dot_dimension_numbers<[1], [0], [0], [1], [0, 0, 1, 1], [], []>} : vector<128x16xf32>, vector<16x16xf32>, vector<128x16xf32> -> vector<128x16xf32>
    %cst_15 = arith.constant dense<0.000000e+00> : vector<128x16xf32>
    %14 = tpu.matmul %12, %4, %cst_15 {dimension_numbers = #tpu.dot_dimension_numbers<[1], [0], [0], [1], [0, 0, 1, 1], [], []>} : vector<128x16xf32>, vector<16x16xf32>, vector<128x16xf32> -> vector<128x16xf32>
    %15 = arith.addf %9, %12 : vector<128x16xf32>
    %cst_16 = arith.constant dense<0.000000e+00> : vector<128x16xf32>
    %16 = tpu.matmul %15, %5, %cst_16 {dimension_numbers = #tpu.dot_dimension_numbers<[1], [0], [0], [1], [0, 0, 1, 1], [], []>} : vector<128x16xf32>, vector<16x16xf32>, vector<128x16xf32> -> vector<128x16xf32>
    %17 = arith.subf %13, %14 : vector<128x16xf32>
    %18 = arith.subf %16, %13 : vector<128x16xf32>
    %19 = arith.subf %18, %14 : vector<128x16xf32>
    %20 = vector.shape_cast %17 : vector<128x16xf32> to vector<8x16x16xf32>
    %21 = tpu.transpose %20, [0, 2, 1] : vector<8x16x16xf32> -> vector<8x16x16xf32>
    %22 = vector.shape_cast %21 : vector<8x16x16xf32> to vector<128x16xf32>
    %23 = vector.shape_cast %19 : vector<128x16xf32> to vector<8x16x16xf32>
    %24 = tpu.transpose %23, [0, 2, 1] : vector<8x16x16xf32> -> vector<8x16x16xf32>
    %25 = vector.shape_cast %24 : vector<8x16x16xf32> to vector<128x16xf32>
    %cst_17 = arith.constant dense<0.000000e+00> : vector<128x16xf32>
    %26 = tpu.matmul %22, %0, %cst_17 {dimension_numbers = #tpu.dot_dimension_numbers<[1], [0], [0], [1], [0, 0, 1, 1], [], []>} : vector<128x16xf32>, vector<16x16xf32>, vector<128x16xf32> -> vector<128x16xf32>
    %cst_18 = arith.constant dense<0.000000e+00> : vector<128x16xf32>
    %27 = tpu.matmul %25, %1, %cst_18 {dimension_numbers = #tpu.dot_dimension_numbers<[1], [0], [0], [1], [0, 0, 1, 1], [], []>} : vector<128x16xf32>, vector<16x16xf32>, vector<128x16xf32> -> vector<128x16xf32>
    %28 = arith.addf %22, %25 : vector<128x16xf32>
    %cst_19 = arith.constant dense<0.000000e+00> : vector<128x16xf32>
    %29 = tpu.matmul %28, %2, %cst_19 {dimension_numbers = #tpu.dot_dimension_numbers<[1], [0], [0], [1], [0, 0, 1, 1], [], []>} : vector<128x16xf32>, vector<16x16xf32>, vector<128x16xf32> -> vector<128x16xf32>
    %30 = arith.subf %26, %27 : vector<128x16xf32>
    %31 = arith.subf %29, %26 : vector<128x16xf32>
    %32 = arith.subf %31, %27 : vector<128x16xf32>
    %c0_20 = arith.constant 0 : index
    %c0_21 = arith.constant 0 : index
    %c0_22 = arith.constant 0 : index
    %c0_23 = arith.constant 0 : index
    %33 = vector.load %arg3[%c0_20, %c0_21, %c0_22, %c0_23] : memref<8x2x16x16xf32, #tpu.memory_space<vmem>>, vector<8x2x16x16xf32>
    %c0_24 = arith.constant 0 : index
    %c0_25 = arith.constant 0 : index
    %c0_26 = arith.constant 0 : index
    %c0_27 = arith.constant 0 : index
    %34 = vector.load %arg2[%c0_24, %c0_25, %c0_26, %c0_27] : memref<8x1x16x16xf32, #tpu.memory_space<vmem>>, vector<8x1x16x16xf32>
    %35 = vector.shape_cast %34 : vector<8x1x16x16xf32> to vector<8x16x16xf32>
    %36 = vector.shape_cast %30 : vector<128x16xf32> to vector<8x16x16xf32>
    %37 = vector.shape_cast %32 : vector<128x16xf32> to vector<8x16x16xf32>
    %38 = vector.extract_strided_slice %33 {offsets = [0, 0, 0, 0], sizes = [8, 1, 16, 16], strides = [1, 1, 1, 1]} : vector<8x2x16x16xf32> to vector<8x1x16x16xf32>
    %39 = vector.shape_cast %38 : vector<8x1x16x16xf32> to vector<8x16x16xf32>
    %40 = arith.subf %39, %36 : vector<8x16x16xf32>
    %41 = arith.mulf %35, %40 : vector<8x16x16xf32>
    %42 = arith.addf %36, %41 : vector<8x16x16xf32>
    %43 = vector.shape_cast %42 : vector<8x16x16xf32> to vector<128x16xf32>
    %44 = vector.extract_strided_slice %33 {offsets = [0, 1, 0, 0], sizes = [8, 1, 16, 16], strides = [1, 1, 1, 1]} : vector<8x2x16x16xf32> to vector<8x1x16x16xf32>
    %45 = vector.shape_cast %44 : vector<8x1x16x16xf32> to vector<8x16x16xf32>
    %46 = arith.subf %45, %37 : vector<8x16x16xf32>
    %47 = arith.mulf %35, %46 : vector<8x16x16xf32>
    %48 = arith.addf %37, %47 : vector<8x16x16xf32>
    %49 = vector.shape_cast %48 : vector<8x16x16xf32> to vector<128x16xf32>
    %cst_28 = arith.constant dense<0.000000e+00> : vector<128x16xf32>
    %50 = tpu.matmul %43, %0, %cst_28 {dimension_numbers = #tpu.dot_dimension_numbers<[1], [0], [0], [1], [0, 0, 1, 1], [], []>} : vector<128x16xf32>, vector<16x16xf32>, vector<128x16xf32> -> vector<128x16xf32>
    %cst_29 = arith.constant dense<0.000000e+00> : vector<128x16xf32>
    %51 = tpu.matmul %49, %1, %cst_29 {dimension_numbers = #tpu.dot_dimension_numbers<[1], [0], [0], [1], [0, 0, 1, 1], [], []>} : vector<128x16xf32>, vector<16x16xf32>, vector<128x16xf32> -> vector<128x16xf32>
    %52 = arith.subf %49, %43 : vector<128x16xf32>
    %cst_30 = arith.constant dense<0.000000e+00> : vector<128x16xf32>
    %53 = tpu.matmul %52, %2, %cst_30 {dimension_numbers = #tpu.dot_dimension_numbers<[1], [0], [0], [1], [0, 0, 1, 1], [], []>} : vector<128x16xf32>, vector<16x16xf32>, vector<128x16xf32> -> vector<128x16xf32>
    %54 = arith.addf %50, %51 : vector<128x16xf32>
    %55 = arith.addf %53, %50 : vector<128x16xf32>
    %56 = arith.subf %55, %51 : vector<128x16xf32>
    %57 = vector.shape_cast %54 : vector<128x16xf32> to vector<8x16x16xf32>
    %58 = tpu.transpose %57, [0, 2, 1] : vector<8x16x16xf32> -> vector<8x16x16xf32>
    %59 = vector.shape_cast %58 : vector<8x16x16xf32> to vector<128x16xf32>
    %60 = vector.shape_cast %56 : vector<128x16xf32> to vector<8x16x16xf32>
    %61 = tpu.transpose %60, [0, 2, 1] : vector<8x16x16xf32> -> vector<8x16x16xf32>
    %62 = vector.shape_cast %61 : vector<8x16x16xf32> to vector<128x16xf32>
    %cst_31 = arith.constant dense<0.000000e+00> : vector<128x16xf32>
    %63 = tpu.matmul %59, %3, %cst_31 {dimension_numbers = #tpu.dot_dimension_numbers<[1], [0], [0], [1], [0, 0, 1, 1], [], []>} : vector<128x16xf32>, vector<16x16xf32>, vector<128x16xf32> -> vector<128x16xf32>
    %cst_32 = arith.constant dense<0.000000e+00> : vector<128x16xf32>
    %64 = tpu.matmul %62, %4, %cst_32 {dimension_numbers = #tpu.dot_dimension_numbers<[1], [0], [0], [1], [0, 0, 1, 1], [], []>} : vector<128x16xf32>, vector<16x16xf32>, vector<128x16xf32> -> vector<128x16xf32>
    %65 = arith.subf %62, %59 : vector<128x16xf32>
    %cst_33 = arith.constant dense<0.000000e+00> : vector<128x16xf32>
    %66 = tpu.matmul %65, %5, %cst_33 {dimension_numbers = #tpu.dot_dimension_numbers<[1], [0], [0], [1], [0, 0, 1, 1], [], []>} : vector<128x16xf32>, vector<16x16xf32>, vector<128x16xf32> -> vector<128x16xf32>
    %67 = arith.addf %63, %64 : vector<128x16xf32>
    %68 = arith.addf %66, %63 : vector<128x16xf32>
    %69 = arith.subf %68, %64 : vector<128x16xf32>
    %70 = vector.shape_cast %67 : vector<128x16xf32> to vector<8x16x16xf32>
    %c0_34 = arith.constant 0 : index
    %c0_35 = arith.constant 0 : index
    %c0_36 = arith.constant 0 : index
    %c0_37 = arith.constant 0 : index
    %71 = vector.load %arg10[%c0_34, %c0_35, %c0_36, %c0_37] : memref<8x2x16x16xf32, #tpu.memory_space<vmem>>, vector<8x1x16x16xf32>
    %72 = vector.shape_cast %71 : vector<8x1x16x16xf32> to vector<8x16x16xf32>
    %73 = vector.shape_cast %70 : vector<8x16x16xf32> to vector<8x1x16x16xf32>
    tpu.vector_store %arg10[%c0_34, %c0_35, %c0_36, %c0_37], %73 {strides = array<i32>} : memref<8x2x16x16xf32, #tpu.memory_space<vmem>>, vector<8x1x16x16xf32>,
    %74 = vector.shape_cast %69 : vector<128x16xf32> to vector<8x16x16xf32>
    %c0_38 = arith.constant 0 : index
    %c1 = arith.constant 1 : index
    %c0_39 = arith.constant 0 : index
    %c0_40 = arith.constant 0 : index
    %75 = vector.load %arg10[%c0_38, %c1, %c0_39, %c0_40] : memref<8x2x16x16xf32, #tpu.memory_space<vmem>>, vector<8x1x16x16xf32>
    %76 = vector.shape_cast %75 : vector<8x1x16x16xf32> to vector<8x16x16xf32>
    %77 = vector.shape_cast %74 : vector<8x16x16xf32> to vector<8x1x16x16xf32>
    tpu.vector_store %arg10[%c0_38, %c1, %c0_39, %c0_40], %77 {strides = array<i32>} : memref<8x2x16x16xf32, #tpu.memory_space<vmem>>, vector<8x1x16x16xf32>,
    return
  }
  func.func @transform_0(%arg0: i32) -> (i32, i32, i32, i32) {
    %c0_i32 = arith.constant 0 : i32
    %c0_i32_0 = arith.constant 0 : i32
    %c0_i32_1 = arith.constant 0 : i32
    %c0_i32_2 = arith.constant 0 : i32
    return %arg0, %c0_i32, %c0_i32_0, %c0_i32_1 : i32, i32, i32, i32
  }
  func.func @transform_1(%arg0: i32) -> (i32, i32, i32, i32) {
    %c0_i32 = arith.constant 0 : i32
    %c0_i32_0 = arith.constant 0 : i32
    %c0_i32_1 = arith.constant 0 : i32
    %c0_i32_2 = arith.constant 0 : i32
    return %arg0, %c0_i32, %c0_i32_0, %c0_i32_1 : i32, i32, i32, i32
  }
  func.func @transform_2(%arg0: i32) -> (i32, i32, i32, i32) {
    %c0_i32 = arith.constant 0 : i32
    %c0_i32_0 = arith.constant 0 : i32
    %c0_i32_1 = arith.constant 0 : i32
    %c0_i32_2 = arith.constant 0 : i32
    return %arg0, %c0_i32, %c0_i32_0, %c0_i32_1 : i32, i32, i32, i32
  }
  func.func @transform_3(%arg0: i32) -> (i32, i32) {
    %c0_i32 = arith.constant 0 : i32
    %c0_i32_0 = arith.constant 0 : i32
    %c0_i32_1 = arith.constant 0 : i32
    return %c0_i32, %c0_i32_0 : i32, i32
  }
  func.func @transform_4(%arg0: i32) -> (i32, i32) {
    %c0_i32 = arith.constant 0 : i32
    %c0_i32_0 = arith.constant 0 : i32
    %c0_i32_1 = arith.constant 0 : i32
    return %c0_i32, %c0_i32_0 : i32, i32
  }
  func.func @transform_5(%arg0: i32) -> (i32, i32) {
    %c0_i32 = arith.constant 0 : i32
    %c0_i32_0 = arith.constant 0 : i32
    %c0_i32_1 = arith.constant 0 : i32
    return %c0_i32, %c0_i32_0 : i32, i32
  }
  func.func @transform_6(%arg0: i32) -> (i32, i32) {
    %c0_i32 = arith.constant 0 : i32
    %c0_i32_0 = arith.constant 0 : i32
    %c0_i32_1 = arith.constant 0 : i32
    return %c0_i32, %c0_i32_0 : i32, i32
  }
  func.func @transform_7(%arg0: i32) -> (i32, i32) {
    %c0_i32 = arith.constant 0 : i32
    %c0_i32_0 = arith.constant 0 : i32
    %c0_i32_1 = arith.constant 0 : i32
    return %c0_i32, %c0_i32_0 : i32, i32
  }
  func.func @transform_8(%arg0: i32) -> (i32, i32) {
    %c0_i32 = arith.constant 0 : i32
    %c0_i32_0 = arith.constant 0 : i32
    %c0_i32_1 = arith.constant 0 : i32
    return %c0_i32, %c0_i32_0 : i32, i32
  }
  func.func @transform_9(%arg0: i32) -> (i32, i32, i32, i32) {
    %c0_i32 = arith.constant 0 : i32
    %c0_i32_0 = arith.constant 0 : i32
    %c0_i32_1 = arith.constant 0 : i32
    %c0_i32_2 = arith.constant 0 : i32
    return %arg0, %c0_i32, %c0_i32_0, %c0_i32_1 : i32, i32, i32, i32
  }
}

</mosaic_0001>

<llo_original>
// kernel: data_consistency_layer.1
$region0: #{data_consistency_layer.1}
  #allocation0 [shape = 'u32[]', space=smem, size = 0x4, offset = 0x4, fixed_abs, tag = 'smem constant byte address 0x4 - core index']
  #allocation1 [shape = 'u32[144,128]{1,0:T(1,128)}', space=vmem, size = 0x12000, scoped, tag = 'internal scratch']
  %s0 = inlined_call_operand.vmem [shape: f32[8,2,16,16], index: 0, kind: input, shape index: {}]
  %s1 = inlined_call_operand.vmem [shape: f32[8,1,16,16], index: 1, kind: input, shape index: {}]
  %s2 = inlined_call_operand.vmem [shape: f32[8,2,16,16], index: 2, kind: input, shape index: {}]
  %s3 = inlined_call_operand.vmem [shape: f32[16,16], index: 3, kind: input, shape index: {}, may-alias: {3,6}]
  %s4 = inlined_call_operand.vmem [shape: f32[16,16], index: 4, kind: input, shape index: {}, may-alias: {4,7}]
  %s5 = inlined_call_operand.vmem [shape: f32[16,16], index: 5, kind: input, shape index: {}, may-alias: {5,8}]
  %s6 = inlined_call_operand.vmem [shape: f32[16,16], index: 6, kind: input, shape index: {}, may-alias: {3,6}]
  %s7 = inlined_call_operand.vmem [shape: f32[16,16], index: 7, kind: input, shape index: {}, may-alias: {4,7}]
  %s8 = inlined_call_operand.vmem [shape: f32[16,16], index: 8, kind: input, shape index: {}, may-alias: {5,8}]
  %s9 = inlined_call_operand.hbm [shape: f32[8,2,16,16], index: 9, kind: output, shape index: {}]
  %s10 = sld [smem:[#allocation0]]
  $region46: #{data_consistency_layer.1} parent=0
    _
  %s12 = ssub.s32 1, %s10
  %s13 = scalar_select 0, %s12, %s10
  $region1: #{data_consistency_layer.1} parent=0
    #allocation2 [shape = 'u8[131072]{0}', space=vmem, size = 0x20000, scoped, tag = 'output window, operand 0, single buffered']
    #allocation3 [shape = 's32[1]{0}', space=sflag, size = 0x4, scoped, tag = 'scoped memory for data_consistency_layer.1']
    %14 = vsyncpa [#allocation3], 0
    // Predicated region
    $region2: #{data_consistency_layer.1} parent=1 // pred_check
      _
    $region3: #{data_consistency_layer.1} parent=1 // pred_check_branch
      %16 = sbr.rel (0) target = $region5
    $region4: #{data_consistency_layer.1} parent=1 // pred_region
      _
    $region5: #{data_consistency_layer.1} parent=1 // pred_fallthru
      _
    // Predicated region
    $region6: #{data_consistency_layer.1} parent=1 // pred_check
      _
    $region7: #{data_consistency_layer.1} parent=1 // pred_check_branch
      %18 = sbr.rel (0) target = $region9
    $region8: #{data_consistency_layer.1} parent=1 // pred_region
      _
    $region9: #{data_consistency_layer.1} parent=1 // pred_fallthru
      _
    // Predicated region
    $region10: #{data_consistency_layer.1} parent=1 // pred_check
      _
    $region11: #{data_consistency_layer.1} parent=1 // pred_check_branch
      %20 = sbr.rel (0) target = $region13
    $region12: #{data_consistency_layer.1} parent=1 // pred_region
      _
    $region13: #{data_consistency_layer.1} parent=1 // pred_fallthru
      _
    // Predicated region
    $region14: #{data_consistency_layer.1} parent=1 // pred_check
      _
    $region15: #{data_consistency_layer.1} parent=1 // pred_check_branch
      %22 = sbr.rel (0) target = $region17
    $region16: #{data_consistency_layer.1} parent=1 // pred_region
      _
    $region17: #{data_consistency_layer.1} parent=1 // pred_fallthru
      _
    // Predicated region
    $region18: #{data_consistency_layer.1} parent=1 // pred_check
      _
    $region19: #{data_consistency_layer.1} parent=1 // pred_check_branch
      %24 = sbr.rel (0) target = $region21
    $region20: #{data_consistency_layer.1} parent=1 // pred_region
      _
    $region21: #{data_consistency_layer.1} parent=1 // pred_fallthru
      _
    // Predicated region
    $region22: #{data_consistency_layer.1} parent=1 // pred_check
      _
    $region23: #{data_consistency_layer.1} parent=1 // pred_check_branch
      %26 = sbr.rel (0) target = $region25
    $region24: #{data_consistency_layer.1} parent=1 // pred_region
      _
    $region25: #{data_consistency_layer.1} parent=1 // pred_fallthru
      _
    // Predicated region
    $region26: #{data_consistency_layer.1} parent=1 // pred_check
      _
    $region27: #{data_consistency_layer.1} parent=1 // pred_check_branch
      %28 = sbr.rel (0) target = $region29
    $region28: #{data_consistency_layer.1} parent=1 // pred_region
      _
    $region29: #{data_consistency_layer.1} parent=1 // pred_fallthru
      _
    // Predicated region
    $region30: #{data_consistency_layer.1} parent=1 // pred_check
      _
    $region31: #{data_consistency_layer.1} parent=1 // pred_check_branch
      %30 = sbr.rel (0) target = $region33
    $region32: #{data_consistency_layer.1} parent=1 // pred_region
      _
    $region33: #{data_consistency_layer.1} parent=1 // pred_fallthru
      _
    // Predicated region
    $region34: #{data_consistency_layer.1} parent=1 // pred_check
      _
    $region35: #{data_consistency_layer.1} parent=1 // pred_check_branch
      %32 = sbr.rel (0) target = $region37
    $region36: #{data_consistency_layer.1} parent=1 // pred_region
      _
    $region37: #{data_consistency_layer.1} parent=1 // pred_fallthru
      _
    %v33 = vld [vmem:[%s3] sm:$0xff]
    %v34 = vld [vmem:[%s3 + $0x8] sm:$0xff]
    %v35 = vld [vmem:[%s4] sm:$0xff]
    %v36 = vld [vmem:[%s4 + $0x8] sm:$0xff]
    %v37 = vld [vmem:[%s5] sm:$0xff]
    %v38 = vld [vmem:[%s5 + $0x8] sm:$0xff]
    %v39 = vld [vmem:[%s6] sm:$0xff]
    %v40 = vld [vmem:[%s6 + $0x8] sm:$0xff]
    %v41 = vld [vmem:[%s7] sm:$0xff]
    %v42 = vld [vmem:[%s7 + $0x8] sm:$0xff]
    %v43 = vld [vmem:[%s8] sm:$0xff]
    %v44 = vld [vmem:[%s8 + $0x8] sm:$0xff]
    %v45 = vld [vmem:[%s0] sm:$0xff]
    %v46 = vld [vmem:[%s0 + $0x8] sm:$0xff]
    %v47 = vld [vmem:[%s0 + $0x10] sm:$0xff]
    %v48 = vld [vmem:[%s0 + $0x18] sm:$0xff]
    %v49 = vld [vmem:[%s0 + $0x20] sm:$0xff]
    %v50 = vld [vmem:[%s0 + $0x28] sm:$0xff]
    %v51 = vld [vmem:[%s0 + $0x30] sm:$0xff]
    %v52 = vld [vmem:[%s0 + $0x38] sm:$0xff]
    %v53 = vld [vmem:[%s0 + $0x40] sm:$0xff]
    %v54 = vld [vmem:[%s0 + $0x48] sm:$0xff]
    %v55 = vld [vmem:[%s0 + $0x50] sm:$0xff]
    %v56 = vld [vmem:[%s0 + $0x58] sm:$0xff]
    %v57 = vld [vmem:[%s0 + $0x60] sm:$0xff]
    %v58 = vld [vmem:[%s0 + $0x68] sm:$0xff]
    %v59 = vld [vmem:[%s0 + $0x70] sm:$0xff]
    %v60 = vld [vmem:[%s0 + $0x78] sm:$0xff]
    %v61 = vld [vmem:[%s0 + $0x80] sm:$0xff]
    %v62 = vld [vmem:[%s0 + $0x88] sm:$0xff]
    %v63 = vld [vmem:[%s0 + $0x90] sm:$0xff]
    %v64 = vld [vmem:[%s0 + $0x98] sm:$0xff]
    %v65 = vld [vmem:[%s0 + $0xa0] sm:$0xff]
    %v66 = vld [vmem:[%s0 + $0xa8] sm:$0xff]
    %v67 = vld [vmem:[%s0 + $0xb0] sm:$0xff]
    %v68 = vld [vmem:[%s0 + $0xb8] sm:$0xff]
    %v69 = vld [vmem:[%s0 + $0xc0] sm:$0xff]
    %v70 = vld [vmem:[%s0 + $0xc8] sm:$0xff]
    %v71 = vld [vmem:[%s0 + $0xd0] sm:$0xff]
    %v72 = vld [vmem:[%s0 + $0xd8] sm:$0xff]
    %v73 = vld [vmem:[%s0 + $0xe0] sm:$0xff]
    %v74 = vld [vmem:[%s0 + $0xe8] sm:$0xff]
    %v75 = vld [vmem:[%s0 + $0xf0] sm:$0xff]
    %v76 = vld [vmem:[%s0 + $0xf8] sm:$0xff]
    %vm77 = vcmask 130048
    %v79 = vsel %vm77, %v45, 0
    %v82 = vsel %vm77, %v46, 0
    %v85 = vsel %vm77, %v49, 0
    %v88 = vsel %vm77, %v50, 0
    %v91 = vsel %vm77, %v53, 0
    %v94 = vsel %vm77, %v54, 0
    %v97 = vsel %vm77, %v57, 0
    %v100 = vsel %vm77, %v58, 0
    %v103 = vsel %vm77, %v61, 0
    %v106 = vsel %vm77, %v62, 0
    %v109 = vsel %vm77, %v65, 0
    %v112 = vsel %vm77, %v66, 0
    %v115 = vsel %vm77, %v69, 0
    %v118 = vsel %vm77, %v70, 0
    %v121 = vsel %vm77, %v73, 0
    %v124 = vsel %vm77, %v74, 0
    %126 = vmatprep.subr.mxu0 0.0
    %127 = vmatpush1.msra.mxu0 %v39
    %128 = vmatprep.subr.mxu0 0.0
    %129 = vmatpush1.msra.mxu0 %v40
    %130 = vmatprep.subr.mxu0 0.0
    %131 = vmatpush1.msra.mxu0 0.0
    %132 = vmatprep.subr.mxu0 0.0
    %133 = vmatpush1.msra.mxu0 0.0
    %134 = vmatprep.subr.mxu0 0.0
    %135 = vmatpush1.msra.mxu0 0.0
    %136 = vmatprep.subr.mxu0 0.0
    %137 = vmatpush1.msra.mxu0 0.0
    %138 = vmatprep.subr.mxu0 0.0
    %139 = vmatpush1.msra.mxu0 0.0
    %140 = vmatprep.subr.mxu0 0.0
    %141 = vmatpush1.msra.mxu0 0.0
    %142 = vmatprep.subr.mxu0 0.0
    %143 = vmatpush1.msra.mxu0 0.0
    %144 = vmatprep.subr.mxu0 0.0
    %145 = vmatpush1.msra.mxu0 0.0
    %146 = vmatprep.subr.mxu0 0.0
    %147 = vmatpush1.msra.mxu0 0.0
    %148 = vmatprep.subr.mxu0 0.0
    %149 = vmatpush1.msra.mxu0 0.0
    %150 = vmatprep.subr.mxu0 0.0
    %151 = vmatpush1.msra.mxu0 0.0
    %152 = vmatprep.subr.mxu0 0.0
    %153 = vmatpush1.msra.mxu0 0.0
    %154 = vmatprep.subr.mxu0 0.0
    %155 = vmatpush1.msra.mxu0 0.0
    %156 = vmatprep.subr.mxu0 0.0
    %157 = vmatpush1.msra.mxu0 0.0
    %158 = vmatprep.subr.mxu0 0.0
    %159 = vmatpush1.msra.mxu0 0.0
    %160 = vmatprep.subr.mxu0 0.0
    %161 = vmatpush1.msra.mxu0 0.0
    %162 = vmatprep.subr.mxu0 0.0
    %163 = vmatpush1.msra.mxu0 0.0
    %164 = vmatprep.subr.mxu0 0.0
    %165 = vmatpush1.msra.mxu0 0.0
    %166 = vmatprep.subr.mxu0 0.0
    %167 = vmatpush1.msra.mxu0 0.0
    %168 = vmatprep.subr.mxu0 0.0
    %169 = vmatpush1.msra.mxu0 0.0
    %170 = vmatprep.subr.mxu0 0.0
    %171 = vmatpush1.msra.mxu0 0.0
    %172 = vmatprep.subr.mxu0 0.0
    %173 = vmatpush1.msra.mxu0 0.0
    %174 = vmatprep.subr.mxu0 0.0
    %175 = vmatpush1.msra.mxu0 0.0
    %176 = vmatprep.subr.mxu0 0.0
    %177 = vmatpush1.msra.mxu0 0.0
    %178 = vmatprep.subr.mxu0 0.0
    %179 = vmatpush1.msra.mxu0 0.0
    %180 = vmatprep.subr.mxu0 0.0
    %181 = vmatpush1.msra.mxu0 0.0
    %182 = vmatprep.subr.mxu0 0.0
    %183 = vmatpush1.msra.mxu0 0.0
    %184 = vmatprep.subr.mxu0 0.0
    %185 = vmatpush1.msra.mxu0 0.0
    %186 = vmatprep.subr.mxu0 0.0
    %187 = vmatpush1.msra.mxu0 0.0
    %188 = vmatprep.subr.mxu0 0.0
    %189 = vmatpush1.msra.mxu0 0.0
    %190 = vmatprep.mubr.f32.mxu0 0.0
    %191 = vmatmul.mubr.f32.gmra.mrb[0].mxu0 %v79
    %v192 = vpop.f32.mrb[0].mxu0
    %v193 = vadd.f32 0.0, %v192
    %v194 = vpop.f32.mrb[0].mxu0
    %195 = vmatprep.mubr.f32.mxu0 0.0
    %196 = vmatmul.mubr.f32.gmra.mrb[0].mxu0 %v82
    %v197 = vpop.f32.mrb[0].mxu0
    %v198 = vadd.f32 0.0, %v197
    %v199 = vpop.f32.mrb[0].mxu0
    %200 = vmatprep.mubr.f32.mxu0 0.0
    %201 = vmatmul.mubr.f32.gmra.mrb[0].mxu0 %v85
    %v202 = vpop.f32.mrb[0].mxu0
    %v203 = vadd.f32 0.0, %v202
    %v204 = vpop.f32.mrb[0].mxu0
    %205 = vmatprep.mubr.f32.mxu0 0.0
    %206 = vmatmul.mubr.f32.gmra.mrb[0].mxu0 %v88
    %v207 = vpop.f32.mrb[0].mxu0
    %v208 = vadd.f32 0.0, %v207
    %v209 = vpop.f32.mrb[0].mxu0
    %210 = vmatprep.mubr.f32.mxu0 0.0
    %211 = vmatmul.mubr.f32.gmra.mrb[0].mxu0 %v91
    %v212 = vpop.f32.mrb[0].mxu0
    %v213 = vadd.f32 0.0, %v212
    %v214 = vpop.f32.mrb[0].mxu0
    %215 = vmatprep.mubr.f32.mxu0 0.0
    %216 = vmatmul.mubr.f32.gmra.mrb[0].mxu0 %v94
    %v217 = vpop.f32.mrb[0].mxu0
    %v218 = vadd.f32 0.0, %v217
    %v219 = vpop.f32.mrb[0].mxu0
    %220 = vmatprep.mubr.f32.mxu0 0.0
    %221 = vmatmul.mubr.f32.gmra.mrb[0].mxu0 %v97
    %v222 = vpop.f32.mrb[0].mxu0
    %v223 = vadd.f32 0.0, %v222
    %v224 = vpop.f32.mrb[0].mxu0
    %225 = vmatprep.mubr.f32.mxu0 0.0
    %226 = vmatmul.mubr.f32.gmra.mrb[0].mxu0 %v100
    %v227 = vpop.f32.mrb[0].mxu0
    %v228 = vadd.f32 0.0, %v227
    %v229 = vpop.f32.mrb[0].mxu0
    %230 = vmatprep.mubr.f32.mxu0 0.0
    %231 = vmatmul.mubr.f32.gmra.mrb[0].mxu0 %v103
    %v232 = vpop.f32.mrb[0].mxu0
    %v233 = vadd.f32 0.0, %v232
    %v234 = vpop.f32.mrb[0].mxu0
    %235 = vmatprep.mubr.f32.mxu0 0.0
    %236 = vmatmul.mubr.f32.gmra.mrb[0].mxu0 %v106
    %v237 = vpop.f32.mrb[0].mxu0
    %v238 = vadd.f32 0.0, %v237
    %v239 = vpop.f32.mrb[0].mxu0
    %240 = vmatprep.mubr.f32.mxu0 0.0
    %241 = vmatmul.mubr.f32.gmra.mrb[0].mxu0 %v109
    %v242 = vpop.f32.mrb[0].mxu0
    %v243 = vadd.f32 0.0, %v242
    %v244 = vpop.f32.mrb[0].mxu0
    %245 = vmatprep.mubr.f32.mxu0 0.0
    %246 = vmatmul.mubr.f32.gmra.mrb[0].mxu0 %v112
    %v247 = vpop.f32.mrb[0].mxu0
    %v248 = vadd.f32 0.0, %v247
    %v249 = vpop.f32.mrb[0].mxu0
    %250 = vmatprep.mubr.f32.mxu0 0.0
    %251 = vmatmul.mubr.f32.gmra.mrb[0].mxu0 %v115
    %v252 = vpop.f32.mrb[0].mxu0
    %v253 = vadd.f32 0.0, %v252
    %v254 = vpop.f32.mrb[0].mxu0
    %255 = vmatprep.mubr.f32.mxu0 0.0
    %256 = vmatmul.mubr.f32.gmra.mrb[0].mxu0 %v118
    %v257 = vpop.f32.mrb[0].mxu0
    %v258 = vadd.f32 0.0, %v257
    %v259 = vpop.f32.mrb[0].mxu0
    %260 = vmatprep.mubr.f32.mxu0 0.0
    %261 = vmatmul.mubr.f32.gmra.mrb[0].mxu0 %v121
    %v262 = vpop.f32.mrb[0].mxu0
    %v263 = vadd.f32 0.0, %v262
    %v264 = vpop.f32.mrb[0].mxu0
    %265 = vmatprep.mubr.f32.mxu0 0.0
    %266 = vmatmul.mubr.f32.gmra.mrb[0].mxu0 %v124
    %v267 = vpop.f32.mrb[0].mxu0
    %v268 = vadd.f32 0.0, %v267
    %v269 = vpop.f32.mrb[0].mxu0
    %270 = vdwg.mxu0
    %v272 = vsel %vm77, %v47, 0
    %v275 = vsel %vm77, %v48, 0
    %v278 = vsel %vm77, %v51, 0
    %v281 = vsel %vm77, %v52, 0
    %v284 = vsel %vm77, %v55, 0
    %v287 = vsel %vm77, %v56, 0
    %v290 = vsel %vm77, %v59, 0
    %v293 = vsel %vm77, %v60, 0
    %v296 = vsel %vm77, %v63, 0
    %v299 = vsel %vm77, %v64, 0
    %v302 = vsel %vm77, %v67, 0
    %v305 = vsel %vm77, %v68, 0
    %v308 = vsel %vm77, %v71, 0
    %v311 = vsel %vm77, %v72, 0
    %v314 = vsel %vm77, %v75, 0
    %v317 = vsel %vm77, %v76, 0
    %319 = vmatprep.subr.mxu0 0.0
    %320 = vmatpush1.msra.mxu0 %v41
    %321 = vmatprep.subr.mxu0 0.0
    %322 = vmatpush1.msra.mxu0 %v42
    %323 = vmatprep.subr.mxu0 0.0
    %324 = vmatpush1.msra.mxu0 0.0
    %325 = vmatprep.subr.mxu0 0.0
    %326 = vmatpush1.msra.mxu0 0.0
    %327 = vmatprep.subr.mxu0 0.0
    %328 = vmatpush1.msra.mxu0 0.0
    %329 = vmatprep.subr.mxu0 0.0
    %330 = vmatpush1.msra.mxu0 0.0
    %331 = vmatprep.subr.mxu0 0.0
    %332 = vmatpush1.msra.mxu0 0.0
    %333 = vmatprep.subr.mxu0 0.0
    %334 = vmatpush1.msra.mxu0 0.0
    %335 = vmatprep.subr.mxu0 0.0
    %336 = vmatpush1.msra.mxu0 0.0
    %337 = vmatprep.subr.mxu0 0.0
    %338 = vmatpush1.msra.mxu0 0.0
    %339 = vmatprep.subr.mxu0 0.0
    %340 = vmatpush1.msra.mxu0 0.0
    %341 = vmatprep.subr.mxu0 0.0
    %342 = vmatpush1.msra.mxu0 0.0
    %343 = vmatprep.subr.mxu0 0.0
    %344 = vmatpush1.msra.mxu0 0.0
    %345 = vmatprep.subr.mxu0 0.0
    %346 = vmatpush1.msra.mxu0 0.0
    %347 = vmatprep.subr.mxu0 0.0
    %348 = vmatpush1.msra.mxu0 0.0
    %349 = vmatprep.subr.mxu0 0.0
    %350 = vmatpush1.msra.mxu0 0.0
    %351 = vmatprep.subr.mxu0 0.0
    %352 = vmatpush1.msra.mxu0 0.0
    %353 = vmatprep.subr.mxu0 0.0
    %354 = vmatpush1.msra.mxu0 0.0
    %355 = vmatprep.subr.mxu0 0.0
    %356 = vmatpush1.msra.mxu0 0.0
    %357 = vmatprep.subr.mxu0 0.0
    %358 = vmatpush1.msra.mxu0 0.0
    %359 = vmatprep.subr.mxu0 0.0
    %360 = vmatpush1.msra.mxu0 0.0
    %361 = vmatprep.subr.mxu0 0.0
    %362 = vmatpush1.msra.mxu0 0.0
    %363 = vmatprep.subr.mxu0 0.0
    %364 = vmatpush1.msra.mxu0 0.0
    %365 = vmatprep.subr.mxu0 0.0
    %366 = vmatpush1.msra.mxu0 0.0
    %367 = vmatprep.subr.mxu0 0.0
    %368 = vmatpush1.msra.mxu0 0.0
    %369 = vmatprep.subr.mxu0 0.0
    %370 = vmatpush1.msra.mxu0 0.0
    %371 = vmatprep.subr.mxu0 0.0
    %372 = vmatpush1.msra.mxu0 0.0
    %373 = vmatprep.subr.mxu0 0.0
    %374 = vmatpush1.msra.mxu0 0.0
    %375 = vmatprep.subr.mxu0 0.0
    %376 = vmatpush1.msra.mxu0 0.0
    %377 = vmatprep.subr.mxu0 0.0
    %378 = vmatpush1.msra.mxu0 0.0
    %379 = vmatprep.subr.mxu0 0.0
    %380 = vmatpush1.msra.mxu0 0.0
    %381 = vmatprep.subr.mxu0 0.0
    %382 = vmatpush1.msra.mxu0 0.0
    %383 = vmatprep.mubr.f32.mxu0 0.0
    %384 = vmatmul.mubr.f32.gmra.mrb[0].mxu0 %v272
    %v385 = vpop.f32.mrb[0].mxu0
    %v386 = vadd.f32 0.0, %v385
    %v387 = vpop.f32.mrb[0].mxu0
    %388 = vmatprep.mubr.f32.mxu0 0.0
    %389 = vmatmul.mubr.f32.gmra.mrb[0].mxu0 %v275
    %v390 = vpop.f32.mrb[0].mxu0
    %v391 = vadd.f32 0.0, %v390
    %v392 = vpop.f32.mrb[0].mxu0
    %393 = vmatprep.mubr.f32.mxu0 0.0
    %394 = vmatmul.mubr.f32.gmra.mrb[0].mxu0 %v278
    %v395 = vpop.f32.mrb[0].mxu0
    %v396 = vadd.f32 0.0, %v395
    %v397 = vpop.f32.mrb[0].mxu0
    %398 = vmatprep.mubr.f32.mxu0 0.0
    %399 = vmatmul.mubr.f32.gmra.mrb[0].mxu0 %v281
    %v400 = vpop.f32.mrb[0].mxu0
    %v401 = vadd.f32 0.0, %v400
    %v402 = vpop.f32.mrb[0].mxu0
    %403 = vmatprep.mubr.f32.mxu0 0.0
    %404 = vmatmul.mubr.f32.gmra.mrb[0].mxu0 %v284
    %v405 = vpop.f32.mrb[0].mxu0
    %v406 = vadd.f32 0.0, %v405
    %v407 = vpop.f32.mrb[0].mxu0
    %408 = vmatprep.mubr.f32.mxu0 0.0
    %409 = vmatmul.mubr.f32.gmra.mrb[0].mxu0 %v287
    %v410 = vpop.f32.mrb[0].mxu0
    %v411 = vadd.f32 0.0, %v410
    %v412 = vpop.f32.mrb[0].mxu0
    %413 = vmatprep.mubr.f32.mxu0 0.0
    %414 = vmatmul.mubr.f32.gmra.mrb[0].mxu0 %v290
    %v415 = vpop.f32.mrb[0].mxu0
    %v416 = vadd.f32 0.0, %v415
    %v417 = vpop.f32.mrb[0].mxu0
    %418 = vmatprep.mubr.f32.mxu0 0.0
    %419 = vmatmul.mubr.f32.gmra.mrb[0].mxu0 %v293
    %v420 = vpop.f32.mrb[0].mxu0
    %v421 = vadd.f32 0.0, %v420
    %v422 = vpop.f32.mrb[0].mxu0
    %423 = vmatprep.mubr.f32.mxu0 0.0
    %424 = vmatmul.mubr.f32.gmra.mrb[0].mxu0 %v296
    %v425 = vpop.f32.mrb[0].mxu0
    %v426 = vadd.f32 0.0, %v425
    %v427 = vpop.f32.mrb[0].mxu0
    %428 = vmatprep.mubr.f32.mxu0 0.0
    %429 = vmatmul.mubr.f32.gmra.mrb[0].mxu0 %v299
    %v430 = vpop.f32.mrb[0].mxu0
    %v431 = vadd.f32 0.0, %v430
    %v432 = vpop.f32.mrb[0].mxu0
    %433 = vmatprep.mubr.f32.mxu0 0.0
    %434 = vmatmul.mubr.f32.gmra.mrb[0].mxu0 %v302
    %v435 = vpop.f32.mrb[0].mxu0
    %v436 = vadd.f32 0.0, %v435
    %v437 = vpop.f32.mrb[0].mxu0
    %438 = vmatprep.mubr.f32.mxu0 0.0
    %439 = vmatmul.mubr.f32.gmra.mrb[0].mxu0 %v305
    %v440 = vpop.f32.mrb[0].mxu0
    %v441 = vadd.f32 0.0, %v440
    %v442 = vpop.f32.mrb[0].mxu0
    %443 = vmatprep.mubr.f32.mxu0 0.0
    %444 = vmatmul.mubr.f32.gmra.mrb[0].mxu0 %v308
    %v445 = vpop.f32.mrb[0].mxu0
    %v446 = vadd.f32 0.0, %v445
    %v447 = vpop.f32.mrb[0].mxu0
    %448 = vmatprep.mubr.f32.mxu0 0.0
    %449 = vmatmul.mubr.f32.gmra.mrb[0].mxu0 %v311
    %v450 = vpop.f32.mrb[0].mxu0
    %v451 = vadd.f32 0.0, %v450
    %v452 = vpop.f32.mrb[0].mxu0
    %453 = vmatprep.mubr.f32.mxu0 0.0
    %454 = vmatmul.mubr.f32.gmra.mrb[0].mxu0 %v314
    %v455 = vpop.f32.mrb[0].mxu0
    %v456 = vadd.f32 0.0, %v455
    %v457 = vpop.f32.mrb[0].mxu0
    %458 = vmatprep.mubr.f32.mxu0 0.0
    %459 = vmatmul.mubr.f32.gmra.mrb[0].mxu0 %v317
    %v460 = vpop.f32.mrb[0].mxu0
    %v461 = vadd.f32 0.0, %v460
    %v462 = vpop.f32.mrb[0].mxu0
    %463 = vdwg.mxu0
    %v464 = vadd.f32 %v45, %v47
    %v465 = vadd.f32 %v46, %v48
    %v466 = vadd.f32 %v49, %v51
    %v467 = vadd.f32 %v50, %v52
    %v468 = vadd.f32 %v53, %v55
    %v469 = vadd.f32 %v54, %v56
    %v470 = vadd.f32 %v57, %v59
    %v471 = vadd.f32 %v58, %v60
    %v472 = vadd.f32 %v61, %v63
    %v473 = vadd.f32 %v62, %v64
    %v474 = vadd.f32 %v65, %v67
    %v475 = vadd.f32 %v66, %v68
    %v476 = vadd.f32 %v69, %v71
    %v477 = vadd.f32 %v70, %v72
    %v478 = vadd.f32 %v73, %v75
    %v479 = vadd.f32 %v74, %v76
    %v481 = vsel %vm77, %v464, 0
    %v484 = vsel %vm77, %v465, 0
    %v487 = vsel %vm77, %v466, 0
    %v490 = vsel %vm77, %v467, 0
    %v493 = vsel %vm77, %v468, 0
    %v496 = vsel %vm77, %v469, 0
    %v499 = vsel %vm77, %v470, 0
    %v502 = vsel %vm77, %v471, 0
    %v505 = vsel %vm77, %v472, 0
    %v508 = vsel %vm77, %v473, 0
    %v511 = vsel %vm77, %v474, 0
    %v514 = vsel %vm77, %v475, 0
    %v517 = vsel %vm77, %v476, 0
    %v520 = vsel %vm77, %v477, 0
    %v523 = vsel %vm77, %v478, 0
    %v526 = vsel %vm77, %v479, 0
    %528 = vmatprep.subr.mxu0 0.0
    %529 = vmatpush1.msra.mxu0 %v43
    %530 = vmatprep.subr.mxu0 0.0
    %531 = vmatpush1.msra.mxu0 %v44
    %532 = vmatprep.subr.mxu0 0.0
    %533 = vmatpush1.msra.mxu0 0.0
    %534 = vmatprep.subr.mxu0 0.0
    %535 = vmatpush1.msra.mxu0 0.0
    %536 = vmatprep.subr.mxu0 0.0
    %537 = vmatpush1.msra.mxu0 0.0
    %538 = vmatprep.subr.mxu0 0.0
    %539 = vmatpush1.msra.mxu0 0.0
    %540 = vmatprep.subr.mxu0 0.0
    %541 = vmatpush1.msra.mxu0 0.0
    %542 = vmatprep.subr.mxu0 0.0
    %543 = vmatpush1.msra.mxu0 0.0
    %544 = vmatprep.subr.mxu0 0.0
    %545 = vmatpush1.msra.mxu0 0.0
    %546 = vmatprep.subr.mxu0 0.0
    %547 = vmatpush1.msra.mxu0 0.0
    %548 = vmatprep.subr.mxu0 0.0
    %549 = vmatpush1.msra.mxu0 0.0
    %550 = vmatprep.subr.mxu0 0.0
    %551 = vmatpush1.msra.mxu0 0.0
    %552 = vmatprep.subr.mxu0 0.0
    %553 = vmatpush1.msra.mxu0 0.0
    %554 = vmatprep.subr.mxu0 0.0
    %555 = vmatpush1.msra.mxu0 0.0
    %556 = vmatprep.subr.mxu0 0.0
    %557 = vmatpush1.msra.mxu0 0.0
    %558 = vmatprep.subr.mxu0 0.0
    %559 = vmatpush1.msra.mxu0 0.0
    %560 = vmatprep.subr.mxu0 0.0
    %561 = vmatpush1.msra.mxu0 0.0
    %562 = vmatprep.subr.mxu0 0.0
    %563 = vmatpush1.msra.mxu0 0.0
    %564 = vmatprep.subr.mxu0 0.0
    %565 = vmatpush1.msra.mxu0 0.0
    %566 = vmatprep.subr.mxu0 0.0
    %567 = vmatpush1.msra.mxu0 0.0
    %568 = vmatprep.subr.mxu0 0.0
    %569 = vmatpush1.msra.mxu0 0.0
    %570 = vmatprep.subr.mxu0 0.0
    %571 = vmatpush1.msra.mxu0 0.0
    %572 = vmatprep.subr.mxu0 0.0
    %573 = vmatpush1.msra.mxu0 0.0
    %574 = vmatprep.subr.mxu0 0.0
    %575 = vmatpush1.msra.mxu0 0.0
    %576 = vmatprep.subr.mxu0 0.0
    %577 = vmatpush1.msra.mxu0 0.0
    %578 = vmatprep.subr.mxu0 0.0
    %579 = vmatpush1.msra.mxu0 0.0
    %580 = vmatprep.subr.mxu0 0.0
    %581 = vmatpush1.msra.mxu0 0.0
    %582 = vmatprep.subr.mxu0 0.0
    %583 = vmatpush1.msra.mxu0 0.0
    %584 = vmatprep.subr.mxu0 0.0
    %585 = vmatpush1.msra.mxu0 0.0
    %586 = vmatprep.subr.mxu0 0.0
    %587 = vmatpush1.msra.mxu0 0.0
    %588 = vmatprep.subr.mxu0 0.0
    %589 = vmatpush1.msra.mxu0 0.0
    %590 = vmatprep.subr.mxu0 0.0
    %591 = vmatpush1.msra.mxu0 0.0
    %592 = vmatprep.mubr.f32.mxu0 0.0
    %593 = vmatmul.mubr.f32.gmra.mrb[0].mxu0 %v481
    %v594 = vpop.f32.mrb[0].mxu0
    %v595 = vadd.f32 0.0, %v594
    %v596 = vpop.f32.mrb[0].mxu0
    %597 = vmatprep.mubr.f32.mxu0 0.0
    %598 = vmatmul.mubr.f32.gmra.mrb[0].mxu0 %v484
    %v599 = vpop.f32.mrb[0].mxu0
    %v600 = vadd.f32 0.0, %v599
    %v601 = vpop.f32.mrb[0].mxu0
    %602 = vmatprep.mubr.f32.mxu0 0.0
    %603 = vmatmul.mubr.f32.gmra.mrb[0].mxu0 %v487
    %v604 = vpop.f32.mrb[0].mxu0
    %v605 = vadd.f32 0.0, %v604
    %v606 = vpop.f32.mrb[0].mxu0
    %607 = vmatprep.mubr.f32.mxu0 0.0
    %608 = vmatmul.mubr.f32.gmra.mrb[0].mxu0 %v490
    %v609 = vpop.f32.mrb[0].mxu0
    %v610 = vadd.f32 0.0, %v609
    %v611 = vpop.f32.mrb[0].mxu0
    %612 = vmatprep.mubr.f32.mxu0 0.0
    %613 = vmatmul.mubr.f32.gmra.mrb[0].mxu0 %v493
    %v614 = vpop.f32.mrb[0].mxu0
    %v615 = vadd.f32 0.0, %v614
    %v616 = vpop.f32.mrb[0].mxu0
    %617 = vmatprep.mubr.f32.mxu0 0.0
    %618 = vmatmul.mubr.f32.gmra.mrb[0].mxu0 %v496
    %v619 = vpop.f32.mrb[0].mxu0
    %v620 = vadd.f32 0.0, %v619
    %v621 = vpop.f32.mrb[0].mxu0
    %622 = vmatprep.mubr.f32.mxu0 0.0
    %623 = vmatmul.mubr.f32.gmra.mrb[0].mxu0 %v499
    %v624 = vpop.f32.mrb[0].mxu0
    %v625 = vadd.f32 0.0, %v624
    %v626 = vpop.f32.mrb[0].mxu0
    %627 = vmatprep.mubr.f32.mxu0 0.0
    %628 = vmatmul.mubr.f32.gmra.mrb[0].mxu0 %v502
    %v629 = vpop.f32.mrb[0].mxu0
    %v630 = vadd.f32 0.0, %v629
    %v631 = vpop.f32.mrb[0].mxu0
    %632 = vmatprep.mubr.f32.mxu0 0.0
    %633 = vmatmul.mubr.f32.gmra.mrb[0].mxu0 %v505
    %v634 = vpop.f32.mrb[0].mxu0
    %v635 = vadd.f32 0.0, %v634
    %v636 = vpop.f32.mrb[0].mxu0
    %637 = vmatprep.mubr.f32.mxu0 0.0
    %638 = vmatmul.mubr.f32.gmra.mrb[0].mxu0 %v508
    %v639 = vpop.f32.mrb[0].mxu0
    %v640 = vadd.f32 0.0, %v639
    %v641 = vpop.f32.mrb[0].mxu0
    %642 = vmatprep.mubr.f32.mxu0 0.0
    %643 = vmatmul.mubr.f32.gmra.mrb[0].mxu0 %v511
    %v644 = vpop.f32.mrb[0].mxu0
    %v645 = vadd.f32 0.0, %v644
    %v646 = vpop.f32.mrb[0].mxu0
    %647 = vmatprep.mubr.f32.mxu0 0.0
    %648 = vmatmul.mubr.f32.gmra.mrb[0].mxu0 %v514
    %v649 = vpop.f32.mrb[0].mxu0
    %v650 = vadd.f32 0.0, %v649
    %v651 = vpop.f32.mrb[0].mxu0
    %652 = vmatprep.mubr.f32.mxu0 0.0
    %653 = vmatmul.mubr.f32.gmra.mrb[0].mxu0 %v517
    %v654 = vpop.f32.mrb[0].mxu0
    %v655 = vadd.f32 0.0, %v654
    %v656 = vpop.f32.mrb[0].mxu0
    %657 = vmatprep.mubr.f32.mxu0 0.0
    %658 = vmatmul.mubr.f32.gmra.mrb[0].mxu0 %v520
    %v659 = vpop.f32.mrb[0].mxu0
    %v660 = vadd.f32 0.0, %v659
    %v661 = vpop.f32.mrb[0].mxu0
    %662 = vmatprep.mubr.f32.mxu0 0.0
    %663 = vmatmul.mubr.f32.gmra.mrb[0].mxu0 %v523
    %v664 = vpop.f32.mrb[0].mxu0
    %v665 = vadd.f32 0.0, %v664
    %v666 = vpop.f32.mrb[0].mxu0
    %667 = vmatprep.mubr.f32.mxu0 0.0
    %668 = vmatmul.mubr.f32.gmra.mrb[0].mxu0 %v526
    %v669 = vpop.f32.mrb[0].mxu0
    %v670 = vadd.f32 0.0, %v669
    %v671 = vpop.f32.mrb[0].mxu0
    %672 = vdwg.mxu0
    %v673 = vsub.f32 %v193, %v386
    %v674 = vsub.f32 %v198, %v391
    %v675 = vsub.f32 %v203, %v396
    %v676 = vsub.f32 %v208, %v401
    %v677 = vsub.f32 %v213, %v406
    %v678 = vsub.f32 %v218, %v411
    %v679 = vsub.f32 %v223, %v416
    %v680 = vsub.f32 %v228, %v421
    %v681 = vsub.f32 %v233, %v426
    %v682 = vsub.f32 %v238, %v431
    %v683 = vsub.f32 %v243, %v436
    %v684 = vsub.f32 %v248, %v441
    %v685 = vsub.f32 %v253, %v446
    %v686 = vsub.f32 %v258, %v451
    %v687 = vsub.f32 %v263, %v456
    %v688 = vsub.f32 %v268, %v461
    %v689 = vsub.f32 %v595, %v193
    %v690 = vsub.f32 %v600, %v198
    %v691 = vsub.f32 %v605, %v203
    %v692 = vsub.f32 %v610, %v208
    %v693 = vsub.f32 %v615, %v213
    %v694 = vsub.f32 %v620, %v218
    %v695 = vsub.f32 %v625, %v223
    %v696 = vsub.f32 %v630, %v228
    %v697 = vsub.f32 %v635, %v233
    %v698 = vsub.f32 %v640, %v238
    %v699 = vsub.f32 %v645, %v243
    %v700 = vsub.f32 %v650, %v248
    %v701 = vsub.f32 %v655, %v253
    %v702 = vsub.f32 %v660, %v258
    %v703 = vsub.f32 %v665, %v263
    %v704 = vsub.f32 %v670, %v268
    %v705 = vsub.f32 %v689, %v386
    %v706 = vsub.f32 %v690, %v391
    %v707 = vsub.f32 %v691, %v396
    %v708 = vsub.f32 %v692, %v401
    %v709 = vsub.f32 %v693, %v406
    %v710 = vsub.f32 %v694, %v411
    %v711 = vsub.f32 %v695, %v416
    %v712 = vsub.f32 %v696, %v421
    %v713 = vsub.f32 %v697, %v426
    %v714 = vsub.f32 %v698, %v431
    %v715 = vsub.f32 %v699, %v436
    %v716 = vsub.f32 %v700, %v441
    %v717 = vsub.f32 %v701, %v446
    %v718 = vsub.f32 %v702, %v451
    %v719 = vsub.f32 %v703, %v456
    %v720 = vsub.f32 %v704, %v461
    %721 = vxpose.xlu0.b32.start [1/16] %v673, 128
    %722 = vxpose.xlu0.b32.cont [2/16] %v674, 128
    %723 = vxpose.xlu0.b32.cont [3/16] 0.0, 128
    %724 = vxpose.xlu0.b32.cont [4/16] 0.0, 128
    %725 = vxpose.xlu0.b32.cont [5/16] 0.0, 128
    %726 = vxpose.xlu0.b32.cont [6/16] 0.0, 128
    %727 = vxpose.xlu0.b32.cont [7/16] 0.0, 128
    %728 = vxpose.xlu0.b32.cont [8/16] 0.0, 128
    %729 = vxpose.xlu0.b32.cont [9/16] 0.0, 128
    %730 = vxpose.xlu0.b32.cont [10/16] 0.0, 128
    %731 = vxpose.xlu0.b32.cont [11/16] 0.0, 128
    %732 = vxpose.xlu0.b32.cont [12/16] 0.0, 128
    %733 = vxpose.xlu0.b32.cont [13/16] 0.0, 128
    %734 = vxpose.xlu0.b32.cont [14/16] 0.0, 128
    %735 = vxpose.xlu0.b32.cont [15/16] 0.0, 128
    %736 = vxpose.xlu0.b32.end [16/16] 0.0, 128
    %v737 = vpop.trf.xlu0
    %v738 = vpop.trf.xlu0
    %v739 = vpop.trf.xlu0
    %v740 = vpop.trf.xlu0
    %v741 = vpop.trf.xlu0
    %v742 = vpop.trf.xlu0
    %v743 = vpop.trf.xlu0
    %v744 = vpop.trf.xlu0
    %v745 = vpop.trf.xlu0
    %v746 = vpop.trf.xlu0
    %v747 = vpop.trf.xlu0
    %v748 = vpop.trf.xlu0
    %v749 = vpop.trf.xlu0
    %v750 = vpop.trf.xlu0
    %v751 = vpop.trf.xlu0
    %v752 = vpop.trf.xlu0
    %753 = vxpose.xlu0.b32.start [1/16] %v675, 128
    %754 = vxpose.xlu0.b32.cont [2/16] %v676, 128
    %755 = vxpose.xlu0.b32.cont [3/16] 0.0, 128
    %756 = vxpose.xlu0.b32.cont [4/16] 0.0, 128
    %757 = vxpose.xlu0.b32.cont [5/16] 0.0, 128
    %758 = vxpose.xlu0.b32.cont [6/16] 0.0, 128
    %759 = vxpose.xlu0.b32.cont [7/16] 0.0, 128
    %760 = vxpose.xlu0.b32.cont [8/16] 0.0, 128
    %761 = vxpose.xlu0.b32.cont [9/16] 0.0, 128
    %762 = vxpose.xlu0.b32.cont [10/16] 0.0, 128
    %763 = vxpose.xlu0.b32.cont [11/16] 0.0, 128
    %764 = vxpose.xlu0.b32.cont [12/16] 0.0, 128
    %765 = vxpose.xlu0.b32.cont [13/16] 0.0, 128
    %766 = vxpose.xlu0.b32.cont [14/16] 0.0, 128
    %767 = vxpose.xlu0.b32.cont [15/16] 0.0, 128
    %768 = vxpose.xlu0.b32.end [16/16] 0.0, 128
    %v769 = vpop.trf.xlu0
    %v770 = vpop.trf.xlu0
    %v771 = vpop.trf.xlu0
    %v772 = vpop.trf.xlu0
    %v773 = vpop.trf.xlu0
    %v774 = vpop.trf.xlu0
    %v775 = vpop.trf.xlu0
    %v776 = vpop.trf.xlu0
    %v777 = vpop.trf.xlu0
    %v778 = vpop.trf.xlu0
    %v779 = vpop.trf.xlu0
    %v780 = vpop.trf.xlu0
    %v781 = vpop.trf.xlu0
    %v782 = vpop.trf.xlu0
    %v783 = vpop.trf.xlu0
    %v784 = vpop.trf.xlu0
    %785 = vxpose.xlu0.b32.start [1/16] %v677, 128
    %786 = vxpose.xlu0.b32.cont [2/16] %v678, 128
    %787 = vxpose.xlu0.b32.cont [3/16] 0.0, 128
    %788 = vxpose.xlu0.b32.cont [4/16] 0.0, 128
    %789 = vxpose.xlu0.b32.cont [5/16] 0.0, 128
    %790 = vxpose.xlu0.b32.cont [6/16] 0.0, 128
    %791 = vxpose.xlu0.b32.cont [7/16] 0.0, 128
    %792 = vxpose.xlu0.b32.cont [8/16] 0.0, 128
    %793 = vxpose.xlu0.b32.cont [9/16] 0.0, 128
    %794 = vxpose.xlu0.b32.cont [10/16] 0.0, 128
    %795 = vxpose.xlu0.b32.cont [11/16] 0.0, 128
    %796 = vxpose.xlu0.b32.cont [12/16] 0.0, 128
    %797 = vxpose.xlu0.b32.cont [13/16] 0.0, 128
    %798 = vxpose.xlu0.b32.cont [14/16] 0.0, 128
    %799 = vxpose.xlu0.b32.cont [15/16] 0.0, 128
    %800 = vxpose.xlu0.b32.end [16/16] 0.0, 128
    %v801 = vpop.trf.xlu0
    %v802 = vpop.trf.xlu0
    %v803 = vpop.trf.xlu0
    %v804 = vpop.trf.xlu0
    %v805 = vpop.trf.xlu0
    %v806 = vpop.trf.xlu0
    %v807 = vpop.trf.xlu0
    %v808 = vpop.trf.xlu0
    %v809 = vpop.trf.xlu0
    %v810 = vpop.trf.xlu0
    %v811 = vpop.trf.xlu0
    %v812 = vpop.trf.xlu0
    %v813 = vpop.trf.xlu0
    %v814 = vpop.trf.xlu0
    %v815 = vpop.trf.xlu0
    %v816 = vpop.trf.xlu0
    %817 = vxpose.xlu0.b32.start [1/16] %v679, 128
    %818 = vxpose.xlu0.b32.cont [2/16] %v680, 128
    %819 = vxpose.xlu0.b32.cont [3/16] 0.0, 128
    %820 = vxpose.xlu0.b32.cont [4/16] 0.0, 128
    %821 = vxpose.xlu0.b32.cont [5/16] 0.0, 128
    %822 = vxpose.xlu0.b32.cont [6/16] 0.0, 128
    %823 = vxpose.xlu0.b32.cont [7/16] 0.0, 128
    %824 = vxpose.xlu0.b32.cont [8/16] 0.0, 128
    %825 = vxpose.xlu0.b32.cont [9/16] 0.0, 128
    %826 = vxpose.xlu0.b32.cont [10/16] 0.0, 128
    %827 = vxpose.xlu0.b32.cont [11/16] 0.0, 128
    %828 = vxpose.xlu0.b32.cont [12/16] 0.0, 128
    %829 = vxpose.xlu0.b32.cont [13/16] 0.0, 128
    %830 = vxpose.xlu0.b32.cont [14/16] 0.0, 128
    %831 = vxpose.xlu0.b32.cont [15/16] 0.0, 128
    %832 = vxpose.xlu0.b32.end [16/16] 0.0, 128
    %v833 = vpop.trf.xlu0
    %v834 = vpop.trf.xlu0
    %v835 = vpop.trf.xlu0
    %v836 = vpop.trf.xlu0
    %v837 = vpop.trf.xlu0
    %v838 = vpop.trf.xlu0
    %v839 = vpop.trf.xlu0
    %v840 = vpop.trf.xlu0
    %v841 = vpop.trf.xlu0
    %v842 = vpop.trf.xlu0
    %v843 = vpop.trf.xlu0
    %v844 = vpop.trf.xlu0
    %v845 = vpop.trf.xlu0
    %v846 = vpop.trf.xlu0
    %v847 = vpop.trf.xlu0
    %v848 = vpop.trf.xlu0
    %849 = vxpose.xlu0.b32.start [1/16] %v681, 128
    %850 = vxpose.xlu0.b32.cont [2/16] %v682, 128
    %851 = vxpose.xlu0.b32.cont [3/16] 0.0, 128
    %852 = vxpose.xlu0.b32.cont [4/16] 0.0, 128
    %853 = vxpose.xlu0.b32.cont [5/16] 0.0, 128
    %854 = vxpose.xlu0.b32.cont [6/16] 0.0, 128
    %855 = vxpose.xlu0.b32.cont [7/16] 0.0, 128
    %856 = vxpose.xlu0.b32.cont [8/16] 0.0, 128
    %857 = vxpose.xlu0.b32.cont [9/16] 0.0, 128
    %858 = vxpose.xlu0.b32.cont [10/16] 0.0, 128
    %859 = vxpose.xlu0.b32.cont [11/16] 0.0, 128
    %860 = vxpose.xlu0.b32.cont [12/16] 0.0, 128
    %861 = vxpose.xlu0.b32.cont [13/16] 0.0, 128
    %862 = vxpose.xlu0.b32.cont [14/16] 0.0, 128
    %863 = vxpose.xlu0.b32.cont [15/16] 0.0, 128
    %864 = vxpose.xlu0.b32.end [16/16] 0.0, 128
    %v865 = vpop.trf.xlu0
    %v866 = vpop.trf.xlu0
    %v867 = vpop.trf.xlu0
    %v868 = vpop.trf.xlu0
    %v869 = vpop.trf.xlu0
    %v870 = vpop.trf.xlu0
    %v871 = vpop.trf.xlu0
    %v872 = vpop.trf.xlu0
    %v873 = vpop.trf.xlu0
    %v874 = vpop.trf.xlu0
    %v875 = vpop.trf.xlu0
    %v876 = vpop.trf.xlu0
    %v877 = vpop.trf.xlu0
    %v878 = vpop.trf.xlu0
    %v879 = vpop.trf.xlu0
    %v880 = vpop.trf.xlu0
    %881 = vxpose.xlu0.b32.start [1/16] %v683, 128
    %882 = vxpose.xlu0.b32.cont [2/16] %v684, 128
    %883 = vxpose.xlu0.b32.cont [3/16] 0.0, 128
    %884 = vxpose.xlu0.b32.cont [4/16] 0.0, 128
    %885 = vxpose.xlu0.b32.cont [5/16] 0.0, 128
    %886 = vxpose.xlu0.b32.cont [6/16] 0.0, 128
    %887 = vxpose.xlu0.b32.cont [7/16] 0.0, 128
    %888 = vxpose.xlu0.b32.cont [8/16] 0.0, 128
    %889 = vxpose.xlu0.b32.cont [9/16] 0.0, 128
    %890 = vxpose.xlu0.b32.cont [10/16] 0.0, 128
    %891 = vxpose.xlu0.b32.cont [11/16] 0.0, 128
    %892 = vxpose.xlu0.b32.cont [12/16] 0.0, 128
    %893 = vxpose.xlu0.b32.cont [13/16] 0.0, 128
    %894 = vxpose.xlu0.b32.cont [14/16] 0.0, 128
    %895 = vxpose.xlu0.b32.cont [15/16] 0.0, 128
    %896 = vxpose.xlu0.b32.end [16/16] 0.0, 128
    %v897 = vpop.trf.xlu0
    %v898 = vpop.trf.xlu0
    %v899 = vpop.trf.xlu0
    %v900 = vpop.trf.xlu0
    %v901 = vpop.trf.xlu0
    %v902 = vpop.trf.xlu0
    %v903 = vpop.trf.xlu0
    %v904 = vpop.trf.xlu0
    %v905 = vpop.trf.xlu0
    %v906 = vpop.trf.xlu0
    %v907 = vpop.trf.xlu0
    %v908 = vpop.trf.xlu0
    %v909 = vpop.trf.xlu0
    %v910 = vpop.trf.xlu0
    %v911 = vpop.trf.xlu0
    %v912 = vpop.trf.xlu0
    %913 = vxpose.xlu0.b32.start [1/16] %v685, 128
    %914 = vxpose.xlu0.b32.cont [2/16] %v686, 128
    %915 = vxpose.xlu0.b32.cont [3/16] 0.0, 128
    %916 = vxpose.xlu0.b32.cont [4/16] 0.0, 128
    %917 = vxpose.xlu0.b32.cont [5/16] 0.0, 128
    %918 = vxpose.xlu0.b32.cont [6/16] 0.0, 128
    %919 = vxpose.xlu0.b32.cont [7/16] 0.0, 128
    %920 = vxpose.xlu0.b32.cont [8/16] 0.0, 128
    %921 = vxpose.xlu0.b32.cont [9/16] 0.0, 128
    %922 = vxpose.xlu0.b32.cont [10/16] 0.0, 128
    %923 = vxpose.xlu0.b32.cont [11/16] 0.0, 128
    %924 = vxpose.xlu0.b32.cont [12/16] 0.0, 128
    %925 = vxpose.xlu0.b32.cont [13/16] 0.0, 128
    %926 = vxpose.xlu0.b32.cont [14/16] 0.0, 128
    %927 = vxpose.xlu0.b32.cont [15/16] 0.0, 128
    %928 = vxpose.xlu0.b32.end [16/16] 0.0, 128
    %v929 = vpop.trf.xlu0
    %v930 = vpop.trf.xlu0
    %v931 = vpop.trf.xlu0
    %v932 = vpop.trf.xlu0
    %v933 = vpop.trf.xlu0
    %v934 = vpop.trf.xlu0
    %v935 = vpop.trf.xlu0
    %v936 = vpop.trf.xlu0
    %v937 = vpop.trf.xlu0
    %v938 = vpop.trf.xlu0
    %v939 = vpop.trf.xlu0
    %v940 = vpop.trf.xlu0
    %v941 = vpop.trf.xlu0
    %v942 = vpop.trf.xlu0
    %v943 = vpop.trf.xlu0
    %v944 = vpop.trf.xlu0
    %945 = vxpose.xlu0.b32.start [1/16] %v687, 128
    %946 = vxpose.xlu0.b32.cont [2/16] %v688, 128
    %947 = vxpose.xlu0.b32.cont [3/16] 0.0, 128
    %948 = vxpose.xlu0.b32.cont [4/16] 0.0, 128
    %949 = vxpose.xlu0.b32.cont [5/16] 0.0, 128
    %950 = vxpose.xlu0.b32.cont [6/16] 0.0, 128
    %951 = vxpose.xlu0.b32.cont [7/16] 0.0, 128
    %952 = vxpose.xlu0.b32.cont [8/16] 0.0, 128
    %953 = vxpose.xlu0.b32.cont [9/16] 0.0, 128
    %954 = vxpose.xlu0.b32.cont [10/16] 0.0, 128
    %955 = vxpose.xlu0.b32.cont [11/16] 0.0, 128
    %956 = vxpose.xlu0.b32.cont [12/16] 0.0, 128
    %957 = vxpose.xlu0.b32.cont [13/16] 0.0, 128
    %958 = vxpose.xlu0.b32.cont [14/16] 0.0, 128
    %959 = vxpose.xlu0.b32.cont [15/16] 0.0, 128
    %960 = vxpose.xlu0.b32.end [16/16] 0.0, 128
    %v961 = vpop.trf.xlu0
    %v962 = vpop.trf.xlu0
    %v963 = vpop.trf.xlu0
    %v964 = vpop.trf.xlu0
    %v965 = vpop.trf.xlu0
    %v966 = vpop.trf.xlu0
    %v967 = vpop.trf.xlu0
    %v968 = vpop.trf.xlu0
    %v969 = vpop.trf.xlu0
    %v970 = vpop.trf.xlu0
    %v971 = vpop.trf.xlu0
    %v972 = vpop.trf.xlu0
    %v973 = vpop.trf.xlu0
    %v974 = vpop.trf.xlu0
    %v975 = vpop.trf.xlu0
    %v976 = vpop.trf.xlu0
    %977 = vxpose.xlu0.b32.start [1/16] %v705, 128
    %978 = vxpose.xlu0.b32.cont [2/16] %v706, 128
    %979 = vxpose.xlu0.b32.cont [3/16] 0.0, 128
    %980 = vxpose.xlu0.b32.cont [4/16] 0.0, 128
    %981 = vxpose.xlu0.b32.cont [5/16] 0.0, 128
    %982 = vxpose.xlu0.b32.cont [6/16] 0.0, 128
    %983 = vxpose.xlu0.b32.cont [7/16] 0.0, 128
    %984 = vxpose.xlu0.b32.cont [8/16] 0.0, 128
    %985 = vxpose.xlu0.b32.cont [9/16] 0.0, 128
    %986 = vxpose.xlu0.b32.cont [10/16] 0.0, 128
    %987 = vxpose.xlu0.b32.cont [11/16] 0.0, 128
    %988 = vxpose.xlu0.b32.cont [12/16] 0.0, 128
    %989 = vxpose.xlu0.b32.cont [13/16] 0.0, 128
    %990 = vxpose.xlu0.b32.cont [14/16] 0.0, 128
    %991 = vxpose.xlu0.b32.cont [15/16] 0.0, 128
    %992 = vxpose.xlu0.b32.end [16/16] 0.0, 128
    %v993 = vpop.trf.xlu0
    %v994 = vpop.trf.xlu0
    %v995 = vpop.trf.xlu0
    %v996 = vpop.trf.xlu0
    %v997 = vpop.trf.xlu0
    %v998 = vpop.trf.xlu0
    %v999 = vpop.trf.xlu0
    %v1000 = vpop.trf.xlu0
    %v1001 = vpop.trf.xlu0
    %v1002 = vpop.trf.xlu0
    %v1003 = vpop.trf.xlu0
    %v1004 = vpop.trf.xlu0
    %v1005 = vpop.trf.xlu0
    %v1006 = vpop.trf.xlu0
    %v1007 = vpop.trf.xlu0
    %v1008 = vpop.trf.xlu0
    %1009 = vxpose.xlu0.b32.start [1/16] %v707, 128
    %1010 = vxpose.xlu0.b32.cont [2/16] %v708, 128
    %1011 = vxpose.xlu0.b32.cont [3/16] 0.0, 128
    %1012 = vxpose.xlu0.b32.cont [4/16] 0.0, 128
    %1013 = vxpose.xlu0.b32.cont [5/16] 0.0, 128
    %1014 = vxpose.xlu0.b32.cont [6/16] 0.0, 128
    %1015 = vxpose.xlu0.b32.cont [7/16] 0.0, 128
    %1016 = vxpose.xlu0.b32.cont [8/16] 0.0, 128
    %1017 = vxpose.xlu0.b32.cont [9/16] 0.0, 128
    %1018 = vxpose.xlu0.b32.cont [10/16] 0.0, 128
    %1019 = vxpose.xlu0.b32.cont [11/16] 0.0, 128
    %1020 = vxpose.xlu0.b32.cont [12/16] 0.0, 128
    %1021 = vxpose.xlu0.b32.cont [13/16] 0.0, 128
    %1022 = vxpose.xlu0.b32.cont [14/16] 0.0, 128
    %1023 = vxpose.xlu0.b32.cont [15/16] 0.0, 128
    %1024 = vxpose.xlu0.b32.end [16/16] 0.0, 128
    %v1025 = vpop.trf.xlu0
    %v1026 = vpop.trf.xlu0
    %v1027 = vpop.trf.xlu0
    %v1028 = vpop.trf.xlu0
    %v1029 = vpop.trf.xlu0
    %v1030 = vpop.trf.xlu0
    %v1031 = vpop.trf.xlu0
    %v1032 = vpop.trf.xlu0
    %v1033 = vpop.trf.xlu0
    %v1034 = vpop.trf.xlu0
    %v1035 = vpop.trf.xlu0
    %v1036 = vpop.trf.xlu0
    %v1037 = vpop.trf.xlu0
    %v1038 = vpop.trf.xlu0
    %v1039 = vpop.trf.xlu0
    %v1040 = vpop.trf.xlu0
    %1041 = vxpose.xlu0.b32.start [1/16] %v709, 128
    %1042 = vxpose.xlu0.b32.cont [2/16] %v710, 128
    %1043 = vxpose.xlu0.b32.cont [3/16] 0.0, 128
    %1044 = vxpose.xlu0.b32.cont [4/16] 0.0, 128
    %1045 = vxpose.xlu0.b32.cont [5/16] 0.0, 128
    %1046 = vxpose.xlu0.b32.cont [6/16] 0.0, 128
    %1047 = vxpose.xlu0.b32.cont [7/16] 0.0, 128
    %1048 = vxpose.xlu0.b32.cont [8/16] 0.0, 128
    %1049 = vxpose.xlu0.b32.cont [9/16] 0.0, 128
    %1050 = vxpose.xlu0.b32.cont [10/16] 0.0, 128
    %1051 = vxpose.xlu0.b32.cont [11/16] 0.0, 128
    %1052 = vxpose.xlu0.b32.cont [12/16] 0.0, 128
    %1053 = vxpose.xlu0.b32.cont [13/16] 0.0, 128
    %1054 = vxpose.xlu0.b32.cont [14/16] 0.0, 128
    %1055 = vxpose.xlu0.b32.cont [15/16] 0.0, 128
    %1056 = vxpose.xlu0.b32.end [16/16] 0.0, 128
    %v1057 = vpop.trf.xlu0
    %v1058 = vpop.trf.xlu0
    %v1059 = vpop.trf.xlu0
    %v1060 = vpop.trf.xlu0
    %v1061 = vpop.trf.xlu0
    %v1062 = vpop.trf.xlu0
    %v1063 = vpop.trf.xlu0
    %v1064 = vpop.trf.xlu0
    %v1065 = vpop.trf.xlu0
    %v1066 = vpop.trf.xlu0
    %v1067 = vpop.trf.xlu0
    %v1068 = vpop.trf.xlu0
    %v1069 = vpop.trf.xlu0
    %v1070 = vpop.trf.xlu0
    %v1071 = vpop.trf.xlu0
    %v1072 = vpop.trf.xlu0
    %1073 = vxpose.xlu0.b32.start [1/16] %v711, 128
    %1074 = vxpose.xlu0.b32.cont [2/16] %v712, 128
    %1075 = vxpose.xlu0.b32.cont [3/16] 0.0, 128
    %1076 = vxpose.xlu0.b32.cont [4/16] 0.0, 128
    %1077 = vxpose.xlu0.b32.cont [5/16] 0.0, 128
    %1078 = vxpose.xlu0.b32.cont [6/16] 0.0, 128
    %1079 = vxpose.xlu0.b32.cont [7/16] 0.0, 128
    %1080 = vxpose.xlu0.b32.cont [8/16] 0.0, 128
    %1081 = vxpose.xlu0.b32.cont [9/16] 0.0, 128
    %1082 = vxpose.xlu0.b32.cont [10/16] 0.0, 128
    %1083 = vxpose.xlu0.b32.cont [11/16] 0.0, 128
    %1084 = vxpose.xlu0.b32.cont [12/16] 0.0, 128
    %1085 = vxpose.xlu0.b32.cont [13/16] 0.0, 128
    %1086 = vxpose.xlu0.b32.cont [14/16] 0.0, 128
    %1087 = vxpose.xlu0.b32.cont [15/16] 0.0, 128
    %1088 = vxpose.xlu0.b32.end [16/16] 0.0, 128
    %v1089 = vpop.trf.xlu0
    %v1090 = vpop.trf.xlu0
    %v1091 = vpop.trf.xlu0
    %v1092 = vpop.trf.xlu0
    %v1093 = vpop.trf.xlu0
    %v1094 = vpop.trf.xlu0
    %v1095 = vpop.trf.xlu0
    %v1096 = vpop.trf.xlu0
    %v1097 = vpop.trf.xlu0
    %v1098 = vpop.trf.xlu0
    %v1099 = vpop.trf.xlu0
    %v1100 = vpop.trf.xlu0
    %v1101 = vpop.trf.xlu0
    %v1102 = vpop.trf.xlu0
    %v1103 = vpop.trf.xlu0
    %v1104 = vpop.trf.xlu0
    %1105 = vxpose.xlu0.b32.start [1/16] %v713, 128
    %1106 = vxpose.xlu0.b32.cont [2/16] %v714, 128
    %1107 = vxpose.xlu0.b32.cont [3/16] 0.0, 128
    %1108 = vxpose.xlu0.b32.cont [4/16] 0.0, 128
    %1109 = vxpose.xlu0.b32.cont [5/16] 0.0, 128
    %1110 = vxpose.xlu0.b32.cont [6/16] 0.0, 128
    %1111 = vxpose.xlu0.b32.cont [7/16] 0.0, 128
    %1112 = vxpose.xlu0.b32.cont [8/16] 0.0, 128
    %1113 = vxpose.xlu0.b32.cont [9/16] 0.0, 128
    %1114 = vxpose.xlu0.b32.cont [10/16] 0.0, 128
    %1115 = vxpose.xlu0.b32.cont [11/16] 0.0, 128
    %1116 = vxpose.xlu0.b32.cont [12/16] 0.0, 128
    %1117 = vxpose.xlu0.b32.cont [13/16] 0.0, 128
    %1118 = vxpose.xlu0.b32.cont [14/16] 0.0, 128
    %1119 = vxpose.xlu0.b32.cont [15/16] 0.0, 128
    %1120 = vxpose.xlu0.b32.end [16/16] 0.0, 128
    %v1121 = vpop.trf.xlu0
    %v1122 = vpop.trf.xlu0
    %v1123 = vpop.trf.xlu0
    %v1124 = vpop.trf.xlu0
    %v1125 = vpop.trf.xlu0
    %v1126 = vpop.trf.xlu0
    %v1127 = vpop.trf.xlu0
    %v1128 = vpop.trf.xlu0
    %v1129 = vpop.trf.xlu0
    %v1130 = vpop.trf.xlu0
    %v1131 = vpop.trf.xlu0
    %v1132 = vpop.trf.xlu0
    %v1133 = vpop.trf.xlu0
    %v1134 = vpop.trf.xlu0
    %v1135 = vpop.trf.xlu0
    %v1136 = vpop.trf.xlu0
    %1137 = vxpose.xlu0.b32.start [1/16] %v715, 128
    %1138 = vxpose.xlu0.b32.cont [2/16] %v716, 128
    %1139 = vxpose.xlu0.b32.cont [3/16] 0.0, 128
    %1140 = vxpose.xlu0.b32.cont [4/16] 0.0, 128
    %1141 = vxpose.xlu0.b32.cont [5/16] 0.0, 128
    %1142 = vxpose.xlu0.b32.cont [6/16] 0.0, 128
    %1143 = vxpose.xlu0.b32.cont [7/16] 0.0, 128
    %1144 = vxpose.xlu0.b32.cont [8/16] 0.0, 128
    %1145 = vxpose.xlu0.b32.cont [9/16] 0.0, 128
    %1146 = vxpose.xlu0.b32.cont [10/16] 0.0, 128
    %1147 = vxpose.xlu0.b32.cont [11/16] 0.0, 128
    %1148 = vxpose.xlu0.b32.cont [12/16] 0.0, 128
    %1149 = vxpose.xlu0.b32.cont [13/16] 0.0, 128
    %1150 = vxpose.xlu0.b32.cont [14/16] 0.0, 128
    %1151 = vxpose.xlu0.b32.cont [15/16] 0.0, 128
    %1152 = vxpose.xlu0.b32.end [16/16] 0.0, 128
    %v1153 = vpop.trf.xlu0
    %v1154 = vpop.trf.xlu0
    %v1155 = vpop.trf.xlu0
    %v1156 = vpop.trf.xlu0
    %v1157 = vpop.trf.xlu0
    %v1158 = vpop.trf.xlu0
    %v1159 = vpop.trf.xlu0
    %v1160 = vpop.trf.xlu0
    %v1161 = vpop.trf.xlu0
    %v1162 = vpop.trf.xlu0
    %v1163 = vpop.trf.xlu0
    %v1164 = vpop.trf.xlu0
    %v1165 = vpop.trf.xlu0
    %v1166 = vpop.trf.xlu0
    %v1167 = vpop.trf.xlu0
    %v1168 = vpop.trf.xlu0
    %1169 = vxpose.xlu0.b32.start [1/16] %v717, 128
    %1170 = vxpose.xlu0.b32.cont [2/16] %v718, 128
    %1171 = vxpose.xlu0.b32.cont [3/16] 0.0, 128
    %1172 = vxpose.xlu0.b32.cont [4/16] 0.0, 128
    %1173 = vxpose.xlu0.b32.cont [5/16] 0.0, 128
    %1174 = vxpose.xlu0.b32.cont [6/16] 0.0, 128
    %1175 = vxpose.xlu0.b32.cont [7/16] 0.0, 128
    %1176 = vxpose.xlu0.b32.cont [8/16] 0.0, 128
    %1177 = vxpose.xlu0.b32.cont [9/16] 0.0, 128
    %1178 = vxpose.xlu0.b32.cont [10/16] 0.0, 128
    %1179 = vxpose.xlu0.b32.cont [11/16] 0.0, 128
    %1180 = vxpose.xlu0.b32.cont [12/16] 0.0, 128
    %1181 = vxpose.xlu0.b32.cont [13/16] 0.0, 128
    %1182 = vxpose.xlu0.b32.cont [14/16] 0.0, 128
    %1183 = vxpose.xlu0.b32.cont [15/16] 0.0, 128
    %1184 = vxpose.xlu0.b32.end [16/16] 0.0, 128
    %v1185 = vpop.trf.xlu0
    %v1186 = vpop.trf.xlu0
    %v1187 = vpop.trf.xlu0
    %v1188 = vpop.trf.xlu0
    %v1189 = vpop.trf.xlu0
    %v1190 = vpop.trf.xlu0
    %v1191 = vpop.trf.xlu0
    %v1192 = vpop.trf.xlu0
    %v1193 = vpop.trf.xlu0
    %v1194 = vpop.trf.xlu0
    %v1195 = vpop.trf.xlu0
    %v1196 = vpop.trf.xlu0
    %v1197 = vpop.trf.xlu0
    %v1198 = vpop.trf.xlu0
    %v1199 = vpop.trf.xlu0
    %v1200 = vpop.trf.xlu0
    %1201 = vxpose.xlu0.b32.start [1/16] %v719, 128
    %1202 = vxpose.xlu0.b32.cont [2/16] %v720, 128
    %1203 = vxpose.xlu0.b32.cont [3/16] 0.0, 128
    %1204 = vxpose.xlu0.b32.cont [4/16] 0.0, 128
    %1205 = vxpose.xlu0.b32.cont [5/16] 0.0, 128
    %1206 = vxpose.xlu0.b32.cont [6/16] 0.0, 128
    %1207 = vxpose.xlu0.b32.cont [7/16] 0.0, 128
    %1208 = vxpose.xlu0.b32.cont [8/16] 0.0, 128
    %1209 = vxpose.xlu0.b32.cont [9/16] 0.0, 128
    %1210 = vxpose.xlu0.b32.cont [10/16] 0.0, 128
    %1211 = vxpose.xlu0.b32.cont [11/16] 0.0, 128
    %1212 = vxpose.xlu0.b32.cont [12/16] 0.0, 128
    %1213 = vxpose.xlu0.b32.cont [13/16] 0.0, 128
    %1214 = vxpose.xlu0.b32.cont [14/16] 0.0, 128
    %1215 = vxpose.xlu0.b32.cont [15/16] 0.0, 128
    %1216 = vxpose.xlu0.b32.end [16/16] 0.0, 128
    %v1217 = vpop.trf.xlu0
    %v1218 = vpop.trf.xlu0
    %v1219 = vpop.trf.xlu0
    %v1220 = vpop.trf.xlu0
    %v1221 = vpop.trf.xlu0
    %v1222 = vpop.trf.xlu0
    %v1223 = vpop.trf.xlu0
    %v1224 = vpop.trf.xlu0
    %v1225 = vpop.trf.xlu0
    %v1226 = vpop.trf.xlu0
    %v1227 = vpop.trf.xlu0
    %v1228 = vpop.trf.xlu0
    %v1229 = vpop.trf.xlu0
    %v1230 = vpop.trf.xlu0
    %v1231 = vpop.trf.xlu0
    %v1232 = vpop.trf.xlu0
    %v1234 = vsel %vm77, %v737, 0
    %v1237 = vsel %vm77, %v738, 0
    %v1240 = vsel %vm77, %v769, 0
    %v1243 = vsel %vm77, %v770, 0
    %v1246 = vsel %vm77, %v801, 0
    %v1249 = vsel %vm77, %v802, 0
    %v1252 = vsel %vm77, %v833, 0
    %v1255 = vsel %vm77, %v834, 0
    %v1258 = vsel %vm77, %v865, 0
    %v1261 = vsel %vm77, %v866, 0
    %v1264 = vsel %vm77, %v897, 0
    %v1267 = vsel %vm77, %v898, 0
    %v1270 = vsel %vm77, %v929, 0
    %v1273 = vsel %vm77, %v930, 0
    %v1276 = vsel %vm77, %v961, 0
    %v1279 = vsel %vm77, %v962, 0
    %1281 = vmatprep.subr.mxu0 0.0
    %1282 = vmatpush1.msra.mxu0 %v33
    %1283 = vmatprep.subr.mxu0 0.0
    %1284 = vmatpush1.msra.mxu0 %v34
    %1285 = vmatprep.subr.mxu0 0.0
    %1286 = vmatpush1.msra.mxu0 0.0
    %1287 = vmatprep.subr.mxu0 0.0
    %1288 = vmatpush1.msra.mxu0 0.0
    %1289 = vmatprep.subr.mxu0 0.0
    %1290 = vmatpush1.msra.mxu0 0.0
    %1291 = vmatprep.subr.mxu0 0.0
    %1292 = vmatpush1.msra.mxu0 0.0
    %1293 = vmatprep.subr.mxu0 0.0
    %1294 = vmatpush1.msra.mxu0 0.0
    %1295 = vmatprep.subr.mxu0 0.0
    %1296 = vmatpush1.msra.mxu0 0.0
    %1297 = vmatprep.subr.mxu0 0.0
    %1298 = vmatpush1.msra.mxu0 0.0
    %1299 = vmatprep.subr.mxu0 0.0
    %1300 = vmatpush1.msra.mxu0 0.0
    %1301 = vmatprep.subr.mxu0 0.0
    %1302 = vmatpush1.msra.mxu0 0.0
    %1303 = vmatprep.subr.mxu0 0.0
    %1304 = vmatpush1.msra.mxu0 0.0
    %1305 = vmatprep.subr.mxu0 0.0
    %1306 = vmatpush1.msra.mxu0 0.0
    %1307 = vmatprep.subr.mxu0 0.0
    %1308 = vmatpush1.msra.mxu0 0.0
    %1309 = vmatprep.subr.mxu0 0.0
    %1310 = vmatpush1.msra.mxu0 0.0
    %1311 = vmatprep.subr.mxu0 0.0
    %1312 = vmatpush1.msra.mxu0 0.0
    %1313 = vmatprep.subr.mxu0 0.0
    %1314 = vmatpush1.msra.mxu0 0.0
    %1315 = vmatprep.subr.mxu0 0.0
    %1316 = vmatpush1.msra.mxu0 0.0
    %1317 = vmatprep.subr.mxu0 0.0
    %1318 = vmatpush1.msra.mxu0 0.0
    %1319 = vmatprep.subr.mxu0 0.0
    %1320 = vmatpush1.msra.mxu0 0.0
    %1321 = vmatprep.subr.mxu0 0.0
    %1322 = vmatpush1.msra.mxu0 0.0
    %1323 = vmatprep.subr.mxu0 0.0
    %1324 = vmatpush1.msra.mxu0 0.0
    %1325 = vmatprep.subr.mxu0 0.0
    %1326 = vmatpush1.msra.mxu0 0.0
    %1327 = vmatprep.subr.mxu0 0.0
    %1328 = vmatpush1.msra.mxu0 0.0
    %1329 = vmatprep.subr.mxu0 0.0
    %1330 = vmatpush1.msra.mxu0 0.0
    %1331 = vmatprep.subr.mxu0 0.0
    %1332 = vmatpush1.msra.mxu0 0.0
    %1333 = vmatprep.subr.mxu0 0.0
    %1334 = vmatpush1.msra.mxu0 0.0
    %1335 = vmatprep.subr.mxu0 0.0
    %1336 = vmatpush1.msra.mxu0 0.0
    %1337 = vmatprep.subr.mxu0 0.0
    %1338 = vmatpush1.msra.mxu0 0.0
    %1339 = vmatprep.subr.mxu0 0.0
    %1340 = vmatpush1.msra.mxu0 0.0
    %1341 = vmatprep.subr.mxu0 0.0
    %1342 = vmatpush1.msra.mxu0 0.0
    %1343 = vmatprep.subr.mxu0 0.0
    %1344 = vmatpush1.msra.mxu0 0.0
    %1345 = vmatprep.mubr.f32.mxu0 0.0
    %1346 = vmatmul.mubr.f32.gmra.mrb[0].mxu0 %v1234
    %v1347 = vpop.f32.mrb[0].mxu0
    %v1348 = vadd.f32 0.0, %v1347
    %v1349 = vpop.f32.mrb[0].mxu0
    %1350 = vmatprep.mubr.f32.mxu0 0.0
    %1351 = vmatmul.mubr.f32.gmra.mrb[0].mxu0 %v1237
    %v1352 = vpop.f32.mrb[0].mxu0
    %v1353 = vadd.f32 0.0, %v1352
    %v1354 = vpop.f32.mrb[0].mxu0
    %1355 = vmatprep.mubr.f32.mxu0 0.0
    %1356 = vmatmul.mubr.f32.gmra.mrb[0].mxu0 %v1240
    %v1357 = vpop.f32.mrb[0].mxu0
    %v1358 = vadd.f32 0.0, %v1357
    %v1359 = vpop.f32.mrb[0].mxu0
    %1360 = vmatprep.mubr.f32.mxu0 0.0
    %1361 = vmatmul.mubr.f32.gmra.mrb[0].mxu0 %v1243
    %v1362 = vpop.f32.mrb[0].mxu0
    %v1363 = vadd.f32 0.0, %v1362
    %v1364 = vpop.f32.mrb[0].mxu0
    %1365 = vmatprep.mubr.f32.mxu0 0.0
    %1366 = vmatmul.mubr.f32.gmra.mrb[0].mxu0 %v1246
    %v1367 = vpop.f32.mrb[0].mxu0
    %v1368 = vadd.f32 0.0, %v1367
    %v1369 = vpop.f32.mrb[0].mxu0
    %1370 = vmatprep.mubr.f32.mxu0 0.0
    %1371 = vmatmul.mubr.f32.gmra.mrb[0].mxu0 %v1249
    %v1372 = vpop.f32.mrb[0].mxu0
    %v1373 = vadd.f32 0.0, %v1372
    %v1374 = vpop.f32.mrb[0].mxu0
    %1375 = vmatprep.mubr.f32.mxu0 0.0
    %1376 = vmatmul.mubr.f32.gmra.mrb[0].mxu0 %v1252
    %v1377 = vpop.f32.mrb[0].mxu0
    %v1378 = vadd.f32 0.0, %v1377
    %v1379 = vpop.f32.mrb[0].mxu0
    %1380 = vmatprep.mubr.f32.mxu0 0.0
    %1381 = vmatmul.mubr.f32.gmra.mrb[0].mxu0 %v1255
    %v1382 = vpop.f32.mrb[0].mxu0
    %v1383 = vadd.f32 0.0, %v1382
    %v1384 = vpop.f32.mrb[0].mxu0
    %1385 = vmatprep.mubr.f32.mxu0 0.0
    %1386 = vmatmul.mubr.f32.gmra.mrb[0].mxu0 %v1258
    %v1387 = vpop.f32.mrb[0].mxu0
    %v1388 = vadd.f32 0.0, %v1387
    %v1389 = vpop.f32.mrb[0].mxu0
    %1390 = vmatprep.mubr.f32.mxu0 0.0
    %1391 = vmatmul.mubr.f32.gmra.mrb[0].mxu0 %v1261
    %v1392 = vpop.f32.mrb[0].mxu0
    %v1393 = vadd.f32 0.0, %v1392
    %v1394 = vpop.f32.mrb[0].mxu0
    %1395 = vmatprep.mubr.f32.mxu0 0.0
    %1396 = vmatmul.mubr.f32.gmra.mrb[0].mxu0 %v1264
    %v1397 = vpop.f32.mrb[0].mxu0
    %v1398 = vadd.f32 0.0, %v1397
    %v1399 = vpop.f32.mrb[0].mxu0
    %1400 = vmatprep.mubr.f32.mxu0 0.0
    %1401 = vmatmul.mubr.f32.gmra.mrb[0].mxu0 %v1267
    %v1402 = vpop.f32.mrb[0].mxu0
    %v1403 = vadd.f32 0.0, %v1402
    %v1404 = vpop.f32.mrb[0].mxu0
    %1405 = vmatprep.mubr.f32.mxu0 0.0
    %1406 = vmatmul.mubr.f32.gmra.mrb[0].mxu0 %v1270
    %v1407 = vpop.f32.mrb[0].mxu0
    %v1408 = vadd.f32 0.0, %v1407
    %v1409 = vpop.f32.mrb[0].mxu0
    %1410 = vmatprep.mubr.f32.mxu0 0.0
    %1411 = vmatmul.mubr.f32.gmra.mrb[0].mxu0 %v1273
    %v1412 = vpop.f32.mrb[0].mxu0
    %v1413 = vadd.f32 0.0, %v1412
    %v1414 = vpop.f32.mrb[0].mxu0
    %1415 = vmatprep.mubr.f32.mxu0 0.0
    %1416 = vmatmul.mubr.f32.gmra.mrb[0].mxu0 %v1276
    %v1417 = vpop.f32.mrb[0].mxu0
    %v1418 = vadd.f32 0.0, %v1417
    %v1419 = vpop.f32.mrb[0].mxu0
    %1420 = vmatprep.mubr.f32.mxu0 0.0
    %1421 = vmatmul.mubr.f32.gmra.mrb[0].mxu0 %v1279
    %v1422 = vpop.f32.mrb[0].mxu0
    %v1423 = vadd.f32 0.0, %v1422
    %v1424 = vpop.f32.mrb[0].mxu0
    %1425 = vdwg.mxu0
    %v1427 = vsel %vm77, %v993, 0
    %v1430 = vsel %vm77, %v994, 0
    %v1433 = vsel %vm77, %v1025, 0
    %v1436 = vsel %vm77, %v1026, 0
    %v1439 = vsel %vm77, %v1057, 0
    %v1442 = vsel %vm77, %v1058, 0
    %v1445 = vsel %vm77, %v1089, 0
    %v1448 = vsel %vm77, %v1090, 0
    %v1451 = vsel %vm77, %v1121, 0
    %v1454 = vsel %vm77, %v1122, 0
    %v1457 = vsel %vm77, %v1153, 0
    %v1460 = vsel %vm77, %v1154, 0
    %v1463 = vsel %vm77, %v1185, 0
    %v1466 = vsel %vm77, %v1186, 0
    %v1469 = vsel %vm77, %v1217, 0
    %v1472 = vsel %vm77, %v1218, 0
    %1474 = vmatprep.subr.mxu0 0.0
    %1475 = vmatpush1.msra.mxu0 %v35
    %1476 = vmatprep.subr.mxu0 0.0
    %1477 = vmatpush1.msra.mxu0 %v36
    %1478 = vmatprep.subr.mxu0 0.0
    %1479 = vmatpush1.msra.mxu0 0.0
    %1480 = vmatprep.subr.mxu0 0.0
    %1481 = vmatpush1.msra.mxu0 0.0
    %1482 = vmatprep.subr.mxu0 0.0
    %1483 = vmatpush1.msra.mxu0 0.0
    %1484 = vmatprep.subr.mxu0 0.0
    %1485 = vmatpush1.msra.mxu0 0.0
    %1486 = vmatprep.subr.mxu0 0.0
    %1487 = vmatpush1.msra.mxu0 0.0
    %1488 = vmatprep.subr.mxu0 0.0
    %1489 = vmatpush1.msra.mxu0 0.0
    %1490 = vmatprep.subr.mxu0 0.0
    %1491 = vmatpush1.msra.mxu0 0.0
    %1492 = vmatprep.subr.mxu0 0.0
    %1493 = vmatpush1.msra.mxu0 0.0
    %1494 = vmatprep.subr.mxu0 0.0
    %1495 = vmatpush1.msra.mxu0 0.0
    %1496 = vmatprep.subr.mxu0 0.0
    %1497 = vmatpush1.msra.mxu0 0.0
    %1498 = vmatprep.subr.mxu0 0.0
    %1499 = vmatpush1.msra.mxu0 0.0
    %1500 = vmatprep.subr.mxu0 0.0
    %1501 = vmatpush1.msra.mxu0 0.0
    %1502 = vmatprep.subr.mxu0 0.0
    %1503 = vmatpush1.msra.mxu0 0.0
    %1504 = vmatprep.subr.mxu0 0.0
    %1505 = vmatpush1.msra.mxu0 0.0
    %1506 = vmatprep.subr.mxu0 0.0
    %1507 = vmatpush1.msra.mxu0 0.0
    %1508 = vmatprep.subr.mxu0 0.0
    %1509 = vmatpush1.msra.mxu0 0.0
    %1510 = vmatprep.subr.mxu0 0.0
    %1511 = vmatpush1.msra.mxu0 0.0
    %1512 = vmatprep.subr.mxu0 0.0
    %1513 = vmatpush1.msra.mxu0 0.0
    %1514 = vmatprep.subr.mxu0 0.0
    %1515 = vmatpush1.msra.mxu0 0.0
    %1516 = vmatprep.subr.mxu0 0.0
    %1517 = vmatpush1.msra.mxu0 0.0
    %1518 = vmatprep.subr.mxu0 0.0
    %1519 = vmatpush1.msra.mxu0 0.0
    %1520 = vmatprep.subr.mxu0 0.0
    %1521 = vmatpush1.msra.mxu0 0.0
    %1522 = vmatprep.subr.mxu0 0.0
    %1523 = vmatpush1.msra.mxu0 0.0
    %1524 = vmatprep.subr.mxu0 0.0
    %1525 = vmatpush1.msra.mxu0 0.0
    %1526 = vmatprep.subr.mxu0 0.0
    %1527 = vmatpush1.msra.mxu0 0.0
    %1528 = vmatprep.subr.mxu0 0.0
    %1529 = vmatpush1.msra.mxu0 0.0
    %1530 = vmatprep.subr.mxu0 0.0
    %1531 = vmatpush1.msra.mxu0 0.0
    %1532 = vmatprep.subr.mxu0 0.0
    %1533 = vmatpush1.msra.mxu0 0.0
    %1534 = vmatprep.subr.mxu0 0.0
    %1535 = vmatpush1.msra.mxu0 0.0
    %1536 = vmatprep.subr.mxu0 0.0
    %1537 = vmatpush1.msra.mxu0 0.0
    %1538 = vmatprep.mubr.f32.mxu0 0.0
    %1539 = vmatmul.mubr.f32.gmra.mrb[0].mxu0 %v1427
    %v1540 = vpop.f32.mrb[0].mxu0
    %v1541 = vadd.f32 0.0, %v1540
    %v1542 = vpop.f32.mrb[0].mxu0
    %1543 = vmatprep.mubr.f32.mxu0 0.0
    %1544 = vmatmul.mubr.f32.gmra.mrb[0].mxu0 %v1430
    %v1545 = vpop.f32.mrb[0].mxu0
    %v1546 = vadd.f32 0.0, %v1545
    %v1547 = vpop.f32.mrb[0].mxu0
    %1548 = vmatprep.mubr.f32.mxu0 0.0
    %1549 = vmatmul.mubr.f32.gmra.mrb[0].mxu0 %v1433
    %v1550 = vpop.f32.mrb[0].mxu0
    %v1551 = vadd.f32 0.0, %v1550
    %v1552 = vpop.f32.mrb[0].mxu0
    %1553 = vmatprep.mubr.f32.mxu0 0.0
    %1554 = vmatmul.mubr.f32.gmra.mrb[0].mxu0 %v1436
    %v1555 = vpop.f32.mrb[0].mxu0
    %v1556 = vadd.f32 0.0, %v1555
    %v1557 = vpop.f32.mrb[0].mxu0
    %1558 = vmatprep.mubr.f32.mxu0 0.0
    %1559 = vmatmul.mubr.f32.gmra.mrb[0].mxu0 %v1439
    %v1560 = vpop.f32.mrb[0].mxu0
    %v1561 = vadd.f32 0.0, %v1560
    %v1562 = vpop.f32.mrb[0].mxu0
    %1563 = vmatprep.mubr.f32.mxu0 0.0
    %1564 = vmatmul.mubr.f32.gmra.mrb[0].mxu0 %v1442
    %v1565 = vpop.f32.mrb[0].mxu0
    %v1566 = vadd.f32 0.0, %v1565
    %v1567 = vpop.f32.mrb[0].mxu0
    %1568 = vmatprep.mubr.f32.mxu0 0.0
    %1569 = vmatmul.mubr.f32.gmra.mrb[0].mxu0 %v1445
    %v1570 = vpop.f32.mrb[0].mxu0
    %v1571 = vadd.f32 0.0, %v1570
    %v1572 = vpop.f32.mrb[0].mxu0
    %1573 = vmatprep.mubr.f32.mxu0 0.0
    %1574 = vmatmul.mubr.f32.gmra.mrb[0].mxu0 %v1448
    %v1575 = vpop.f32.mrb[0].mxu0
    %v1576 = vadd.f32 0.0, %v1575
    %v1577 = vpop.f32.mrb[0].mxu0
    %1578 = vmatprep.mubr.f32.mxu0 0.0
    %1579 = vmatmul.mubr.f32.gmra.mrb[0].mxu0 %v1451
    %v1580 = vpop.f32.mrb[0].mxu0
    %v1581 = vadd.f32 0.0, %v1580
    %v1582 = vpop.f32.mrb[0].mxu0
    %1583 = vmatprep.mubr.f32.mxu0 0.0
    %1584 = vmatmul.mubr.f32.gmra.mrb[0].mxu0 %v1454
    %v1585 = vpop.f32.mrb[0].mxu0
    %v1586 = vadd.f32 0.0, %v1585
    %v1587 = vpop.f32.mrb[0].mxu0
    %1588 = vmatprep.mubr.f32.mxu0 0.0
    %1589 = vmatmul.mubr.f32.gmra.mrb[0].mxu0 %v1457
    %v1590 = vpop.f32.mrb[0].mxu0
    %v1591 = vadd.f32 0.0, %v1590
    %v1592 = vpop.f32.mrb[0].mxu0
    %1593 = vmatprep.mubr.f32.mxu0 0.0
    %1594 = vmatmul.mubr.f32.gmra.mrb[0].mxu0 %v1460
    %v1595 = vpop.f32.mrb[0].mxu0
    %v1596 = vadd.f32 0.0, %v1595
    %v1597 = vpop.f32.mrb[0].mxu0
    %1598 = vmatprep.mubr.f32.mxu0 0.0
    %1599 = vmatmul.mubr.f32.gmra.mrb[0].mxu0 %v1463
    %v1600 = vpop.f32.mrb[0].mxu0
    %v1601 = vadd.f32 0.0, %v1600
    %v1602 = vpop.f32.mrb[0].mxu0
    %1603 = vmatprep.mubr.f32.mxu0 0.0
    %1604 = vmatmul.mubr.f32.gmra.mrb[0].mxu0 %v1466
    %v1605 = vpop.f32.mrb[0].mxu0
    %v1606 = vadd.f32 0.0, %v1605
    %v1607 = vpop.f32.mrb[0].mxu0
    %1608 = vmatprep.mubr.f32.mxu0 0.0
    %1609 = vmatmul.mubr.f32.gmra.mrb[0].mxu0 %v1469
    %v1610 = vpop.f32.mrb[0].mxu0
    %v1611 = vadd.f32 0.0, %v1610
    %v1612 = vpop.f32.mrb[0].mxu0
    %1613 = vmatprep.mubr.f32.mxu0 0.0
    %1614 = vmatmul.mubr.f32.gmra.mrb[0].mxu0 %v1472
    %v1615 = vpop.f32.mrb[0].mxu0
    %v1616 = vadd.f32 0.0, %v1615
    %v1617 = vpop.f32.mrb[0].mxu0
    %1618 = vdwg.mxu0
    %v1619 = vadd.f32 %v737, %v993
    %v1620 = vadd.f32 %v738, %v994
    %v1621 = vadd.f32 %v769, %v1025
    %v1622 = vadd.f32 %v770, %v1026
    %v1623 = vadd.f32 %v801, %v1057
    %v1624 = vadd.f32 %v802, %v1058
    %v1625 = vadd.f32 %v833, %v1089
    %v1626 = vadd.f32 %v834, %v1090
    %v1627 = vadd.f32 %v865, %v1121
    %v1628 = vadd.f32 %v866, %v1122
    %v1629 = vadd.f32 %v897, %v1153
    %v1630 = vadd.f32 %v898, %v1154
    %v1631 = vadd.f32 %v929, %v1185
    %v1632 = vadd.f32 %v930, %v1186
    %v1633 = vadd.f32 %v961, %v1217
    %v1634 = vadd.f32 %v962, %v1218
    %v1636 = vsel %vm77, %v1619, 0
    %v1639 = vsel %vm77, %v1620, 0
    %v1642 = vsel %vm77, %v1621, 0
    %v1645 = vsel %vm77, %v1622, 0
    %v1648 = vsel %vm77, %v1623, 0
    %v1651 = vsel %vm77, %v1624, 0
    %v1654 = vsel %vm77, %v1625, 0
    %v1657 = vsel %vm77, %v1626, 0
    %v1660 = vsel %vm77, %v1627, 0
    %v1663 = vsel %vm77, %v1628, 0
    %v1666 = vsel %vm77, %v1629, 0
    %v1669 = vsel %vm77, %v1630, 0
    %v1672 = vsel %vm77, %v1631, 0
    %v1675 = vsel %vm77, %v1632, 0
    %v1678 = vsel %vm77, %v1633, 0
    %v1681 = vsel %vm77, %v1634, 0
    %1683 = vmatprep.subr.mxu0 0.0
    %1684 = vmatpush1.msra.mxu0 %v37
    %1685 = vmatprep.subr.mxu0 0.0
    %1686 = vmatpush1.msra.mxu0 %v38
    %1687 = vmatprep.subr.mxu0 0.0
    %1688 = vmatpush1.msra.mxu0 0.0
    %1689 = vmatprep.subr.mxu0 0.0
    %1690 = vmatpush1.msra.mxu0 0.0
    %1691 = vmatprep.subr.mxu0 0.0
    %1692 = vmatpush1.msra.mxu0 0.0
    %1693 = vmatprep.subr.mxu0 0.0
    %1694 = vmatpush1.msra.mxu0 0.0
    %1695 = vmatprep.subr.mxu0 0.0
    %1696 = vmatpush1.msra.mxu0 0.0
    %1697 = vmatprep.subr.mxu0 0.0
    %1698 = vmatpush1.msra.mxu0 0.0
    %1699 = vmatprep.subr.mxu0 0.0
    %1700 = vmatpush1.msra.mxu0 0.0
    %1701 = vmatprep.subr.mxu0 0.0
    %1702 = vmatpush1.msra.mxu0 0.0
    %1703 = vmatprep.subr.mxu0 0.0
    %1704 = vmatpush1.msra.mxu0 0.0
    %1705 = vmatprep.subr.mxu0 0.0
    %1706 = vmatpush1.msra.mxu0 0.0
    %1707 = vmatprep.subr.mxu0 0.0
    %1708 = vmatpush1.msra.mxu0 0.0
    %1709 = vmatprep.subr.mxu0 0.0
    %1710 = vmatpush1.msra.mxu0 0.0
    %1711 = vmatprep.subr.mxu0 0.0
    %1712 = vmatpush1.msra.mxu0 0.0
    %1713 = vmatprep.subr.mxu0 0.0
    %1714 = vmatpush1.msra.mxu0 0.0
    %1715 = vmatprep.subr.mxu0 0.0
    %1716 = vmatpush1.msra.mxu0 0.0
    %1717 = vmatprep.subr.mxu0 0.0
    %1718 = vmatpush1.msra.mxu0 0.0
    %1719 = vmatprep.subr.mxu0 0.0
    %1720 = vmatpush1.msra.mxu0 0.0
    %1721 = vmatprep.subr.mxu0 0.0
    %1722 = vmatpush1.msra.mxu0 0.0
    %1723 = vmatprep.subr.mxu0 0.0
    %1724 = vmatpush1.msra.mxu0 0.0
    %1725 = vmatprep.subr.mxu0 0.0
    %1726 = vmatpush1.msra.mxu0 0.0
    %1727 = vmatprep.subr.mxu0 0.0
    %1728 = vmatpush1.msra.mxu0 0.0
    %1729 = vmatprep.subr.mxu0 0.0
    %1730 = vmatpush1.msra.mxu0 0.0
    %1731 = vmatprep.subr.mxu0 0.0
    %1732 = vmatpush1.msra.mxu0 0.0
    %1733 = vmatprep.subr.mxu0 0.0
    %1734 = vmatpush1.msra.mxu0 0.0
    %1735 = vmatprep.subr.mxu0 0.0
    %1736 = vmatpush1.msra.mxu0 0.0
    %1737 = vmatprep.subr.mxu0 0.0
    %1738 = vmatpush1.msra.mxu0 0.0
    %1739 = vmatprep.subr.mxu0 0.0
    %1740 = vmatpush1.msra.mxu0 0.0
    %1741 = vmatprep.subr.mxu0 0.0
    %1742 = vmatpush1.msra.mxu0 0.0
    %1743 = vmatprep.subr.mxu0 0.0
    %1744 = vmatpush1.msra.mxu0 0.0
    %1745 = vmatprep.subr.mxu0 0.0
    %1746 = vmatpush1.msra.mxu0 0.0
    %1747 = vmatprep.mubr.f32.mxu0 0.0
    %1748 = vmatmul.mubr.f32.gmra.mrb[0].mxu0 %v1636
    %v1749 = vpop.f32.mrb[0].mxu0
    %v1750 = vadd.f32 0.0, %v1749
    %v1751 = vpop.f32.mrb[0].mxu0
    %1752 = vmatprep.mubr.f32.mxu0 0.0
    %1753 = vmatmul.mubr.f32.gmra.mrb[0].mxu0 %v1639
    %v1754 = vpop.f32.mrb[0].mxu0
    %v1755 = vadd.f32 0.0, %v1754
    %v1756 = vpop.f32.mrb[0].mxu0
    %1757 = vmatprep.mubr.f32.mxu0 0.0
    %1758 = vmatmul.mubr.f32.gmra.mrb[0].mxu0 %v1642
    %v1759 = vpop.f32.mrb[0].mxu0
    %v1760 = vadd.f32 0.0, %v1759
    %v1761 = vpop.f32.mrb[0].mxu0
    %1762 = vmatprep.mubr.f32.mxu0 0.0
    %1763 = vmatmul.mubr.f32.gmra.mrb[0].mxu0 %v1645
    %v1764 = vpop.f32.mrb[0].mxu0
    %v1765 = vadd.f32 0.0, %v1764
    %v1766 = vpop.f32.mrb[0].mxu0
    %1767 = vmatprep.mubr.f32.mxu0 0.0
    %1768 = vmatmul.mubr.f32.gmra.mrb[0].mxu0 %v1648
    %v1769 = vpop.f32.mrb[0].mxu0
    %v1770 = vadd.f32 0.0, %v1769
    %v1771 = vpop.f32.mrb[0].mxu0
    %1772 = vmatprep.mubr.f32.mxu0 0.0
    %1773 = vmatmul.mubr.f32.gmra.mrb[0].mxu0 %v1651
    %v1774 = vpop.f32.mrb[0].mxu0
    %v1775 = vadd.f32 0.0, %v1774
    %v1776 = vpop.f32.mrb[0].mxu0
    %1777 = vmatprep.mubr.f32.mxu0 0.0
    %1778 = vmatmul.mubr.f32.gmra.mrb[0].mxu0 %v1654
    %v1779 = vpop.f32.mrb[0].mxu0
    %v1780 = vadd.f32 0.0, %v1779
    %v1781 = vpop.f32.mrb[0].mxu0
    %1782 = vmatprep.mubr.f32.mxu0 0.0
    %1783 = vmatmul.mubr.f32.gmra.mrb[0].mxu0 %v1657
    %v1784 = vpop.f32.mrb[0].mxu0
    %v1785 = vadd.f32 0.0, %v1784
    %v1786 = vpop.f32.mrb[0].mxu0
    %1787 = vmatprep.mubr.f32.mxu0 0.0
    %1788 = vmatmul.mubr.f32.gmra.mrb[0].mxu0 %v1660
    %v1789 = vpop.f32.mrb[0].mxu0
    %v1790 = vadd.f32 0.0, %v1789
    %v1791 = vpop.f32.mrb[0].mxu0
    %1792 = vmatprep.mubr.f32.mxu0 0.0
    %1793 = vmatmul.mubr.f32.gmra.mrb[0].mxu0 %v1663
    %v1794 = vpop.f32.mrb[0].mxu0
    %v1795 = vadd.f32 0.0, %v1794
    %v1796 = vpop.f32.mrb[0].mxu0
    %1797 = vmatprep.mubr.f32.mxu0 0.0
    %1798 = vmatmul.mubr.f32.gmra.mrb[0].mxu0 %v1666
    %v1799 = vpop.f32.mrb[0].mxu0
    %v1800 = vadd.f32 0.0, %v1799
    %v1801 = vpop.f32.mrb[0].mxu0
    %1802 = vmatprep.mubr.f32.mxu0 0.0
    %1803 = vmatmul.mubr.f32.gmra.mrb[0].mxu0 %v1669
    %v1804 = vpop.f32.mrb[0].mxu0
    %v1805 = vadd.f32 0.0, %v1804
    %v1806 = vpop.f32.mrb[0].mxu0
    %1807 = vmatprep.mubr.f32.mxu0 0.0
    %1808 = vmatmul.mubr.f32.gmra.mrb[0].mxu0 %v1672
    %v1809 = vpop.f32.mrb[0].mxu0
    %v1810 = vadd.f32 0.0, %v1809
    %v1811 = vpop.f32.mrb[0].mxu0
    %1812 = vmatprep.mubr.f32.mxu0 0.0
    %1813 = vmatmul.mubr.f32.gmra.mrb[0].mxu0 %v1675
    %v1814 = vpop.f32.mrb[0].mxu0
    %v1815 = vadd.f32 0.0, %v1814
    %v1816 = vpop.f32.mrb[0].mxu0
    %1817 = vmatprep.mubr.f32.mxu0 0.0
    %1818 = vmatmul.mubr.f32.gmra.mrb[0].mxu0 %v1678
    %v1819 = vpop.f32.mrb[0].mxu0
    %v1820 = vadd.f32 0.0, %v1819
    %v1821 = vpop.f32.mrb[0].mxu0
    %1822 = vmatprep.mubr.f32.mxu0 0.0
    %1823 = vmatmul.mubr.f32.gmra.mrb[0].mxu0 %v1681
    %v1824 = vpop.f32.mrb[0].mxu0
    %v1825 = vadd.f32 0.0, %v1824
    %v1826 = vpop.f32.mrb[0].mxu0
    %1827 = vdwg.mxu0
    %v1828 = vsub.f32 %v1348, %v1541
    %v1829 = vsub.f32 %v1353, %v1546
    %v1830 = vsub.f32 %v1358, %v1551
    %v1831 = vsub.f32 %v1363, %v1556
    %v1832 = vsub.f32 %v1368, %v1561
    %v1833 = vsub.f32 %v1373, %v1566
    %v1834 = vsub.f32 %v1378, %v1571
    %v1835 = vsub.f32 %v1383, %v1576
    %v1836 = vsub.f32 %v1388, %v1581
    %v1837 = vsub.f32 %v1393, %v1586
    %v1838 = vsub.f32 %v1398, %v1591
    %v1839 = vsub.f32 %v1403, %v1596
    %v1840 = vsub.f32 %v1408, %v1601
    %v1841 = vsub.f32 %v1413, %v1606
    %v1842 = vsub.f32 %v1418, %v1611
    %v1843 = vsub.f32 %v1423, %v1616
    %v1844 = vsub.f32 %v1750, %v1348
    %v1845 = vsub.f32 %v1755, %v1353
    %v1846 = vsub.f32 %v1760, %v1358
    %v1847 = vsub.f32 %v1765, %v1363
    %v1848 = vsub.f32 %v1770, %v1368
    %v1849 = vsub.f32 %v1775, %v1373
    %v1850 = vsub.f32 %v1780, %v1378
    %v1851 = vsub.f32 %v1785, %v1383
    %v1852 = vsub.f32 %v1790, %v1388
    %v1853 = vsub.f32 %v1795, %v1393
    %v1854 = vsub.f32 %v1800, %v1398
    %v1855 = vsub.f32 %v1805, %v1403
    %v1856 = vsub.f32 %v1810, %v1408
    %v1857 = vsub.f32 %v1815, %v1413
    %v1858 = vsub.f32 %v1820, %v1418
    %v1859 = vsub.f32 %v1825, %v1423
    %v1860 = vsub.f32 %v1844, %v1541
    %v1861 = vsub.f32 %v1845, %v1546
    %v1862 = vsub.f32 %v1846, %v1551
    %v1863 = vsub.f32 %v1847, %v1556
    %v1864 = vsub.f32 %v1848, %v1561
    %v1865 = vsub.f32 %v1849, %v1566
    %v1866 = vsub.f32 %v1850, %v1571
    %v1867 = vsub.f32 %v1851, %v1576
    %v1868 = vsub.f32 %v1852, %v1581
    %v1869 = vsub.f32 %v1853, %v1586
    %v1870 = vsub.f32 %v1854, %v1591
    %v1871 = vsub.f32 %v1855, %v1596
    %v1872 = vsub.f32 %v1856, %v1601
    %v1873 = vsub.f32 %v1857, %v1606
    %v1874 = vsub.f32 %v1858, %v1611
    %v1875 = vsub.f32 %v1859, %v1616
    %v1876 = vld [vmem:[%s2] sm:$0xff]
    %v1877 = vld [vmem:[%s2 + $0x8] sm:$0xff]
    %v1878 = vld [vmem:[%s2 + $0x10] sm:$0xff]
    %v1879 = vld [vmem:[%s2 + $0x18] sm:$0xff]
    %v1880 = vld [vmem:[%s2 + $0x20] sm:$0xff]
    %v1881 = vld [vmem:[%s2 + $0x28] sm:$0xff]
    %v1882 = vld [vmem:[%s2 + $0x30] sm:$0xff]
    %v1883 = vld [vmem:[%s2 + $0x38] sm:$0xff]
    %v1884 = vld [vmem:[%s2 + $0x40] sm:$0xff]
    %v1885 = vld [vmem:[%s2 + $0x48] sm:$0xff]
    %v1886 = vld [vmem:[%s2 + $0x50] sm:$0xff]
    %v1887 = vld [vmem:[%s2 + $0x58] sm:$0xff]
    %v1888 = vld [vmem:[%s2 + $0x60] sm:$0xff]
    %v1889 = vld [vmem:[%s2 + $0x68] sm:$0xff]
    %v1890 = vld [vmem:[%s2 + $0x70] sm:$0xff]
    %v1891 = vld [vmem:[%s2 + $0x78] sm:$0xff]
    %v1892 = vld [vmem:[%s2 + $0x80] sm:$0xff]
    %v1893 = vld [vmem:[%s2 + $0x88] sm:$0xff]
    %v1894 = vld [vmem:[%s2 + $0x90] sm:$0xff]
    %v1895 = vld [vmem:[%s2 + $0x98] sm:$0xff]
    %v1896 = vld [vmem:[%s2 + $0xa0] sm:$0xff]
    %v1897 = vld [vmem:[%s2 + $0xa8] sm:$0xff]
    %v1898 = vld [vmem:[%s2 + $0xb0] sm:$0xff]
    %v1899 = vld [vmem:[%s2 + $0xb8] sm:$0xff]
    %v1900 = vld [vmem:[%s2 + $0xc0] sm:$0xff]
    %v1901 = vld [vmem:[%s2 + $0xc8] sm:$0xff]
    %v1902 = vld [vmem:[%s2 + $0xd0] sm:$0xff]
    %v1903 = vld [vmem:[%s2 + $0xd8] sm:$0xff]
    %v1904 = vld [vmem:[%s2 + $0xe0] sm:$0xff]
    %v1905 = vld [vmem:[%s2 + $0xe8] sm:$0xff]
    %v1906 = vld [vmem:[%s2 + $0xf0] sm:$0xff]
    %v1907 = vld [vmem:[%s2 + $0xf8] sm:$0xff]
    %v1908 = vld [vmem:[%s1] sm:$0xff]
    %v1909 = vld [vmem:[%s1 + $0x8] sm:$0xff]
    %v1910 = vld [vmem:[%s1 + $0x10] sm:$0xff]
    %v1911 = vld [vmem:[%s1 + $0x18] sm:$0xff]
    %v1912 = vld [vmem:[%s1 + $0x20] sm:$0xff]
    %v1913 = vld [vmem:[%s1 + $0x28] sm:$0xff]
    %v1914 = vld [vmem:[%s1 + $0x30] sm:$0xff]
    %v1915 = vld [vmem:[%s1 + $0x38] sm:$0xff]
    %v1916 = vld [vmem:[%s1 + $0x40] sm:$0xff]
    %v1917 = vld [vmem:[%s1 + $0x48] sm:$0xff]
    %v1918 = vld [vmem:[%s1 + $0x50] sm:$0xff]
    %v1919 = vld [vmem:[%s1 + $0x58] sm:$0xff]
    %v1920 = vld [vmem:[%s1 + $0x60] sm:$0xff]
    %v1921 = vld [vmem:[%s1 + $0x68] sm:$0xff]
    %v1922 = vld [vmem:[%s1 + $0x70] sm:$0xff]
    %v1923 = vld [vmem:[%s1 + $0x78] sm:$0xff]
    %v1924 = vsub.f32 %v1876, %v1828
    %v1925 = vsub.f32 %v1877, %v1829
    %v1926 = vsub.f32 %v1880, %v1830
    %v1927 = vsub.f32 %v1881, %v1831
    %v1928 = vsub.f32 %v1884, %v1832
    %v1929 = vsub.f32 %v1885, %v1833
    %v1930 = vsub.f32 %v1888, %v1834
    %v1931 = vsub.f32 %v1889, %v1835
    %v1932 = vsub.f32 %v1892, %v1836
    %v1933 = vsub.f32 %v1893, %v1837
    %v1934 = vsub.f32 %v1896, %v1838
    %v1935 = vsub.f32 %v1897, %v1839
    %v1936 = vsub.f32 %v1900, %v1840
    %v1937 = vsub.f32 %v1901, %v1841
    %v1938 = vsub.f32 %v1904, %v1842
    %v1939 = vsub.f32 %v1905, %v1843
    %v1940 = vmul.f32 %v1908, %v1924
    %v1941 = vmul.f32 %v1909, %v1925
    %v1942 = vmul.f32 %v1910, %v1926
    %v1943 = vmul.f32 %v1911, %v1927
    %v1944 = vmul.f32 %v1912, %v1928
    %v1945 = vmul.f32 %v1913, %v1929
    %v1946 = vmul.f32 %v1914, %v1930
    %v1947 = vmul.f32 %v1915, %v1931
    %v1948 = vmul.f32 %v1916, %v1932
    %v1949 = vmul.f32 %v1917, %v1933
    %v1950 = vmul.f32 %v1918, %v1934
    %v1951 = vmul.f32 %v1919, %v1935
    %v1952 = vmul.f32 %v1920, %v1936
    %v1953 = vmul.f32 %v1921, %v1937
    %v1954 = vmul.f32 %v1922, %v1938
    %v1955 = vmul.f32 %v1923, %v1939
    %v1956 = vadd.f32 %v1828, %v1940
    %v1957 = vadd.f32 %v1829, %v1941
    %v1958 = vadd.f32 %v1830, %v1942
    %v1959 = vadd.f32 %v1831, %v1943
    %v1960 = vadd.f32 %v1832, %v1944
    %v1961 = vadd.f32 %v1833, %v1945
    %v1962 = vadd.f32 %v1834, %v1946
    %v1963 = vadd.f32 %v1835, %v1947
    %v1964 = vadd.f32 %v1836, %v1948
    %v1965 = vadd.f32 %v1837, %v1949
    %v1966 = vadd.f32 %v1838, %v1950
    %v1967 = vadd.f32 %v1839, %v1951
    %v1968 = vadd.f32 %v1840, %v1952
    %v1969 = vadd.f32 %v1841, %v1953
    %v1970 = vadd.f32 %v1842, %v1954
    %v1971 = vadd.f32 %v1843, %v1955
    %v1972 = vsub.f32 %v1878, %v1860
    %v1973 = vsub.f32 %v1879, %v1861
    %v1974 = vsub.f32 %v1882, %v1862
    %v1975 = vsub.f32 %v1883, %v1863
    %v1976 = vsub.f32 %v1886, %v1864
    %v1977 = vsub.f32 %v1887, %v1865
    %v1978 = vsub.f32 %v1890, %v1866
    %v1979 = vsub.f32 %v1891, %v1867
    %v1980 = vsub.f32 %v1894, %v1868
    %v1981 = vsub.f32 %v1895, %v1869
    %v1982 = vsub.f32 %v1898, %v1870
    %v1983 = vsub.f32 %v1899, %v1871
    %v1984 = vsub.f32 %v1902, %v1872
    %v1985 = vsub.f32 %v1903, %v1873
    %v1986 = vsub.f32 %v1906, %v1874
    %v1987 = vsub.f32 %v1907, %v1875
    %v1988 = vmul.f32 %v1908, %v1972
    %v1989 = vmul.f32 %v1909, %v1973
    %v1990 = vmul.f32 %v1910, %v1974
    %v1991 = vmul.f32 %v1911, %v1975
    %v1992 = vmul.f32 %v1912, %v1976
    %v1993 = vmul.f32 %v1913, %v1977
    %v1994 = vmul.f32 %v1914, %v1978
    %v1995 = vmul.f32 %v1915, %v1979
    %v1996 = vmul.f32 %v1916, %v1980
    %v1997 = vmul.f32 %v1917, %v1981
    %v1998 = vmul.f32 %v1918, %v1982
    %v1999 = vmul.f32 %v1919, %v1983
    %v2000 = vmul.f32 %v1920, %v1984
    %v2001 = vmul.f32 %v1921, %v1985
    %v2002 = vmul.f32 %v1922, %v1986
    %v2003 = vmul.f32 %v1923, %v1987
    %v2004 = vadd.f32 %v1860, %v1988
    %v2005 = vadd.f32 %v1861, %v1989
    %v2006 = vadd.f32 %v1862, %v1990
    %v2007 = vadd.f32 %v1863, %v1991
    %v2008 = vadd.f32 %v1864, %v1992
    %v2009 = vadd.f32 %v1865, %v1993
    %v2010 = vadd.f32 %v1866, %v1994
    %v2011 = vadd.f32 %v1867, %v1995
    %v2012 = vadd.f32 %v1868, %v1996
    %v2013 = vadd.f32 %v1869, %v1997
    %v2014 = vadd.f32 %v1870, %v1998
    %v2015 = vadd.f32 %v1871, %v1999
    %v2016 = vadd.f32 %v1872, %v2000
    %v2017 = vadd.f32 %v1873, %v2001
    %v2018 = vadd.f32 %v1874, %v2002
    %v2019 = vadd.f32 %v1875, %v2003
    %v2021 = vsel %vm77, %v1956, 0
    %v2024 = vsel %vm77, %v1957, 0
    %v2027 = vsel %vm77, %v1958, 0
    %v2030 = vsel %vm77, %v1959, 0
    %v2033 = vsel %vm77, %v1960, 0
    %v2036 = vsel %vm77, %v1961, 0
    %v2039 = vsel %vm77, %v1962, 0
    %v2042 = vsel %vm77, %v1963, 0
    %v2045 = vsel %vm77, %v1964, 0
    %v2048 = vsel %vm77, %v1965, 0
    %v2051 = vsel %vm77, %v1966, 0
    %v2054 = vsel %vm77, %v1967, 0
    %v2057 = vsel %vm77, %v1968, 0
    %v2060 = vsel %vm77, %v1969, 0
    %v2063 = vsel %vm77, %v1970, 0
    %v2066 = vsel %vm77, %v1971, 0
    %2068 = vmatprep.subr.mxu0 0.0
    %2069 = vmatpush1.msra.mxu0 %v33
    %2070 = vmatprep.subr.mxu0 0.0
    %2071 = vmatpush1.msra.mxu0 %v34
    %2072 = vmatprep.subr.mxu0 0.0
    %2073 = vmatpush1.msra.mxu0 0.0
    %2074 = vmatprep.subr.mxu0 0.0
    %2075 = vmatpush1.msra.mxu0 0.0
    %2076 = vmatprep.subr.mxu0 0.0
    %2077 = vmatpush1.msra.mxu0 0.0
    %2078 = vmatprep.subr.mxu0 0.0
    %2079 = vmatpush1.msra.mxu0 0.0
    %2080 = vmatprep.subr.mxu0 0.0
    %2081 = vmatpush1.msra.mxu0 0.0
    %2082 = vmatprep.subr.mxu0 0.0
    %2083 = vmatpush1.msra.mxu0 0.0
    %2084 = vmatprep.subr.mxu0 0.0
    %2085 = vmatpush1.msra.mxu0 0.0
    %2086 = vmatprep.subr.mxu0 0.0
    %2087 = vmatpush1.msra.mxu0 0.0
    %2088 = vmatprep.subr.mxu0 0.0
    %2089 = vmatpush1.msra.mxu0 0.0
    %2090 = vmatprep.subr.mxu0 0.0
    %2091 = vmatpush1.msra.mxu0 0.0
    %2092 = vmatprep.subr.mxu0 0.0
    %2093 = vmatpush1.msra.mxu0 0.0
    %2094 = vmatprep.subr.mxu0 0.0
    %2095 = vmatpush1.msra.mxu0 0.0
    %2096 = vmatprep.subr.mxu0 0.0
    %2097 = vmatpush1.msra.mxu0 0.0
    %2098 = vmatprep.subr.mxu0 0.0
    %2099 = vmatpush1.msra.mxu0 0.0
    %2100 = vmatprep.subr.mxu0 0.0
    %2101 = vmatpush1.msra.mxu0 0.0
    %2102 = vmatprep.subr.mxu0 0.0
    %2103 = vmatpush1.msra.mxu0 0.0
    %2104 = vmatprep.subr.mxu0 0.0
    %2105 = vmatpush1.msra.mxu0 0.0
    %2106 = vmatprep.subr.mxu0 0.0
    %2107 = vmatpush1.msra.mxu0 0.0
    %2108 = vmatprep.subr.mxu0 0.0
    %2109 = vmatpush1.msra.mxu0 0.0
    %2110 = vmatprep.subr.mxu0 0.0
    %2111 = vmatpush1.msra.mxu0 0.0
    %2112 = vmatprep.subr.mxu0 0.0
    %2113 = vmatpush1.msra.mxu0 0.0
    %2114 = vmatprep.subr.mxu0 0.0
    %2115 = vmatpush1.msra.mxu0 0.0
    %2116 = vmatprep.subr.mxu0 0.0
    %2117 = vmatpush1.msra.mxu0 0.0
    %2118 = vmatprep.subr.mxu0 0.0
    %2119 = vmatpush1.msra.mxu0 0.0
    %2120 = vmatprep.subr.mxu0 0.0
    %2121 = vmatpush1.msra.mxu0 0.0
    %2122 = vmatprep.subr.mxu0 0.0
    %2123 = vmatpush1.msra.mxu0 0.0
    %2124 = vmatprep.subr.mxu0 0.0
    %2125 = vmatpush1.msra.mxu0 0.0
    %2126 = vmatprep.subr.mxu0 0.0
    %2127 = vmatpush1.msra.mxu0 0.0
    %2128 = vmatprep.subr.mxu0 0.0
    %2129 = vmatpush1.msra.mxu0 0.0
    %2130 = vmatprep.subr.mxu0 0.0
    %2131 = vmatpush1.msra.mxu0 0.0
    %2132 = vmatprep.mubr.f32.mxu0 0.0
    %2133 = vmatmul.mubr.f32.gmra.mrb[0].mxu0 %v2021
    %v2134 = vpop.f32.mrb[0].mxu0
    %v2135 = vadd.f32 0.0, %v2134
    %v2136 = vpop.f32.mrb[0].mxu0
    %2137 = vmatprep.mubr.f32.mxu0 0.0
    %2138 = vmatmul.mubr.f32.gmra.mrb[0].mxu0 %v2024
    %v2139 = vpop.f32.mrb[0].mxu0
    %v2140 = vadd.f32 0.0, %v2139
    %v2141 = vpop.f32.mrb[0].mxu0
    %2142 = vmatprep.mubr.f32.mxu0 0.0
    %2143 = vmatmul.mubr.f32.gmra.mrb[0].mxu0 %v2027
    %v2144 = vpop.f32.mrb[0].mxu0
    %v2145 = vadd.f32 0.0, %v2144
    %v2146 = vpop.f32.mrb[0].mxu0
    %2147 = vmatprep.mubr.f32.mxu0 0.0
    %2148 = vmatmul.mubr.f32.gmra.mrb[0].mxu0 %v2030
    %v2149 = vpop.f32.mrb[0].mxu0
    %v2150 = vadd.f32 0.0, %v2149
    %v2151 = vpop.f32.mrb[0].mxu0
    %2152 = vmatprep.mubr.f32.mxu0 0.0
    %2153 = vmatmul.mubr.f32.gmra.mrb[0].mxu0 %v2033
    %v2154 = vpop.f32.mrb[0].mxu0
    %v2155 = vadd.f32 0.0, %v2154
    %v2156 = vpop.f32.mrb[0].mxu0
    %2157 = vmatprep.mubr.f32.mxu0 0.0
    %2158 = vmatmul.mubr.f32.gmra.mrb[0].mxu0 %v2036
    %v2159 = vpop.f32.mrb[0].mxu0
    %v2160 = vadd.f32 0.0, %v2159
    %v2161 = vpop.f32.mrb[0].mxu0
    %2162 = vmatprep.mubr.f32.mxu0 0.0
    %2163 = vmatmul.mubr.f32.gmra.mrb[0].mxu0 %v2039
    %v2164 = vpop.f32.mrb[0].mxu0
    %v2165 = vadd.f32 0.0, %v2164
    %v2166 = vpop.f32.mrb[0].mxu0
    %2167 = vmatprep.mubr.f32.mxu0 0.0
    %2168 = vmatmul.mubr.f32.gmra.mrb[0].mxu0 %v2042
    %v2169 = vpop.f32.mrb[0].mxu0
    %v2170 = vadd.f32 0.0, %v2169
    %v2171 = vpop.f32.mrb[0].mxu0
    %2172 = vmatprep.mubr.f32.mxu0 0.0
    %2173 = vmatmul.mubr.f32.gmra.mrb[0].mxu0 %v2045
    %v2174 = vpop.f32.mrb[0].mxu0
    %v2175 = vadd.f32 0.0, %v2174
    %v2176 = vpop.f32.mrb[0].mxu0
    %2177 = vmatprep.mubr.f32.mxu0 0.0
    %2178 = vmatmul.mubr.f32.gmra.mrb[0].mxu0 %v2048
    %v2179 = vpop.f32.mrb[0].mxu0
    %v2180 = vadd.f32 0.0, %v2179
    %v2181 = vpop.f32.mrb[0].mxu0
    %2182 = vmatprep.mubr.f32.mxu0 0.0
    %2183 = vmatmul.mubr.f32.gmra.mrb[0].mxu0 %v2051
    %v2184 = vpop.f32.mrb[0].mxu0
    %v2185 = vadd.f32 0.0, %v2184
    %v2186 = vpop.f32.mrb[0].mxu0
    %2187 = vmatprep.mubr.f32.mxu0 0.0
    %2188 = vmatmul.mubr.f32.gmra.mrb[0].mxu0 %v2054
    %v2189 = vpop.f32.mrb[0].mxu0
    %v2190 = vadd.f32 0.0, %v2189
    %v2191 = vpop.f32.mrb[0].mxu0
    %2192 = vmatprep.mubr.f32.mxu0 0.0
    %2193 = vmatmul.mubr.f32.gmra.mrb[0].mxu0 %v2057
    %v2194 = vpop.f32.mrb[0].mxu0
    %v2195 = vadd.f32 0.0, %v2194
    %v2196 = vpop.f32.mrb[0].mxu0
    %2197 = vmatprep.mubr.f32.mxu0 0.0
    %2198 = vmatmul.mubr.f32.gmra.mrb[0].mxu0 %v2060
    %v2199 = vpop.f32.mrb[0].mxu0
    %v2200 = vadd.f32 0.0, %v2199
    %v2201 = vpop.f32.mrb[0].mxu0
    %2202 = vmatprep.mubr.f32.mxu0 0.0
    %2203 = vmatmul.mubr.f32.gmra.mrb[0].mxu0 %v2063
    %v2204 = vpop.f32.mrb[0].mxu0
    %v2205 = vadd.f32 0.0, %v2204
    %v2206 = vpop.f32.mrb[0].mxu0
    %2207 = vmatprep.mubr.f32.mxu0 0.0
    %2208 = vmatmul.mubr.f32.gmra.mrb[0].mxu0 %v2066
    %v2209 = vpop.f32.mrb[0].mxu0
    %v2210 = vadd.f32 0.0, %v2209
    %v2211 = vpop.f32.mrb[0].mxu0
    %2212 = vdwg.mxu0
    %v2214 = vsel %vm77, %v2004, 0
    %v2217 = vsel %vm77, %v2005, 0
    %v2220 = vsel %vm77, %v2006, 0
    %v2223 = vsel %vm77, %v2007, 0
    %v2226 = vsel %vm77, %v2008, 0
    %v2229 = vsel %vm77, %v2009, 0
    %v2232 = vsel %vm77, %v2010, 0
    %v2235 = vsel %vm77, %v2011, 0
    %v2238 = vsel %vm77, %v2012, 0
    %v2241 = vsel %vm77, %v2013, 0
    %v2244 = vsel %vm77, %v2014, 0
    %v2247 = vsel %vm77, %v2015, 0
    %v2250 = vsel %vm77, %v2016, 0
    %v2253 = vsel %vm77, %v2017, 0
    %v2256 = vsel %vm77, %v2018, 0
    %v2259 = vsel %vm77, %v2019, 0
    %2261 = vmatprep.subr.mxu0 0.0
    %2262 = vmatpush1.msra.mxu0 %v35
    %2263 = vmatprep.subr.mxu0 0.0
    %2264 = vmatpush1.msra.mxu0 %v36
    %2265 = vmatprep.subr.mxu0 0.0
    %2266 = vmatpush1.msra.mxu0 0.0
    %2267 = vmatprep.subr.mxu0 0.0
    %2268 = vmatpush1.msra.mxu0 0.0
    %2269 = vmatprep.subr.mxu0 0.0
    %2270 = vmatpush1.msra.mxu0 0.0
    %2271 = vmatprep.subr.mxu0 0.0
    %2272 = vmatpush1.msra.mxu0 0.0
    %2273 = vmatprep.subr.mxu0 0.0
    %2274 = vmatpush1.msra.mxu0 0.0
    %2275 = vmatprep.subr.mxu0 0.0
    %2276 = vmatpush1.msra.mxu0 0.0
    %2277 = vmatprep.subr.mxu0 0.0
    %2278 = vmatpush1.msra.mxu0 0.0
    %2279 = vmatprep.subr.mxu0 0.0
    %2280 = vmatpush1.msra.mxu0 0.0
    %2281 = vmatprep.subr.mxu0 0.0
    %2282 = vmatpush1.msra.mxu0 0.0
    %2283 = vmatprep.subr.mxu0 0.0
    %2284 = vmatpush1.msra.mxu0 0.0
    %2285 = vmatprep.subr.mxu0 0.0
    %2286 = vmatpush1.msra.mxu0 0.0
    %2287 = vmatprep.subr.mxu0 0.0
    %2288 = vmatpush1.msra.mxu0 0.0
    %2289 = vmatprep.subr.mxu0 0.0
    %2290 = vmatpush1.msra.mxu0 0.0
    %2291 = vmatprep.subr.mxu0 0.0
    %2292 = vmatpush1.msra.mxu0 0.0
    %2293 = vmatprep.subr.mxu0 0.0
    %2294 = vmatpush1.msra.mxu0 0.0
    %2295 = vmatprep.subr.mxu0 0.0
    %2296 = vmatpush1.msra.mxu0 0.0
    %2297 = vmatprep.subr.mxu0 0.0
    %2298 = vmatpush1.msra.mxu0 0.0
    %2299 = vmatprep.subr.mxu0 0.0
    %2300 = vmatpush1.msra.mxu0 0.0
    %2301 = vmatprep.subr.mxu0 0.0
    %2302 = vmatpush1.msra.mxu0 0.0
    %2303 = vmatprep.subr.mxu0 0.0
    %2304 = vmatpush1.msra.mxu0 0.0
    %2305 = vmatprep.subr.mxu0 0.0
    %2306 = vmatpush1.msra.mxu0 0.0
    %2307 = vmatprep.subr.mxu0 0.0
    %2308 = vmatpush1.msra.mxu0 0.0
    %2309 = vmatprep.subr.mxu0 0.0
    %2310 = vmatpush1.msra.mxu0 0.0
    %2311 = vmatprep.subr.mxu0 0.0
    %2312 = vmatpush1.msra.mxu0 0.0
    %2313 = vmatprep.subr.mxu0 0.0
    %2314 = vmatpush1.msra.mxu0 0.0
    %2315 = vmatprep.subr.mxu0 0.0
    %2316 = vmatpush1.msra.mxu0 0.0
    %2317 = vmatprep.subr.mxu0 0.0
    %2318 = vmatpush1.msra.mxu0 0.0
    %2319 = vmatprep.subr.mxu0 0.0
    %2320 = vmatpush1.msra.mxu0 0.0
    %2321 = vmatprep.subr.mxu0 0.0
    %2322 = vmatpush1.msra.mxu0 0.0
    %2323 = vmatprep.subr.mxu0 0.0
    %2324 = vmatpush1.msra.mxu0 0.0
    %2325 = vmatprep.mubr.f32.mxu0 0.0
    %2326 = vmatmul.mubr.f32.gmra.mrb[0].mxu0 %v2214
    %v2327 = vpop.f32.mrb[0].mxu0
    %v2328 = vadd.f32 0.0, %v2327
    %v2329 = vpop.f32.mrb[0].mxu0
    %2330 = vmatprep.mubr.f32.mxu0 0.0
    %2331 = vmatmul.mubr.f32.gmra.mrb[0].mxu0 %v2217
    %v2332 = vpop.f32.mrb[0].mxu0
    %v2333 = vadd.f32 0.0, %v2332
    %v2334 = vpop.f32.mrb[0].mxu0
    %2335 = vmatprep.mubr.f32.mxu0 0.0
    %2336 = vmatmul.mubr.f32.gmra.mrb[0].mxu0 %v2220
    %v2337 = vpop.f32.mrb[0].mxu0
    %v2338 = vadd.f32 0.0, %v2337
    %v2339 = vpop.f32.mrb[0].mxu0
    %2340 = vmatprep.mubr.f32.mxu0 0.0
    %2341 = vmatmul.mubr.f32.gmra.mrb[0].mxu0 %v2223
    %v2342 = vpop.f32.mrb[0].mxu0
    %v2343 = vadd.f32 0.0, %v2342
    %v2344 = vpop.f32.mrb[0].mxu0
    %2345 = vmatprep.mubr.f32.mxu0 0.0
    %2346 = vmatmul.mubr.f32.gmra.mrb[0].mxu0 %v2226
    %v2347 = vpop.f32.mrb[0].mxu0
    %v2348 = vadd.f32 0.0, %v2347
    %v2349 = vpop.f32.mrb[0].mxu0
    %2350 = vmatprep.mubr.f32.mxu0 0.0
    %2351 = vmatmul.mubr.f32.gmra.mrb[0].mxu0 %v2229
    %v2352 = vpop.f32.mrb[0].mxu0
    %v2353 = vadd.f32 0.0, %v2352
    %v2354 = vpop.f32.mrb[0].mxu0
    %2355 = vmatprep.mubr.f32.mxu0 0.0
    %2356 = vmatmul.mubr.f32.gmra.mrb[0].mxu0 %v2232
    %v2357 = vpop.f32.mrb[0].mxu0
    %v2358 = vadd.f32 0.0, %v2357
    %v2359 = vpop.f32.mrb[0].mxu0
    %2360 = vmatprep.mubr.f32.mxu0 0.0
    %2361 = vmatmul.mubr.f32.gmra.mrb[0].mxu0 %v2235
    %v2362 = vpop.f32.mrb[0].mxu0
    %v2363 = vadd.f32 0.0, %v2362
    %v2364 = vpop.f32.mrb[0].mxu0
    %2365 = vmatprep.mubr.f32.mxu0 0.0
    %2366 = vmatmul.mubr.f32.gmra.mrb[0].mxu0 %v2238
    %v2367 = vpop.f32.mrb[0].mxu0
    %v2368 = vadd.f32 0.0, %v2367
    %v2369 = vpop.f32.mrb[0].mxu0
    %2370 = vmatprep.mubr.f32.mxu0 0.0
    %2371 = vmatmul.mubr.f32.gmra.mrb[0].mxu0 %v2241
    %v2372 = vpop.f32.mrb[0].mxu0
    %v2373 = vadd.f32 0.0, %v2372
    %v2374 = vpop.f32.mrb[0].mxu0
    %2375 = vmatprep.mubr.f32.mxu0 0.0
    %2376 = vmatmul.mubr.f32.gmra.mrb[0].mxu0 %v2244
    %v2377 = vpop.f32.mrb[0].mxu0
    %v2378 = vadd.f32 0.0, %v2377
    %v2379 = vpop.f32.mrb[0].mxu0
    %2380 = vmatprep.mubr.f32.mxu0 0.0
    %2381 = vmatmul.mubr.f32.gmra.mrb[0].mxu0 %v2247
    %v2382 = vpop.f32.mrb[0].mxu0
    %v2383 = vadd.f32 0.0, %v2382
    %v2384 = vpop.f32.mrb[0].mxu0
    %2385 = vmatprep.mubr.f32.mxu0 0.0
    %2386 = vmatmul.mubr.f32.gmra.mrb[0].mxu0 %v2250
    %v2387 = vpop.f32.mrb[0].mxu0
    %v2388 = vadd.f32 0.0, %v2387
    %v2389 = vpop.f32.mrb[0].mxu0
    %2390 = vmatprep.mubr.f32.mxu0 0.0
    %2391 = vmatmul.mubr.f32.gmra.mrb[0].mxu0 %v2253
    %v2392 = vpop.f32.mrb[0].mxu0
    %v2393 = vadd.f32 0.0, %v2392
    %v2394 = vpop.f32.mrb[0].mxu0
    %2395 = vmatprep.mubr.f32.mxu0 0.0
    %2396 = vmatmul.mubr.f32.gmra.mrb[0].mxu0 %v2256
    %v2397 = vpop.f32.mrb[0].mxu0
    %v2398 = vadd.f32 0.0, %v2397
    %v2399 = vpop.f32.mrb[0].mxu0
    %2400 = vmatprep.mubr.f32.mxu0 0.0
    %2401 = vmatmul.mubr.f32.gmra.mrb[0].mxu0 %v2259
    %v2402 = vpop.f32.mrb[0].mxu0
    %v2403 = vadd.f32 0.0, %v2402
    %v2404 = vpop.f32.mrb[0].mxu0
    %2405 = vdwg.mxu0
    %v2406 = vsub.f32 %v2004, %v1956
    %v2407 = vsub.f32 %v2005, %v1957
    %v2408 = vsub.f32 %v2006, %v1958
    %v2409 = vsub.f32 %v2007, %v1959
    %v2410 = vsub.f32 %v2008, %v1960
    %v2411 = vsub.f32 %v2009, %v1961
    %v2412 = vsub.f32 %v2010, %v1962
    %v2413 = vsub.f32 %v2011, %v1963
    %v2414 = vsub.f32 %v2012, %v1964
    %v2415 = vsub.f32 %v2013, %v1965
    %v2416 = vsub.f32 %v2014, %v1966
    %v2417 = vsub.f32 %v2015, %v1967
    %v2418 = vsub.f32 %v2016, %v1968
    %v2419 = vsub.f32 %v2017, %v1969
    %v2420 = vsub.f32 %v2018, %v1970
    %v2421 = vsub.f32 %v2019, %v1971
    %v2422 = vadd.f32 %v2135, %v2328
    %v2423 = vadd.f32 %v2140, %v2333
    %v2424 = vadd.f32 %v2145, %v2338
    %v2425 = vadd.f32 %v2150, %v2343
    %v2426 = vadd.f32 %v2155, %v2348
    %v2427 = vadd.f32 %v2160, %v2353
    %v2428 = vadd.f32 %v2165, %v2358
    %v2429 = vadd.f32 %v2170, %v2363
    %v2430 = vadd.f32 %v2175, %v2368
    %v2431 = vadd.f32 %v2180, %v2373
    %v2432 = vadd.f32 %v2185, %v2378
    %v2433 = vadd.f32 %v2190, %v2383
    %v2434 = vadd.f32 %v2195, %v2388
    %v2435 = vadd.f32 %v2200, %v2393
    %v2436 = vadd.f32 %v2205, %v2398
    %v2437 = vadd.f32 %v2210, %v2403
    %v2439 = vsel %vm77, %v2406, 0
    %v2442 = vsel %vm77, %v2407, 0
    %v2445 = vsel %vm77, %v2408, 0
    %v2448 = vsel %vm77, %v2409, 0
    %v2451 = vsel %vm77, %v2410, 0
    %v2454 = vsel %vm77, %v2411, 0
    %v2457 = vsel %vm77, %v2412, 0
    %v2460 = vsel %vm77, %v2413, 0
    %v2463 = vsel %vm77, %v2414, 0
    %v2466 = vsel %vm77, %v2415, 0
    %v2469 = vsel %vm77, %v2416, 0
    %v2472 = vsel %vm77, %v2417, 0
    %v2475 = vsel %vm77, %v2418, 0
    %v2478 = vsel %vm77, %v2419, 0
    %v2481 = vsel %vm77, %v2420, 0
    %v2484 = vsel %vm77, %v2421, 0
    %2486 = vmatprep.subr.mxu0 0.0
    %2487 = vmatpush1.msra.mxu0 %v37
    %2488 = vmatprep.subr.mxu0 0.0
    %2489 = vmatpush1.msra.mxu0 %v38
    %2490 = vmatprep.subr.mxu0 0.0
    %2491 = vmatpush1.msra.mxu0 0.0
    %2492 = vmatprep.subr.mxu0 0.0
    %2493 = vmatpush1.msra.mxu0 0.0
    %2494 = vmatprep.subr.mxu0 0.0
    %2495 = vmatpush1.msra.mxu0 0.0
    %2496 = vmatprep.subr.mxu0 0.0
    %2497 = vmatpush1.msra.mxu0 0.0
    %2498 = vmatprep.subr.mxu0 0.0
    %2499 = vmatpush1.msra.mxu0 0.0
    %2500 = vmatprep.subr.mxu0 0.0
    %2501 = vmatpush1.msra.mxu0 0.0
    %2502 = vmatprep.subr.mxu0 0.0
    %2503 = vmatpush1.msra.mxu0 0.0
    %2504 = vmatprep.subr.mxu0 0.0
    %2505 = vmatpush1.msra.mxu0 0.0
    %2506 = vmatprep.subr.mxu0 0.0
    %2507 = vmatpush1.msra.mxu0 0.0
    %2508 = vmatprep.subr.mxu0 0.0
    %2509 = vmatpush1.msra.mxu0 0.0
    %2510 = vmatprep.subr.mxu0 0.0
    %2511 = vmatpush1.msra.mxu0 0.0
    %2512 = vmatprep.subr.mxu0 0.0
    %2513 = vmatpush1.msra.mxu0 0.0
    %2514 = vmatprep.subr.mxu0 0.0
    %2515 = vmatpush1.msra.mxu0 0.0
    %2516 = vmatprep.subr.mxu0 0.0
    %2517 = vmatpush1.msra.mxu0 0.0
    %2518 = vmatprep.subr.mxu0 0.0
    %2519 = vmatpush1.msra.mxu0 0.0
    %2520 = vmatprep.subr.mxu0 0.0
    %2521 = vmatpush1.msra.mxu0 0.0
    %2522 = vmatprep.subr.mxu0 0.0
    %2523 = vmatpush1.msra.mxu0 0.0
    %2524 = vmatprep.subr.mxu0 0.0
    %2525 = vmatpush1.msra.mxu0 0.0
    %2526 = vmatprep.subr.mxu0 0.0
    %2527 = vmatpush1.msra.mxu0 0.0
    %2528 = vmatprep.subr.mxu0 0.0
    %2529 = vmatpush1.msra.mxu0 0.0
    %2530 = vmatprep.subr.mxu0 0.0
    %2531 = vmatpush1.msra.mxu0 0.0
    %2532 = vmatprep.subr.mxu0 0.0
    %2533 = vmatpush1.msra.mxu0 0.0
    %2534 = vmatprep.subr.mxu0 0.0
    %2535 = vmatpush1.msra.mxu0 0.0
    %2536 = vmatprep.subr.mxu0 0.0
    %2537 = vmatpush1.msra.mxu0 0.0
    %2538 = vmatprep.subr.mxu0 0.0
    %2539 = vmatpush1.msra.mxu0 0.0
    %2540 = vmatprep.subr.mxu0 0.0
    %2541 = vmatpush1.msra.mxu0 0.0
    %2542 = vmatprep.subr.mxu0 0.0
    %2543 = vmatpush1.msra.mxu0 0.0
    %2544 = vmatprep.subr.mxu0 0.0
    %2545 = vmatpush1.msra.mxu0 0.0
    %2546 = vmatprep.subr.mxu0 0.0
    %2547 = vmatpush1.msra.mxu0 0.0
    %2548 = vmatprep.subr.mxu0 0.0
    %2549 = vmatpush1.msra.mxu0 0.0
    %2550 = vmatprep.mubr.f32.mxu0 0.0
    %2551 = vmatmul.mubr.f32.gmra.mrb[0].mxu0 %v2439
    %v2552 = vpop.f32.mrb[0].mxu0
    %v2553 = vadd.f32 %v2135, %v2552
    %v2554 = vpop.f32.mrb[0].mxu0
    %2555 = vmatprep.mubr.f32.mxu0 0.0
    %2556 = vmatmul.mubr.f32.gmra.mrb[0].mxu0 %v2442
    %v2557 = vpop.f32.mrb[0].mxu0
    %v2558 = vadd.f32 %v2140, %v2557
    %v2559 = vpop.f32.mrb[0].mxu0
    %2560 = vmatprep.mubr.f32.mxu0 0.0
    %2561 = vmatmul.mubr.f32.gmra.mrb[0].mxu0 %v2445
    %v2562 = vpop.f32.mrb[0].mxu0
    %v2563 = vadd.f32 %v2145, %v2562
    %v2564 = vpop.f32.mrb[0].mxu0
    %2565 = vmatprep.mubr.f32.mxu0 0.0
    %2566 = vmatmul.mubr.f32.gmra.mrb[0].mxu0 %v2448
    %v2567 = vpop.f32.mrb[0].mxu0
    %v2568 = vadd.f32 %v2150, %v2567
    %v2569 = vpop.f32.mrb[0].mxu0
    %2570 = vmatprep.mubr.f32.mxu0 0.0
    %2571 = vmatmul.mubr.f32.gmra.mrb[0].mxu0 %v2451
    %v2572 = vpop.f32.mrb[0].mxu0
    %v2573 = vadd.f32 %v2155, %v2572
    %v2574 = vpop.f32.mrb[0].mxu0
    %2575 = vmatprep.mubr.f32.mxu0 0.0
    %2576 = vmatmul.mubr.f32.gmra.mrb[0].mxu0 %v2454
    %v2577 = vpop.f32.mrb[0].mxu0
    %v2578 = vadd.f32 %v2160, %v2577
    %v2579 = vpop.f32.mrb[0].mxu0
    %2580 = vmatprep.mubr.f32.mxu0 0.0
    %2581 = vmatmul.mubr.f32.gmra.mrb[0].mxu0 %v2457
    %v2582 = vpop.f32.mrb[0].mxu0
    %v2583 = vadd.f32 %v2165, %v2582
    %v2584 = vpop.f32.mrb[0].mxu0
    %2585 = vmatprep.mubr.f32.mxu0 0.0
    %2586 = vmatmul.mubr.f32.gmra.mrb[0].mxu0 %v2460
    %v2587 = vpop.f32.mrb[0].mxu0
    %v2588 = vadd.f32 %v2170, %v2587
    %v2589 = vpop.f32.mrb[0].mxu0
    %2590 = vmatprep.mubr.f32.mxu0 0.0
    %2591 = vmatmul.mubr.f32.gmra.mrb[0].mxu0 %v2463
    %v2592 = vpop.f32.mrb[0].mxu0
    %v2593 = vadd.f32 %v2175, %v2592
    %v2594 = vpop.f32.mrb[0].mxu0
    %2595 = vmatprep.mubr.f32.mxu0 0.0
    %2596 = vmatmul.mubr.f32.gmra.mrb[0].mxu0 %v2466
    %v2597 = vpop.f32.mrb[0].mxu0
    %v2598 = vadd.f32 %v2180, %v2597
    %v2599 = vpop.f32.mrb[0].mxu0
    %2600 = vmatprep.mubr.f32.mxu0 0.0
    %2601 = vmatmul.mubr.f32.gmra.mrb[0].mxu0 %v2469
    %v2602 = vpop.f32.mrb[0].mxu0
    %v2603 = vadd.f32 %v2185, %v2602
    %v2604 = vpop.f32.mrb[0].mxu0
    %2605 = vmatprep.mubr.f32.mxu0 0.0
    %2606 = vmatmul.mubr.f32.gmra.mrb[0].mxu0 %v2472
    %v2607 = vpop.f32.mrb[0].mxu0
    %v2608 = vadd.f32 %v2190, %v2607
    %v2609 = vpop.f32.mrb[0].mxu0
    %2610 = vmatprep.mubr.f32.mxu0 0.0
    %2611 = vmatmul.mubr.f32.gmra.mrb[0].mxu0 %v2475
    %v2612 = vpop.f32.mrb[0].mxu0
    %v2613 = vadd.f32 %v2195, %v2612
    %v2614 = vpop.f32.mrb[0].mxu0
    %2615 = vmatprep.mubr.f32.mxu0 0.0
    %2616 = vmatmul.mubr.f32.gmra.mrb[0].mxu0 %v2478
    %v2617 = vpop.f32.mrb[0].mxu0
    %v2618 = vadd.f32 %v2200, %v2617
    %v2619 = vpop.f32.mrb[0].mxu0
    %2620 = vmatprep.mubr.f32.mxu0 0.0
    %2621 = vmatmul.mubr.f32.gmra.mrb[0].mxu0 %v2481
    %v2622 = vpop.f32.mrb[0].mxu0
    %v2623 = vadd.f32 %v2205, %v2622
    %v2624 = vpop.f32.mrb[0].mxu0
    %2625 = vmatprep.mubr.f32.mxu0 0.0
    %2626 = vmatmul.mubr.f32.gmra.mrb[0].mxu0 %v2484
    %v2627 = vpop.f32.mrb[0].mxu0
    %v2628 = vadd.f32 %v2210, %v2627
    %v2629 = vpop.f32.mrb[0].mxu0
    %2630 = vdwg.mxu0
    %v2631 = vsub.f32 %v2553, %v2328
    %v2632 = vsub.f32 %v2558, %v2333
    %v2633 = vsub.f32 %v2563, %v2338
    %v2634 = vsub.f32 %v2568, %v2343
    %v2635 = vsub.f32 %v2573, %v2348
    %v2636 = vsub.f32 %v2578, %v2353
    %v2637 = vsub.f32 %v2583, %v2358
    %v2638 = vsub.f32 %v2588, %v2363
    %v2639 = vsub.f32 %v2593, %v2368
    %v2640 = vsub.f32 %v2598, %v2373
    %v2641 = vsub.f32 %v2603, %v2378
    %v2642 = vsub.f32 %v2608, %v2383
    %v2643 = vsub.f32 %v2613, %v2388
    %v2644 = vsub.f32 %v2618, %v2393
    %v2645 = vsub.f32 %v2623, %v2398
    %v2646 = vsub.f32 %v2628, %v2403
    %2647 = vxpose.xlu0.b32.start [1/16] %v2422, 128
    %2648 = vxpose.xlu0.b32.cont [2/16] %v2423, 128
    %2649 = vxpose.xlu0.b32.cont [3/16] 0.0, 128
    %2650 = vxpose.xlu0.b32.cont [4/16] 0.0, 128
    %2651 = vxpose.xlu0.b32.cont [5/16] 0.0, 128
    %2652 = vxpose.xlu0.b32.cont [6/16] 0.0, 128
    %2653 = vxpose.xlu0.b32.cont [7/16] 0.0, 128
    %2654 = vxpose.xlu0.b32.cont [8/16] 0.0, 128
    %2655 = vxpose.xlu0.b32.cont [9/16] 0.0, 128
    %2656 = vxpose.xlu0.b32.cont [10/16] 0.0, 128
    %2657 = vxpose.xlu0.b32.cont [11/16] 0.0, 128
    %2658 = vxpose.xlu0.b32.cont [12/16] 0.0, 128
    %2659 = vxpose.xlu0.b32.cont [13/16] 0.0, 128
    %2660 = vxpose.xlu0.b32.cont [14/16] 0.0, 128
    %2661 = vxpose.xlu0.b32.cont [15/16] 0.0, 128
    %2662 = vxpose.xlu0.b32.end [16/16] 0.0, 128
    %v2663 = vpop.trf.xlu0
    %v2664 = vpop.trf.xlu0
    %v2665 = vpop.trf.xlu0
    %v2666 = vpop.trf.xlu0
    %v2667 = vpop.trf.xlu0
    %v2668 = vpop.trf.xlu0
    %v2669 = vpop.trf.xlu0
    %v2670 = vpop.trf.xlu0
    %v2671 = vpop.trf.xlu0
    %v2672 = vpop.trf.xlu0
    %v2673 = vpop.trf.xlu0
    %v2674 = vpop.trf.xlu0
    %v2675 = vpop.trf.xlu0
    %v2676 = vpop.trf.xlu0
    %v2677 = vpop.trf.xlu0
    %v2678 = vpop.trf.xlu0
    %2679 = vxpose.xlu0.b32.start [1/16] %v2424, 128
    %2680 = vxpose.xlu0.b32.cont [2/16] %v2425, 128
    %2681 = vxpose.xlu0.b32.cont [3/16] 0.0, 128
    %2682 = vxpose.xlu0.b32.cont [4/16] 0.0, 128
    %2683 = vxpose.xlu0.b32.cont [5/16] 0.0, 128
    %2684 = vxpose.xlu0.b32.cont [6/16] 0.0, 128
    %2685 = vxpose.xlu0.b32.cont [7/16] 0.0, 128
    %2686 = vxpose.xlu0.b32.cont [8/16] 0.0, 128
    %2687 = vxpose.xlu0.b32.cont [9/16] 0.0, 128
    %2688 = vxpose.xlu0.b32.cont [10/16] 0.0, 128
    %2689 = vxpose.xlu0.b32.cont [11/16] 0.0, 128
    %2690 = vxpose.xlu0.b32.cont [12/16] 0.0, 128
    %2691 = vxpose.xlu0.b32.cont [13/16] 0.0, 128
    %2692 = vxpose.xlu0.b32.cont [14/16] 0.0, 128
    %2693 = vxpose.xlu0.b32.cont [15/16] 0.0, 128
    %2694 = vxpose.xlu0.b32.end [16/16] 0.0, 128
    %v2695 = vpop.trf.xlu0
    %v2696 = vpop.trf.xlu0
    %v2697 = vpop.trf.xlu0
    %v2698 = vpop.trf.xlu0
    %v2699 = vpop.trf.xlu0
    %v2700 = vpop.trf.xlu0
    %v2701 = vpop.trf.xlu0
    %v2702 = vpop.trf.xlu0
    %v2703 = vpop.trf.xlu0
    %v2704 = vpop.trf.xlu0
    %v2705 = vpop.trf.xlu0
    %v2706 = vpop.trf.xlu0
    %v2707 = vpop.trf.xlu0
    %v2708 = vpop.trf.xlu0
    %v2709 = vpop.trf.xlu0
    %v2710 = vpop.trf.xlu0
    %2711 = vxpose.xlu0.b32.start [1/16] %v2426, 128
    %2712 = vxpose.xlu0.b32.cont [2/16] %v2427, 128
    %2713 = vxpose.xlu0.b32.cont [3/16] 0.0, 128
    %2714 = vxpose.xlu0.b32.cont [4/16] 0.0, 128
    %2715 = vxpose.xlu0.b32.cont [5/16] 0.0, 128
    %2716 = vxpose.xlu0.b32.cont [6/16] 0.0, 128
    %2717 = vxpose.xlu0.b32.cont [7/16] 0.0, 128
    %2718 = vxpose.xlu0.b32.cont [8/16] 0.0, 128
    %2719 = vxpose.xlu0.b32.cont [9/16] 0.0, 128
    %2720 = vxpose.xlu0.b32.cont [10/16] 0.0, 128
    %2721 = vxpose.xlu0.b32.cont [11/16] 0.0, 128
    %2722 = vxpose.xlu0.b32.cont [12/16] 0.0, 128
    %2723 = vxpose.xlu0.b32.cont [13/16] 0.0, 128
    %2724 = vxpose.xlu0.b32.cont [14/16] 0.0, 128
    %2725 = vxpose.xlu0.b32.cont [15/16] 0.0, 128
    %2726 = vxpose.xlu0.b32.end [16/16] 0.0, 128
    %v2727 = vpop.trf.xlu0
    %v2728 = vpop.trf.xlu0
    %v2729 = vpop.trf.xlu0
    %v2730 = vpop.trf.xlu0
    %v2731 = vpop.trf.xlu0
    %v2732 = vpop.trf.xlu0
    %v2733 = vpop.trf.xlu0
    %v2734 = vpop.trf.xlu0
    %v2735 = vpop.trf.xlu0
    %v2736 = vpop.trf.xlu0
    %v2737 = vpop.trf.xlu0
    %v2738 = vpop.trf.xlu0
    %v2739 = vpop.trf.xlu0
    %v2740 = vpop.trf.xlu0
    %v2741 = vpop.trf.xlu0
    %v2742 = vpop.trf.xlu0
    %2743 = vxpose.xlu0.b32.start [1/16] %v2428, 128
    %2744 = vxpose.xlu0.b32.cont [2/16] %v2429, 128
    %2745 = vxpose.xlu0.b32.cont [3/16] 0.0, 128
    %2746 = vxpose.xlu0.b32.cont [4/16] 0.0, 128
    %2747 = vxpose.xlu0.b32.cont [5/16] 0.0, 128
    %2748 = vxpose.xlu0.b32.cont [6/16] 0.0, 128
    %2749 = vxpose.xlu0.b32.cont [7/16] 0.0, 128
    %2750 = vxpose.xlu0.b32.cont [8/16] 0.0, 128
    %2751 = vxpose.xlu0.b32.cont [9/16] 0.0, 128
    %2752 = vxpose.xlu0.b32.cont [10/16] 0.0, 128
    %2753 = vxpose.xlu0.b32.cont [11/16] 0.0, 128
    %2754 = vxpose.xlu0.b32.cont [12/16] 0.0, 128
    %2755 = vxpose.xlu0.b32.cont [13/16] 0.0, 128
    %2756 = vxpose.xlu0.b32.cont [14/16] 0.0, 128
    %2757 = vxpose.xlu0.b32.cont [15/16] 0.0, 128
    %2758 = vxpose.xlu0.b32.end [16/16] 0.0, 128
    %v2759 = vpop.trf.xlu0
    %v2760 = vpop.trf.xlu0
    %v2761 = vpop.trf.xlu0
    %v2762 = vpop.trf.xlu0
    %v2763 = vpop.trf.xlu0
    %v2764 = vpop.trf.xlu0
    %v2765 = vpop.trf.xlu0
    %v2766 = vpop.trf.xlu0
    %v2767 = vpop.trf.xlu0
    %v2768 = vpop.trf.xlu0
    %v2769 = vpop.trf.xlu0
    %v2770 = vpop.trf.xlu0
    %v2771 = vpop.trf.xlu0
    %v2772 = vpop.trf.xlu0
    %v2773 = vpop.trf.xlu0
    %v2774 = vpop.trf.xlu0
    %2775 = vxpose.xlu0.b32.start [1/16] %v2430, 128
    %2776 = vxpose.xlu0.b32.cont [2/16] %v2431, 128
    %2777 = vxpose.xlu0.b32.cont [3/16] 0.0, 128
    %2778 = vxpose.xlu0.b32.cont [4/16] 0.0, 128
    %2779 = vxpose.xlu0.b32.cont [5/16] 0.0, 128
    %2780 = vxpose.xlu0.b32.cont [6/16] 0.0, 128
    %2781 = vxpose.xlu0.b32.cont [7/16] 0.0, 128
    %2782 = vxpose.xlu0.b32.cont [8/16] 0.0, 128
    %2783 = vxpose.xlu0.b32.cont [9/16] 0.0, 128
    %2784 = vxpose.xlu0.b32.cont [10/16] 0.0, 128
    %2785 = vxpose.xlu0.b32.cont [11/16] 0.0, 128
    %2786 = vxpose.xlu0.b32.cont [12/16] 0.0, 128
    %2787 = vxpose.xlu0.b32.cont [13/16] 0.0, 128
    %2788 = vxpose.xlu0.b32.cont [14/16] 0.0, 128
    %2789 = vxpose.xlu0.b32.cont [15/16] 0.0, 128
    %2790 = vxpose.xlu0.b32.end [16/16] 0.0, 128
    %v2791 = vpop.trf.xlu0
    %v2792 = vpop.trf.xlu0
    %v2793 = vpop.trf.xlu0
    %v2794 = vpop.trf.xlu0
    %v2795 = vpop.trf.xlu0
    %v2796 = vpop.trf.xlu0
    %v2797 = vpop.trf.xlu0
    %v2798 = vpop.trf.xlu0
    %v2799 = vpop.trf.xlu0
    %v2800 = vpop.trf.xlu0
    %v2801 = vpop.trf.xlu0
    %v2802 = vpop.trf.xlu0
    %v2803 = vpop.trf.xlu0
    %v2804 = vpop.trf.xlu0
    %v2805 = vpop.trf.xlu0
    %v2806 = vpop.trf.xlu0
    %2807 = vxpose.xlu0.b32.start [1/16] %v2432, 128
    %2808 = vxpose.xlu0.b32.cont [2/16] %v2433, 128
    %2809 = vxpose.xlu0.b32.cont [3/16] 0.0, 128
    %2810 = vxpose.xlu0.b32.cont [4/16] 0.0, 128
    %2811 = vxpose.xlu0.b32.cont [5/16] 0.0, 128
    %2812 = vxpose.xlu0.b32.cont [6/16] 0.0, 128
    %2813 = vxpose.xlu0.b32.cont [7/16] 0.0, 128
    %2814 = vxpose.xlu0.b32.cont [8/16] 0.0, 128
    %2815 = vxpose.xlu0.b32.cont [9/16] 0.0, 128
    %2816 = vxpose.xlu0.b32.cont [10/16] 0.0, 128
    %2817 = vxpose.xlu0.b32.cont [11/16] 0.0, 128
    %2818 = vxpose.xlu0.b32.cont [12/16] 0.0, 128
    %2819 = vxpose.xlu0.b32.cont [13/16] 0.0, 128
    %2820 = vxpose.xlu0.b32.cont [14/16] 0.0, 128
    %2821 = vxpose.xlu0.b32.cont [15/16] 0.0, 128
    %2822 = vxpose.xlu0.b32.end [16/16] 0.0, 128
    %v2823 = vpop.trf.xlu0
    %v2824 = vpop.trf.xlu0
    %v2825 = vpop.trf.xlu0
    %v2826 = vpop.trf.xlu0
    %v2827 = vpop.trf.xlu0
    %v2828 = vpop.trf.xlu0
    %v2829 = vpop.trf.xlu0
    %v2830 = vpop.trf.xlu0
    %v2831 = vpop.trf.xlu0
    %v2832 = vpop.trf.xlu0
    %v2833 = vpop.trf.xlu0
    %v2834 = vpop.trf.xlu0
    %v2835 = vpop.trf.xlu0
    %v2836 = vpop.trf.xlu0
    %v2837 = vpop.trf.xlu0
    %v2838 = vpop.trf.xlu0
    %2839 = vxpose.xlu0.b32.start [1/16] %v2434, 128
    %2840 = vxpose.xlu0.b32.cont [2/16] %v2435, 128
    %2841 = vxpose.xlu0.b32.cont [3/16] 0.0, 128
    %2842 = vxpose.xlu0.b32.cont [4/16] 0.0, 128
    %2843 = vxpose.xlu0.b32.cont [5/16] 0.0, 128
    %2844 = vxpose.xlu0.b32.cont [6/16] 0.0, 128
    %2845 = vxpose.xlu0.b32.cont [7/16] 0.0, 128
    %2846 = vxpose.xlu0.b32.cont [8/16] 0.0, 128
    %2847 = vxpose.xlu0.b32.cont [9/16] 0.0, 128
    %2848 = vxpose.xlu0.b32.cont [10/16] 0.0, 128
    %2849 = vxpose.xlu0.b32.cont [11/16] 0.0, 128
    %2850 = vxpose.xlu0.b32.cont [12/16] 0.0, 128
    %2851 = vxpose.xlu0.b32.cont [13/16] 0.0, 128
    %2852 = vxpose.xlu0.b32.cont [14/16] 0.0, 128
    %2853 = vxpose.xlu0.b32.cont [15/16] 0.0, 128
    %2854 = vxpose.xlu0.b32.end [16/16] 0.0, 128
    %v2855 = vpop.trf.xlu0
    %v2856 = vpop.trf.xlu0
    %v2857 = vpop.trf.xlu0
    %v2858 = vpop.trf.xlu0
    %v2859 = vpop.trf.xlu0
    %v2860 = vpop.trf.xlu0
    %v2861 = vpop.trf.xlu0
    %v2862 = vpop.trf.xlu0
    %v2863 = vpop.trf.xlu0
    %v2864 = vpop.trf.xlu0
    %v2865 = vpop.trf.xlu0
    %v2866 = vpop.trf.xlu0
    %v2867 = vpop.trf.xlu0
    %v2868 = vpop.trf.xlu0
    %v2869 = vpop.trf.xlu0
    %v2870 = vpop.trf.xlu0
    %2871 = vxpose.xlu0.b32.start [1/16] %v2436, 128
    %2872 = vxpose.xlu0.b32.cont [2/16] %v2437, 128
    %2873 = vxpose.xlu0.b32.cont [3/16] 0.0, 128
    %2874 = vxpose.xlu0.b32.cont [4/16] 0.0, 128
    %2875 = vxpose.xlu0.b32.cont [5/16] 0.0, 128
    %2876 = vxpose.xlu0.b32.cont [6/16] 0.0, 128
    %2877 = vxpose.xlu0.b32.cont [7/16] 0.0, 128
    %2878 = vxpose.xlu0.b32.cont [8/16] 0.0, 128
    %2879 = vxpose.xlu0.b32.cont [9/16] 0.0, 128
    %2880 = vxpose.xlu0.b32.cont [10/16] 0.0, 128
    %2881 = vxpose.xlu0.b32.cont [11/16] 0.0, 128
    %2882 = vxpose.xlu0.b32.cont [12/16] 0.0, 128
    %2883 = vxpose.xlu0.b32.cont [13/16] 0.0, 128
    %2884 = vxpose.xlu0.b32.cont [14/16] 0.0, 128
    %2885 = vxpose.xlu0.b32.cont [15/16] 0.0, 128
    %2886 = vxpose.xlu0.b32.end [16/16] 0.0, 128
    %v2887 = vpop.trf.xlu0
    %v2888 = vpop.trf.xlu0
    %v2889 = vpop.trf.xlu0
    %v2890 = vpop.trf.xlu0
    %v2891 = vpop.trf.xlu0
    %v2892 = vpop.trf.xlu0
    %v2893 = vpop.trf.xlu0
    %v2894 = vpop.trf.xlu0
    %v2895 = vpop.trf.xlu0
    %v2896 = vpop.trf.xlu0
    %v2897 = vpop.trf.xlu0
    %v2898 = vpop.trf.xlu0
    %v2899 = vpop.trf.xlu0
    %v2900 = vpop.trf.xlu0
    %v2901 = vpop.trf.xlu0
    %v2902 = vpop.trf.xlu0
    %2903 = vxpose.xlu0.b32.start [1/16] %v2631, 128
    %2904 = vxpose.xlu0.b32.cont [2/16] %v2632, 128
    %2905 = vxpose.xlu0.b32.cont [3/16] 0.0, 128
    %2906 = vxpose.xlu0.b32.cont [4/16] 0.0, 128
    %2907 = vxpose.xlu0.b32.cont [5/16] 0.0, 128
    %2908 = vxpose.xlu0.b32.cont [6/16] 0.0, 128
    %2909 = vxpose.xlu0.b32.cont [7/16] 0.0, 128
    %2910 = vxpose.xlu0.b32.cont [8/16] 0.0, 128
    %2911 = vxpose.xlu0.b32.cont [9/16] 0.0, 128
    %2912 = vxpose.xlu0.b32.cont [10/16] 0.0, 128
    %2913 = vxpose.xlu0.b32.cont [11/16] 0.0, 128
    %2914 = vxpose.xlu0.b32.cont [12/16] 0.0, 128
    %2915 = vxpose.xlu0.b32.cont [13/16] 0.0, 128
    %2916 = vxpose.xlu0.b32.cont [14/16] 0.0, 128
    %2917 = vxpose.xlu0.b32.cont [15/16] 0.0, 128
    %2918 = vxpose.xlu0.b32.end [16/16] 0.0, 128
    %v2919 = vpop.trf.xlu0
    %v2920 = vpop.trf.xlu0
    %v2921 = vpop.trf.xlu0
    %v2922 = vpop.trf.xlu0
    %v2923 = vpop.trf.xlu0
    %v2924 = vpop.trf.xlu0
    %v2925 = vpop.trf.xlu0
    %v2926 = vpop.trf.xlu0
    %v2927 = vpop.trf.xlu0
    %v2928 = vpop.trf.xlu0
    %v2929 = vpop.trf.xlu0
    %v2930 = vpop.trf.xlu0
    %v2931 = vpop.trf.xlu0
    %v2932 = vpop.trf.xlu0
    %v2933 = vpop.trf.xlu0
    %v2934 = vpop.trf.xlu0
    %2935 = vxpose.xlu0.b32.start [1/16] %v2633, 128
    %2936 = vxpose.xlu0.b32.cont [2/16] %v2634, 128
    %2937 = vxpose.xlu0.b32.cont [3/16] 0.0, 128
    %2938 = vxpose.xlu0.b32.cont [4/16] 0.0, 128
    %2939 = vxpose.xlu0.b32.cont [5/16] 0.0, 128
    %2940 = vxpose.xlu0.b32.cont [6/16] 0.0, 128
    %2941 = vxpose.xlu0.b32.cont [7/16] 0.0, 128
    %2942 = vxpose.xlu0.b32.cont [8/16] 0.0, 128
    %2943 = vxpose.xlu0.b32.cont [9/16] 0.0, 128
    %2944 = vxpose.xlu0.b32.cont [10/16] 0.0, 128
    %2945 = vxpose.xlu0.b32.cont [11/16] 0.0, 128
    %2946 = vxpose.xlu0.b32.cont [12/16] 0.0, 128
    %2947 = vxpose.xlu0.b32.cont [13/16] 0.0, 128
    %2948 = vxpose.xlu0.b32.cont [14/16] 0.0, 128
    %2949 = vxpose.xlu0.b32.cont [15/16] 0.0, 128
    %2950 = vxpose.xlu0.b32.end [16/16] 0.0, 128
    %v2951 = vpop.trf.xlu0
    %v2952 = vpop.trf.xlu0
    %v2953 = vpop.trf.xlu0
    %v2954 = vpop.trf.xlu0
    %v2955 = vpop.trf.xlu0
    %v2956 = vpop.trf.xlu0
    %v2957 = vpop.trf.xlu0
    %v2958 = vpop.trf.xlu0
    %v2959 = vpop.trf.xlu0
    %v2960 = vpop.trf.xlu0
    %v2961 = vpop.trf.xlu0
    %v2962 = vpop.trf.xlu0
    %v2963 = vpop.trf.xlu0
    %v2964 = vpop.trf.xlu0
    %v2965 = vpop.trf.xlu0
    %v2966 = vpop.trf.xlu0
    %2967 = vxpose.xlu0.b32.start [1/16] %v2635, 128
    %2968 = vxpose.xlu0.b32.cont [2/16] %v2636, 128
    %2969 = vxpose.xlu0.b32.cont [3/16] 0.0, 128
    %2970 = vxpose.xlu0.b32.cont [4/16] 0.0, 128
    %2971 = vxpose.xlu0.b32.cont [5/16] 0.0, 128
    %2972 = vxpose.xlu0.b32.cont [6/16] 0.0, 128
    %2973 = vxpose.xlu0.b32.cont [7/16] 0.0, 128
    %2974 = vxpose.xlu0.b32.cont [8/16] 0.0, 128
    %2975 = vxpose.xlu0.b32.cont [9/16] 0.0, 128
    %2976 = vxpose.xlu0.b32.cont [10/16] 0.0, 128
    %2977 = vxpose.xlu0.b32.cont [11/16] 0.0, 128
    %2978 = vxpose.xlu0.b32.cont [12/16] 0.0, 128
    %2979 = vxpose.xlu0.b32.cont [13/16] 0.0, 128
    %2980 = vxpose.xlu0.b32.cont [14/16] 0.0, 128
    %2981 = vxpose.xlu0.b32.cont [15/16] 0.0, 128
    %2982 = vxpose.xlu0.b32.end [16/16] 0.0, 128
    %v2983 = vpop.trf.xlu0
    %v2984 = vpop.trf.xlu0
    %v2985 = vpop.trf.xlu0
    %v2986 = vpop.trf.xlu0
    %v2987 = vpop.trf.xlu0
    %v2988 = vpop.trf.xlu0
    %v2989 = vpop.trf.xlu0
    %v2990 = vpop.trf.xlu0
    %v2991 = vpop.trf.xlu0
    %v2992 = vpop.trf.xlu0
    %v2993 = vpop.trf.xlu0
    %v2994 = vpop.trf.xlu0
    %v2995 = vpop.trf.xlu0
    %v2996 = vpop.trf.xlu0
    %v2997 = vpop.trf.xlu0
    %v2998 = vpop.trf.xlu0
    %2999 = vxpose.xlu0.b32.start [1/16] %v2637, 128
    %3000 = vxpose.xlu0.b32.cont [2/16] %v2638, 128
    %3001 = vxpose.xlu0.b32.cont [3/16] 0.0, 128
    %3002 = vxpose.xlu0.b32.cont [4/16] 0.0, 128
    %3003 = vxpose.xlu0.b32.cont [5/16] 0.0, 128
    %3004 = vxpose.xlu0.b32.cont [6/16] 0.0, 128
    %3005 = vxpose.xlu0.b32.cont [7/16] 0.0, 128
    %3006 = vxpose.xlu0.b32.cont [8/16] 0.0, 128
    %3007 = vxpose.xlu0.b32.cont [9/16] 0.0, 128
    %3008 = vxpose.xlu0.b32.cont [10/16] 0.0, 128
    %3009 = vxpose.xlu0.b32.cont [11/16] 0.0, 128
    %3010 = vxpose.xlu0.b32.cont [12/16] 0.0, 128
    %3011 = vxpose.xlu0.b32.cont [13/16] 0.0, 128
    %3012 = vxpose.xlu0.b32.cont [14/16] 0.0, 128
    %3013 = vxpose.xlu0.b32.cont [15/16] 0.0, 128
    %3014 = vxpose.xlu0.b32.end [16/16] 0.0, 128
    %v3015 = vpop.trf.xlu0
    %v3016 = vpop.trf.xlu0
    %v3017 = vpop.trf.xlu0
    %v3018 = vpop.trf.xlu0
    %v3019 = vpop.trf.xlu0
    %v3020 = vpop.trf.xlu0
    %v3021 = vpop.trf.xlu0
    %v3022 = vpop.trf.xlu0
    %v3023 = vpop.trf.xlu0
    %v3024 = vpop.trf.xlu0
    %v3025 = vpop.trf.xlu0
    %v3026 = vpop.trf.xlu0
    %v3027 = vpop.trf.xlu0
    %v3028 = vpop.trf.xlu0
    %v3029 = vpop.trf.xlu0
    %v3030 = vpop.trf.xlu0
    %3031 = vxpose.xlu0.b32.start [1/16] %v2639, 128
    %3032 = vxpose.xlu0.b32.cont [2/16] %v2640, 128
    %3033 = vxpose.xlu0.b32.cont [3/16] 0.0, 128
    %3034 = vxpose.xlu0.b32.cont [4/16] 0.0, 128
    %3035 = vxpose.xlu0.b32.cont [5/16] 0.0, 128
    %3036 = vxpose.xlu0.b32.cont [6/16] 0.0, 128
    %3037 = vxpose.xlu0.b32.cont [7/16] 0.0, 128
    %3038 = vxpose.xlu0.b32.cont [8/16] 0.0, 128
    %3039 = vxpose.xlu0.b32.cont [9/16] 0.0, 128
    %3040 = vxpose.xlu0.b32.cont [10/16] 0.0, 128
    %3041 = vxpose.xlu0.b32.cont [11/16] 0.0, 128
    %3042 = vxpose.xlu0.b32.cont [12/16] 0.0, 128
    %3043 = vxpose.xlu0.b32.cont [13/16] 0.0, 128
    %3044 = vxpose.xlu0.b32.cont [14/16] 0.0, 128
    %3045 = vxpose.xlu0.b32.cont [15/16] 0.0, 128
    %3046 = vxpose.xlu0.b32.end [16/16] 0.0, 128
    %v3047 = vpop.trf.xlu0
    %v3048 = vpop.trf.xlu0
    %v3049 = vpop.trf.xlu0
    %v3050 = vpop.trf.xlu0
    %v3051 = vpop.trf.xlu0
    %v3052 = vpop.trf.xlu0
    %v3053 = vpop.trf.xlu0
    %v3054 = vpop.trf.xlu0
    %v3055 = vpop.trf.xlu0
    %v3056 = vpop.trf.xlu0
    %v3057 = vpop.trf.xlu0
    %v3058 = vpop.trf.xlu0
    %v3059 = vpop.trf.xlu0
    %v3060 = vpop.trf.xlu0
    %v3061 = vpop.trf.xlu0
    %v3062 = vpop.trf.xlu0
    %3063 = vxpose.xlu0.b32.start [1/16] %v2641, 128
    %3064 = vxpose.xlu0.b32.cont [2/16] %v2642, 128
    %3065 = vxpose.xlu0.b32.cont [3/16] 0.0, 128
    %3066 = vxpose.xlu0.b32.cont [4/16] 0.0, 128
    %3067 = vxpose.xlu0.b32.cont [5/16] 0.0, 128
    %3068 = vxpose.xlu0.b32.cont [6/16] 0.0, 128
    %3069 = vxpose.xlu0.b32.cont [7/16] 0.0, 128
    %3070 = vxpose.xlu0.b32.cont [8/16] 0.0, 128
    %3071 = vxpose.xlu0.b32.cont [9/16] 0.0, 128
    %3072 = vxpose.xlu0.b32.cont [10/16] 0.0, 128
    %3073 = vxpose.xlu0.b32.cont [11/16] 0.0, 128
    %3074 = vxpose.xlu0.b32.cont [12/16] 0.0, 128
    %3075 = vxpose.xlu0.b32.cont [13/16] 0.0, 128
    %3076 = vxpose.xlu0.b32.cont [14/16] 0.0, 128
    %3077 = vxpose.xlu0.b32.cont [15/16] 0.0, 128
    %3078 = vxpose.xlu0.b32.end [16/16] 0.0, 128
    %v3079 = vpop.trf.xlu0
    %v3080 = vpop.trf.xlu0
    %v3081 = vpop.trf.xlu0
    %v3082 = vpop.trf.xlu0
    %v3083 = vpop.trf.xlu0
    %v3084 = vpop.trf.xlu0
    %v3085 = vpop.trf.xlu0
    %v3086 = vpop.trf.xlu0
    %v3087 = vpop.trf.xlu0
    %v3088 = vpop.trf.xlu0
    %v3089 = vpop.trf.xlu0
    %v3090 = vpop.trf.xlu0
    %v3091 = vpop.trf.xlu0
    %v3092 = vpop.trf.xlu0
    %v3093 = vpop.trf.xlu0
    %v3094 = vpop.trf.xlu0
    %3095 = vxpose.xlu0.b32.start [1/16] %v2643, 128
    %3096 = vxpose.xlu0.b32.cont [2/16] %v2644, 128
    %3097 = vxpose.xlu0.b32.cont [3/16] 0.0, 128
    %3098 = vxpose.xlu0.b32.cont [4/16] 0.0, 128
    %3099 = vxpose.xlu0.b32.cont [5/16] 0.0, 128
    %3100 = vxpose.xlu0.b32.cont [6/16] 0.0, 128
    %3101 = vxpose.xlu0.b32.cont [7/16] 0.0, 128
    %3102 = vxpose.xlu0.b32.cont [8/16] 0.0, 128
    %3103 = vxpose.xlu0.b32.cont [9/16] 0.0, 128
    %3104 = vxpose.xlu0.b32.cont [10/16] 0.0, 128
    %3105 = vxpose.xlu0.b32.cont [11/16] 0.0, 128
    %3106 = vxpose.xlu0.b32.cont [12/16] 0.0, 128
    %3107 = vxpose.xlu0.b32.cont [13/16] 0.0, 128
    %3108 = vxpose.xlu0.b32.cont [14/16] 0.0, 128
    %3109 = vxpose.xlu0.b32.cont [15/16] 0.0, 128
    %3110 = vxpose.xlu0.b32.end [16/16] 0.0, 128
    %v3111 = vpop.trf.xlu0
    %v3112 = vpop.trf.xlu0
    %v3113 = vpop.trf.xlu0
    %v3114 = vpop.trf.xlu0
    %v3115 = vpop.trf.xlu0
    %v3116 = vpop.trf.xlu0
    %v3117 = vpop.trf.xlu0
    %v3118 = vpop.trf.xlu0
    %v3119 = vpop.trf.xlu0
    %v3120 = vpop.trf.xlu0
    %v3121 = vpop.trf.xlu0
    %v3122 = vpop.trf.xlu0
    %v3123 = vpop.trf.xlu0
    %v3124 = vpop.trf.xlu0
    %v3125 = vpop.trf.xlu0
    %v3126 = vpop.trf.xlu0
    %3127 = vxpose.xlu0.b32.start [1/16] %v2645, 128
    %3128 = vxpose.xlu0.b32.cont [2/16] %v2646, 128
    %3129 = vxpose.xlu0.b32.cont [3/16] 0.0, 128
    %3130 = vxpose.xlu0.b32.cont [4/16] 0.0, 128
    %3131 = vxpose.xlu0.b32.cont [5/16] 0.0, 128
    %3132 = vxpose.xlu0.b32.cont [6/16] 0.0, 128
    %3133 = vxpose.xlu0.b32.cont [7/16] 0.0, 128
    %3134 = vxpose.xlu0.b32.cont [8/16] 0.0, 128
    %3135 = vxpose.xlu0.b32.cont [9/16] 0.0, 128
    %3136 = vxpose.xlu0.b32.cont [10/16] 0.0, 128
    %3137 = vxpose.xlu0.b32.cont [11/16] 0.0, 128
    %3138 = vxpose.xlu0.b32.cont [12/16] 0.0, 128
    %3139 = vxpose.xlu0.b32.cont [13/16] 0.0, 128
    %3140 = vxpose.xlu0.b32.cont [14/16] 0.0, 128
    %3141 = vxpose.xlu0.b32.cont [15/16] 0.0, 128
    %3142 = vxpose.xlu0.b32.end [16/16] 0.0, 128
    %v3143 = vpop.trf.xlu0
    %v3144 = vpop.trf.xlu0
    %v3145 = vpop.trf.xlu0
    %v3146 = vpop.trf.xlu0
    %v3147 = vpop.trf.xlu0
    %v3148 = vpop.trf.xlu0
    %v3149 = vpop.trf.xlu0
    %v3150 = vpop.trf.xlu0
    %v3151 = vpop.trf.xlu0
    %v3152 = vpop.trf.xlu0
    %v3153 = vpop.trf.xlu0
    %v3154 = vpop.trf.xlu0
    %v3155 = vpop.trf.xlu0
    %v3156 = vpop.trf.xlu0
    %v3157 = vpop.trf.xlu0
    %v3158 = vpop.trf.xlu0
    %v3160 = vsel %vm77, %v2663, 0
    %v3163 = vsel %vm77, %v2664, 0
    %v3166 = vsel %vm77, %v2695, 0
    %v3169 = vsel %vm77, %v2696, 0
    %v3172 = vsel %vm77, %v2727, 0
    %v3175 = vsel %vm77, %v2728, 0
    %v3178 = vsel %vm77, %v2759, 0
    %v3181 = vsel %vm77, %v2760, 0
    %v3184 = vsel %vm77, %v2791, 0
    %v3187 = vsel %vm77, %v2792, 0
    %v3190 = vsel %vm77, %v2823, 0
    %v3193 = vsel %vm77, %v2824, 0
    %v3196 = vsel %vm77, %v2855, 0
    %v3199 = vsel %vm77, %v2856, 0
    %v3202 = vsel %vm77, %v2887, 0
    %v3205 = vsel %vm77, %v2888, 0
    %3207 = vmatprep.subr.mxu0 0.0
    %3208 = vmatpush1.msra.mxu0 %v39
    %3209 = vmatprep.subr.mxu0 0.0
    %3210 = vmatpush1.msra.mxu0 %v40
    %3211 = vmatprep.subr.mxu0 0.0
    %3212 = vmatpush1.msra.mxu0 0.0
    %3213 = vmatprep.subr.mxu0 0.0
    %3214 = vmatpush1.msra.mxu0 0.0
    %3215 = vmatprep.subr.mxu0 0.0
    %3216 = vmatpush1.msra.mxu0 0.0
    %3217 = vmatprep.subr.mxu0 0.0
    %3218 = vmatpush1.msra.mxu0 0.0
    %3219 = vmatprep.subr.mxu0 0.0
    %3220 = vmatpush1.msra.mxu0 0.0
    %3221 = vmatprep.subr.mxu0 0.0
    %3222 = vmatpush1.msra.mxu0 0.0
    %3223 = vmatprep.subr.mxu0 0.0
    %3224 = vmatpush1.msra.mxu0 0.0
    %3225 = vmatprep.subr.mxu0 0.0
    %3226 = vmatpush1.msra.mxu0 0.0
    %3227 = vmatprep.subr.mxu0 0.0
    %3228 = vmatpush1.msra.mxu0 0.0
    %3229 = vmatprep.subr.mxu0 0.0
    %3230 = vmatpush1.msra.mxu0 0.0
    %3231 = vmatprep.subr.mxu0 0.0
    %3232 = vmatpush1.msra.mxu0 0.0
    %3233 = vmatprep.subr.mxu0 0.0
    %3234 = vmatpush1.msra.mxu0 0.0
    %3235 = vmatprep.subr.mxu0 0.0
    %3236 = vmatpush1.msra.mxu0 0.0
    %3237 = vmatprep.subr.mxu0 0.0
    %3238 = vmatpush1.msra.mxu0 0.0
    %3239 = vmatprep.subr.mxu0 0.0
    %3240 = vmatpush1.msra.mxu0 0.0
    %3241 = vmatprep.subr.mxu0 0.0
    %3242 = vmatpush1.msra.mxu0 0.0
    %3243 = vmatprep.subr.mxu0 0.0
    %3244 = vmatpush1.msra.mxu0 0.0
    %3245 = vmatprep.subr.mxu0 0.0
    %3246 = vmatpush1.msra.mxu0 0.0
    %3247 = vmatprep.subr.mxu0 0.0
    %3248 = vmatpush1.msra.mxu0 0.0
    %3249 = vmatprep.subr.mxu0 0.0
    %3250 = vmatpush1.msra.mxu0 0.0
    %3251 = vmatprep.subr.mxu0 0.0
    %3252 = vmatpush1.msra.mxu0 0.0
    %3253 = vmatprep.subr.mxu0 0.0
    %3254 = vmatpush1.msra.mxu0 0.0
    %3255 = vmatprep.subr.mxu0 0.0
    %3256 = vmatpush1.msra.mxu0 0.0
    %3257 = vmatprep.subr.mxu0 0.0
    %3258 = vmatpush1.msra.mxu0 0.0
    %3259 = vmatprep.subr.mxu0 0.0
    %3260 = vmatpush1.msra.mxu0 0.0
    %3261 = vmatprep.subr.mxu0 0.0
    %3262 = vmatpush1.msra.mxu0 0.0
    %3263 = vmatprep.subr.mxu0 0.0
    %3264 = vmatpush1.msra.mxu0 0.0
    %3265 = vmatprep.subr.mxu0 0.0
    %3266 = vmatpush1.msra.mxu0 0.0
    %3267 = vmatprep.subr.mxu0 0.0
    %3268 = vmatpush1.msra.mxu0 0.0
    %3269 = vmatprep.subr.mxu0 0.0
    %3270 = vmatpush1.msra.mxu0 0.0
    %3271 = vmatprep.mubr.f32.mxu0 0.0
    %3272 = vmatmul.mubr.f32.gmra.mrb[0].mxu0 %v3160
    %v3273 = vpop.f32.mrb[0].mxu0
    %v3274 = vadd.f32 0.0, %v3273
    %v3275 = vpop.f32.mrb[0].mxu0
    %3276 = vmatprep.mubr.f32.mxu0 0.0
    %3277 = vmatmul.mubr.f32.gmra.mrb[0].mxu0 %v3163
    %v3278 = vpop.f32.mrb[0].mxu0
    %v3279 = vadd.f32 0.0, %v3278
    %v3280 = vpop.f32.mrb[0].mxu0
    %3281 = vmatprep.mubr.f32.mxu0 0.0
    %3282 = vmatmul.mubr.f32.gmra.mrb[0].mxu0 %v3166
    %v3283 = vpop.f32.mrb[0].mxu0
    %v3284 = vadd.f32 0.0, %v3283
    %v3285 = vpop.f32.mrb[0].mxu0
    %3286 = vmatprep.mubr.f32.mxu0 0.0
    %3287 = vmatmul.mubr.f32.gmra.mrb[0].mxu0 %v3169
    %v3288 = vpop.f32.mrb[0].mxu0
    %v3289 = vadd.f32 0.0, %v3288
    %v3290 = vpop.f32.mrb[0].mxu0
    %3291 = vmatprep.mubr.f32.mxu0 0.0
    %3292 = vmatmul.mubr.f32.gmra.mrb[0].mxu0 %v3172
    %v3293 = vpop.f32.mrb[0].mxu0
    %v3294 = vadd.f32 0.0, %v3293
    %v3295 = vpop.f32.mrb[0].mxu0
    %3296 = vmatprep.mubr.f32.mxu0 0.0
    %3297 = vmatmul.mubr.f32.gmra.mrb[0].mxu0 %v3175
    %v3298 = vpop.f32.mrb[0].mxu0
    %v3299 = vadd.f32 0.0, %v3298
    %v3300 = vpop.f32.mrb[0].mxu0
    %3301 = vmatprep.mubr.f32.mxu0 0.0
    %3302 = vmatmul.mubr.f32.gmra.mrb[0].mxu0 %v3178
    %v3303 = vpop.f32.mrb[0].mxu0
    %v3304 = vadd.f32 0.0, %v3303
    %v3305 = vpop.f32.mrb[0].mxu0
    %3306 = vmatprep.mubr.f32.mxu0 0.0
    %3307 = vmatmul.mubr.f32.gmra.mrb[0].mxu0 %v3181
    %v3308 = vpop.f32.mrb[0].mxu0
    %v3309 = vadd.f32 0.0, %v3308
    %v3310 = vpop.f32.mrb[0].mxu0
    %3311 = vmatprep.mubr.f32.mxu0 0.0
    %3312 = vmatmul.mubr.f32.gmra.mrb[0].mxu0 %v3184
    %v3313 = vpop.f32.mrb[0].mxu0
    %v3314 = vadd.f32 0.0, %v3313
    %v3315 = vpop.f32.mrb[0].mxu0
    %3316 = vmatprep.mubr.f32.mxu0 0.0
    %3317 = vmatmul.mubr.f32.gmra.mrb[0].mxu0 %v3187
    %v3318 = vpop.f32.mrb[0].mxu0
    %v3319 = vadd.f32 0.0, %v3318
    %v3320 = vpop.f32.mrb[0].mxu0
    %3321 = vmatprep.mubr.f32.mxu0 0.0
    %3322 = vmatmul.mubr.f32.gmra.mrb[0].mxu0 %v3190
    %v3323 = vpop.f32.mrb[0].mxu0
    %v3324 = vadd.f32 0.0, %v3323
    %v3325 = vpop.f32.mrb[0].mxu0
    %3326 = vmatprep.mubr.f32.mxu0 0.0
    %3327 = vmatmul.mubr.f32.gmra.mrb[0].mxu0 %v3193
    %v3328 = vpop.f32.mrb[0].mxu0
    %v3329 = vadd.f32 0.0, %v3328
    %v3330 = vpop.f32.mrb[0].mxu0
    %3331 = vmatprep.mubr.f32.mxu0 0.0
    %3332 = vmatmul.mubr.f32.gmra.mrb[0].mxu0 %v3196
    %v3333 = vpop.f32.mrb[0].mxu0
    %v3334 = vadd.f32 0.0, %v3333
    %v3335 = vpop.f32.mrb[0].mxu0
    %3336 = vmatprep.mubr.f32.mxu0 0.0
    %3337 = vmatmul.mubr.f32.gmra.mrb[0].mxu0 %v3199
    %v3338 = vpop.f32.mrb[0].mxu0
    %v3339 = vadd.f32 0.0, %v3338
    %v3340 = vpop.f32.mrb[0].mxu0
    %3341 = vmatprep.mubr.f32.mxu0 0.0
    %3342 = vmatmul.mubr.f32.gmra.mrb[0].mxu0 %v3202
    %v3343 = vpop.f32.mrb[0].mxu0
    %v3344 = vadd.f32 0.0, %v3343
    %v3345 = vpop.f32.mrb[0].mxu0
    %3346 = vmatprep.mubr.f32.mxu0 0.0
    %3347 = vmatmul.mubr.f32.gmra.mrb[0].mxu0 %v3205
    %v3348 = vpop.f32.mrb[0].mxu0
    %v3349 = vadd.f32 0.0, %v3348
    %v3350 = vpop.f32.mrb[0].mxu0
    %3351 = vdwg.mxu0
    %v3353 = vsel %vm77, %v2919, 0
    %v3356 = vsel %vm77, %v2920, 0
    %v3359 = vsel %vm77, %v2951, 0
    %v3362 = vsel %vm77, %v2952, 0
    %v3365 = vsel %vm77, %v2983, 0
    %v3368 = vsel %vm77, %v2984, 0
    %v3371 = vsel %vm77, %v3015, 0
    %v3374 = vsel %vm77, %v3016, 0
    %v3377 = vsel %vm77, %v3047, 0
    %v3380 = vsel %vm77, %v3048, 0
    %v3383 = vsel %vm77, %v3079, 0
    %v3386 = vsel %vm77, %v3080, 0
    %v3389 = vsel %vm77, %v3111, 0
    %v3392 = vsel %vm77, %v3112, 0
    %v3395 = vsel %vm77, %v3143, 0
    %v3398 = vsel %vm77, %v3144, 0
    %3400 = vmatprep.subr.mxu0 0.0
    %3401 = vmatpush1.msra.mxu0 %v41
    %3402 = vmatprep.subr.mxu0 0.0
    %3403 = vmatpush1.msra.mxu0 %v42
    %3404 = vmatprep.subr.mxu0 0.0
    %3405 = vmatpush1.msra.mxu0 0.0
    %3406 = vmatprep.subr.mxu0 0.0
    %3407 = vmatpush1.msra.mxu0 0.0
    %3408 = vmatprep.subr.mxu0 0.0
    %3409 = vmatpush1.msra.mxu0 0.0
    %3410 = vmatprep.subr.mxu0 0.0
    %3411 = vmatpush1.msra.mxu0 0.0
    %3412 = vmatprep.subr.mxu0 0.0
    %3413 = vmatpush1.msra.mxu0 0.0
    %3414 = vmatprep.subr.mxu0 0.0
    %3415 = vmatpush1.msra.mxu0 0.0
    %3416 = vmatprep.subr.mxu0 0.0
    %3417 = vmatpush1.msra.mxu0 0.0
    %3418 = vmatprep.subr.mxu0 0.0
    %3419 = vmatpush1.msra.mxu0 0.0
    %3420 = vmatprep.subr.mxu0 0.0
    %3421 = vmatpush1.msra.mxu0 0.0
    %3422 = vmatprep.subr.mxu0 0.0
    %3423 = vmatpush1.msra.mxu0 0.0
    %3424 = vmatprep.subr.mxu0 0.0
    %3425 = vmatpush1.msra.mxu0 0.0
    %3426 = vmatprep.subr.mxu0 0.0
    %3427 = vmatpush1.msra.mxu0 0.0
    %3428 = vmatprep.subr.mxu0 0.0
    %3429 = vmatpush1.msra.mxu0 0.0
    %3430 = vmatprep.subr.mxu0 0.0
    %3431 = vmatpush1.msra.mxu0 0.0
    %3432 = vmatprep.subr.mxu0 0.0
    %3433 = vmatpush1.msra.mxu0 0.0
    %3434 = vmatprep.subr.mxu0 0.0
    %3435 = vmatpush1.msra.mxu0 0.0
    %3436 = vmatprep.subr.mxu0 0.0
    %3437 = vmatpush1.msra.mxu0 0.0
    %3438 = vmatprep.subr.mxu0 0.0
    %3439 = vmatpush1.msra.mxu0 0.0
    %3440 = vmatprep.subr.mxu0 0.0
    %3441 = vmatpush1.msra.mxu0 0.0
    %3442 = vmatprep.subr.mxu0 0.0
    %3443 = vmatpush1.msra.mxu0 0.0
    %3444 = vmatprep.subr.mxu0 0.0
    %3445 = vmatpush1.msra.mxu0 0.0
    %3446 = vmatprep.subr.mxu0 0.0
    %3447 = vmatpush1.msra.mxu0 0.0
    %3448 = vmatprep.subr.mxu0 0.0
    %3449 = vmatpush1.msra.mxu0 0.0
    %3450 = vmatprep.subr.mxu0 0.0
    %3451 = vmatpush1.msra.mxu0 0.0
    %3452 = vmatprep.subr.mxu0 0.0
    %3453 = vmatpush1.msra.mxu0 0.0
    %3454 = vmatprep.subr.mxu0 0.0
    %3455 = vmatpush1.msra.mxu0 0.0
    %3456 = vmatprep.subr.mxu0 0.0
    %3457 = vmatpush1.msra.mxu0 0.0
    %3458 = vmatprep.subr.mxu0 0.0
    %3459 = vmatpush1.msra.mxu0 0.0
    %3460 = vmatprep.subr.mxu0 0.0
    %3461 = vmatpush1.msra.mxu0 0.0
    %3462 = vmatprep.subr.mxu0 0.0
    %3463 = vmatpush1.msra.mxu0 0.0
    %3464 = vmatprep.mubr.f32.mxu0 0.0
    %3465 = vmatmul.mubr.f32.gmra.mrb[0].mxu0 %v3353
    %v3466 = vpop.f32.mrb[0].mxu0
    %v3467 = vadd.f32 0.0, %v3466
    %v3468 = vpop.f32.mrb[0].mxu0
    %3469 = vmatprep.mubr.f32.mxu0 0.0
    %3470 = vmatmul.mubr.f32.gmra.mrb[0].mxu0 %v3356
    %v3471 = vpop.f32.mrb[0].mxu0
    %v3472 = vadd.f32 0.0, %v3471
    %v3473 = vpop.f32.mrb[0].mxu0
    %3474 = vmatprep.mubr.f32.mxu0 0.0
    %3475 = vmatmul.mubr.f32.gmra.mrb[0].mxu0 %v3359
    %v3476 = vpop.f32.mrb[0].mxu0
    %v3477 = vadd.f32 0.0, %v3476
    %v3478 = vpop.f32.mrb[0].mxu0
    %3479 = vmatprep.mubr.f32.mxu0 0.0
    %3480 = vmatmul.mubr.f32.gmra.mrb[0].mxu0 %v3362
    %v3481 = vpop.f32.mrb[0].mxu0
    %v3482 = vadd.f32 0.0, %v3481
    %v3483 = vpop.f32.mrb[0].mxu0
    %3484 = vmatprep.mubr.f32.mxu0 0.0
    %3485 = vmatmul.mubr.f32.gmra.mrb[0].mxu0 %v3365
    %v3486 = vpop.f32.mrb[0].mxu0
    %v3487 = vadd.f32 0.0, %v3486
    %v3488 = vpop.f32.mrb[0].mxu0
    %3489 = vmatprep.mubr.f32.mxu0 0.0
    %3490 = vmatmul.mubr.f32.gmra.mrb[0].mxu0 %v3368
    %v3491 = vpop.f32.mrb[0].mxu0
    %v3492 = vadd.f32 0.0, %v3491
    %v3493 = vpop.f32.mrb[0].mxu0
    %3494 = vmatprep.mubr.f32.mxu0 0.0
    %3495 = vmatmul.mubr.f32.gmra.mrb[0].mxu0 %v3371
    %v3496 = vpop.f32.mrb[0].mxu0
    %v3497 = vadd.f32 0.0, %v3496
    %v3498 = vpop.f32.mrb[0].mxu0
    %3499 = vmatprep.mubr.f32.mxu0 0.0
    %3500 = vmatmul.mubr.f32.gmra.mrb[0].mxu0 %v3374
    %v3501 = vpop.f32.mrb[0].mxu0
    %v3502 = vadd.f32 0.0, %v3501
    %v3503 = vpop.f32.mrb[0].mxu0
    %3504 = vmatprep.mubr.f32.mxu0 0.0
    %3505 = vmatmul.mubr.f32.gmra.mrb[0].mxu0 %v3377
    %v3506 = vpop.f32.mrb[0].mxu0
    %v3507 = vadd.f32 0.0, %v3506
    %v3508 = vpop.f32.mrb[0].mxu0
    %3509 = vmatprep.mubr.f32.mxu0 0.0
    %3510 = vmatmul.mubr.f32.gmra.mrb[0].mxu0 %v3380
    %v3511 = vpop.f32.mrb[0].mxu0
    %v3512 = vadd.f32 0.0, %v3511
    %v3513 = vpop.f32.mrb[0].mxu0
    %3514 = vmatprep.mubr.f32.mxu0 0.0
    %3515 = vmatmul.mubr.f32.gmra.mrb[0].mxu0 %v3383
    %v3516 = vpop.f32.mrb[0].mxu0
    %v3517 = vadd.f32 0.0, %v3516
    %v3518 = vpop.f32.mrb[0].mxu0
    %3519 = vmatprep.mubr.f32.mxu0 0.0
    %3520 = vmatmul.mubr.f32.gmra.mrb[0].mxu0 %v3386
    %v3521 = vpop.f32.mrb[0].mxu0
    %v3522 = vadd.f32 0.0, %v3521
    %v3523 = vpop.f32.mrb[0].mxu0
    %3524 = vmatprep.mubr.f32.mxu0 0.0
    %3525 = vmatmul.mubr.f32.gmra.mrb[0].mxu0 %v3389
    %v3526 = vpop.f32.mrb[0].mxu0
    %v3527 = vadd.f32 0.0, %v3526
    %v3528 = vpop.f32.mrb[0].mxu0
    %3529 = vmatprep.mubr.f32.mxu0 0.0
    %3530 = vmatmul.mubr.f32.gmra.mrb[0].mxu0 %v3392
    %v3531 = vpop.f32.mrb[0].mxu0
    %v3532 = vadd.f32 0.0, %v3531
    %v3533 = vpop.f32.mrb[0].mxu0
    %3534 = vmatprep.mubr.f32.mxu0 0.0
    %3535 = vmatmul.mubr.f32.gmra.mrb[0].mxu0 %v3395
    %v3536 = vpop.f32.mrb[0].mxu0
    %v3537 = vadd.f32 0.0, %v3536
    %v3538 = vpop.f32.mrb[0].mxu0
    %3539 = vmatprep.mubr.f32.mxu0 0.0
    %3540 = vmatmul.mubr.f32.gmra.mrb[0].mxu0 %v3398
    %v3541 = vpop.f32.mrb[0].mxu0
    %v3542 = vadd.f32 0.0, %v3541
    %v3543 = vpop.f32.mrb[0].mxu0
    %3544 = vdwg.mxu0
    %v3545 = vsub.f32 %v2919, %v2663
    %v3546 = vsub.f32 %v2920, %v2664
    %v3547 = vsub.f32 %v2951, %v2695
    %v3548 = vsub.f32 %v2952, %v2696
    %v3549 = vsub.f32 %v2983, %v2727
    %v3550 = vsub.f32 %v2984, %v2728
    %v3551 = vsub.f32 %v3015, %v2759
    %v3552 = vsub.f32 %v3016, %v2760
    %v3553 = vsub.f32 %v3047, %v2791
    %v3554 = vsub.f32 %v3048, %v2792
    %v3555 = vsub.f32 %v3079, %v2823
    %v3556 = vsub.f32 %v3080, %v2824
    %v3557 = vsub.f32 %v3111, %v2855
    %v3558 = vsub.f32 %v3112, %v2856
    %v3559 = vsub.f32 %v3143, %v2887
    %v3560 = vsub.f32 %v3144, %v2888
    %v3561 = vadd.f32 %v3274, %v3467
    %v3562 = vadd.f32 %v3279, %v3472
    %v3563 = vadd.f32 %v3284, %v3477
    %v3564 = vadd.f32 %v3289, %v3482
    %v3565 = vadd.f32 %v3294, %v3487
    %v3566 = vadd.f32 %v3299, %v3492
    %v3567 = vadd.f32 %v3304, %v3497
    %v3568 = vadd.f32 %v3309, %v3502
    %v3569 = vadd.f32 %v3314, %v3507
    %v3570 = vadd.f32 %v3319, %v3512
    %v3571 = vadd.f32 %v3324, %v3517
    %v3572 = vadd.f32 %v3329, %v3522
    %v3573 = vadd.f32 %v3334, %v3527
    %v3574 = vadd.f32 %v3339, %v3532
    %v3575 = vadd.f32 %v3344, %v3537
    %v3576 = vadd.f32 %v3349, %v3542
    %v3578 = vsel %vm77, %v3545, 0
    %v3581 = vsel %vm77, %v3546, 0
    %v3584 = vsel %vm77, %v3547, 0
    %v3587 = vsel %vm77, %v3548, 0
    %v3590 = vsel %vm77, %v3549, 0
    %v3593 = vsel %vm77, %v3550, 0
    %v3596 = vsel %vm77, %v3551, 0
    %v3599 = vsel %vm77, %v3552, 0
    %v3602 = vsel %vm77, %v3553, 0
    %v3605 = vsel %vm77, %v3554, 0
    %v3608 = vsel %vm77, %v3555, 0
    %v3611 = vsel %vm77, %v3556, 0
    %v3614 = vsel %vm77, %v3557, 0
    %v3617 = vsel %vm77, %v3558, 0
    %v3620 = vsel %vm77, %v3559, 0
    %v3623 = vsel %vm77, %v3560, 0
    %3625 = vmatprep.subr.mxu0 0.0
    %3626 = vmatpush1.msra.mxu0 %v43
    %3627 = vmatprep.subr.mxu0 0.0
    %3628 = vmatpush1.msra.mxu0 %v44
    %3629 = vmatprep.subr.mxu0 0.0
    %3630 = vmatpush1.msra.mxu0 0.0
    %3631 = vmatprep.subr.mxu0 0.0
    %3632 = vmatpush1.msra.mxu0 0.0
    %3633 = vmatprep.subr.mxu0 0.0
    %3634 = vmatpush1.msra.mxu0 0.0
    %3635 = vmatprep.subr.mxu0 0.0
    %3636 = vmatpush1.msra.mxu0 0.0
    %3637 = vmatprep.subr.mxu0 0.0
    %3638 = vmatpush1.msra.mxu0 0.0
    %3639 = vmatprep.subr.mxu0 0.0
    %3640 = vmatpush1.msra.mxu0 0.0
    %3641 = vmatprep.subr.mxu0 0.0
    %3642 = vmatpush1.msra.mxu0 0.0
    %3643 = vmatprep.subr.mxu0 0.0
    %3644 = vmatpush1.msra.mxu0 0.0
    %3645 = vmatprep.subr.mxu0 0.0
    %3646 = vmatpush1.msra.mxu0 0.0
    %3647 = vmatprep.subr.mxu0 0.0
    %3648 = vmatpush1.msra.mxu0 0.0
    %3649 = vmatprep.subr.mxu0 0.0
    %3650 = vmatpush1.msra.mxu0 0.0
    %3651 = vmatprep.subr.mxu0 0.0
    %3652 = vmatpush1.msra.mxu0 0.0
    %3653 = vmatprep.subr.mxu0 0.0
    %3654 = vmatpush1.msra.mxu0 0.0
    %3655 = vmatprep.subr.mxu0 0.0
    %3656 = vmatpush1.msra.mxu0 0.0
    %3657 = vmatprep.subr.mxu0 0.0
    %3658 = vmatpush1.msra.mxu0 0.0
    %3659 = vmatprep.subr.mxu0 0.0
    %3660 = vmatpush1.msra.mxu0 0.0
    %3661 = vmatprep.subr.mxu0 0.0
    %3662 = vmatpush1.msra.mxu0 0.0
    %3663 = vmatprep.subr.mxu0 0.0
    %3664 = vmatpush1.msra.mxu0 0.0
    %3665 = vmatprep.subr.mxu0 0.0
    %3666 = vmatpush1.msra.mxu0 0.0
    %3667 = vmatprep.subr.mxu0 0.0
    %3668 = vmatpush1.msra.mxu0 0.0
    %3669 = vmatprep.subr.mxu0 0.0
    %3670 = vmatpush1.msra.mxu0 0.0
    %3671 = vmatprep.subr.mxu0 0.0
    %3672 = vmatpush1.msra.mxu0 0.0
    %3673 = vmatprep.subr.mxu0 0.0
    %3674 = vmatpush1.msra.mxu0 0.0
    %3675 = vmatprep.subr.mxu0 0.0
    %3676 = vmatpush1.msra.mxu0 0.0
    %3677 = vmatprep.subr.mxu0 0.0
    %3678 = vmatpush1.msra.mxu0 0.0
    %3679 = vmatprep.subr.mxu0 0.0
    %3680 = vmatpush1.msra.mxu0 0.0
    %3681 = vmatprep.subr.mxu0 0.0
    %3682 = vmatpush1.msra.mxu0 0.0
    %3683 = vmatprep.subr.mxu0 0.0
    %3684 = vmatpush1.msra.mxu0 0.0
    %3685 = vmatprep.subr.mxu0 0.0
    %3686 = vmatpush1.msra.mxu0 0.0
    %3687 = vmatprep.subr.mxu0 0.0
    %3688 = vmatpush1.msra.mxu0 0.0
    %3689 = vmatprep.mubr.f32.mxu0 0.0
    %3690 = vmatmul.mubr.f32.gmra.mrb[0].mxu0 %v3578
    %v3691 = vpop.f32.mrb[0].mxu0
    %v3692 = vadd.f32 %v3274, %v3691
    %v3693 = vpop.f32.mrb[0].mxu0
    %3694 = vmatprep.mubr.f32.mxu0 0.0
    %3695 = vmatmul.mubr.f32.gmra.mrb[0].mxu0 %v3581
    %v3696 = vpop.f32.mrb[0].mxu0
    %v3697 = vadd.f32 %v3279, %v3696
    %v3698 = vpop.f32.mrb[0].mxu0
    %3699 = vmatprep.mubr.f32.mxu0 0.0
    %3700 = vmatmul.mubr.f32.gmra.mrb[0].mxu0 %v3584
    %v3701 = vpop.f32.mrb[0].mxu0
    %v3702 = vadd.f32 %v3284, %v3701
    %v3703 = vpop.f32.mrb[0].mxu0
    %3704 = vmatprep.mubr.f32.mxu0 0.0
    %3705 = vmatmul.mubr.f32.gmra.mrb[0].mxu0 %v3587
    %v3706 = vpop.f32.mrb[0].mxu0
    %v3707 = vadd.f32 %v3289, %v3706
    %v3708 = vpop.f32.mrb[0].mxu0
    %3709 = vmatprep.mubr.f32.mxu0 0.0
    %3710 = vmatmul.mubr.f32.gmra.mrb[0].mxu0 %v3590
    %v3711 = vpop.f32.mrb[0].mxu0
    %v3712 = vadd.f32 %v3294, %v3711
    %v3713 = vpop.f32.mrb[0].mxu0
    %3714 = vmatprep.mubr.f32.mxu0 0.0
    %3715 = vmatmul.mubr.f32.gmra.mrb[0].mxu0 %v3593
    %v3716 = vpop.f32.mrb[0].mxu0
    %v3717 = vadd.f32 %v3299, %v3716
    %v3718 = vpop.f32.mrb[0].mxu0
    %3719 = vmatprep.mubr.f32.mxu0 0.0
    %3720 = vmatmul.mubr.f32.gmra.mrb[0].mxu0 %v3596
    %v3721 = vpop.f32.mrb[0].mxu0
    %v3722 = vadd.f32 %v3304, %v3721
    %v3723 = vpop.f32.mrb[0].mxu0
    %3724 = vmatprep.mubr.f32.mxu0 0.0
    %3725 = vmatmul.mubr.f32.gmra.mrb[0].mxu0 %v3599
    %v3726 = vpop.f32.mrb[0].mxu0
    %v3727 = vadd.f32 %v3309, %v3726
    %v3728 = vpop.f32.mrb[0].mxu0
    %3729 = vmatprep.mubr.f32.mxu0 0.0
    %3730 = vmatmul.mubr.f32.gmra.mrb[0].mxu0 %v3602
    %v3731 = vpop.f32.mrb[0].mxu0
    %v3732 = vadd.f32 %v3314, %v3731
    %v3733 = vpop.f32.mrb[0].mxu0
    %3734 = vmatprep.mubr.f32.mxu0 0.0
    %3735 = vmatmul.mubr.f32.gmra.mrb[0].mxu0 %v3605
    %v3736 = vpop.f32.mrb[0].mxu0
    %v3737 = vadd.f32 %v3319, %v3736
    %v3738 = vpop.f32.mrb[0].mxu0
    %3739 = vmatprep.mubr.f32.mxu0 0.0
    %3740 = vmatmul.mubr.f32.gmra.mrb[0].mxu0 %v3608
    %v3741 = vpop.f32.mrb[0].mxu0
    %v3742 = vadd.f32 %v3324, %v3741
    %v3743 = vpop.f32.mrb[0].mxu0
    %3744 = vmatprep.mubr.f32.mxu0 0.0
    %3745 = vmatmul.mubr.f32.gmra.mrb[0].mxu0 %v3611
    %v3746 = vpop.f32.mrb[0].mxu0
    %v3747 = vadd.f32 %v3329, %v3746
    %v3748 = vpop.f32.mrb[0].mxu0
    %3749 = vmatprep.mubr.f32.mxu0 0.0
    %3750 = vmatmul.mubr.f32.gmra.mrb[0].mxu0 %v3614
    %v3751 = vpop.f32.mrb[0].mxu0
    %v3752 = vadd.f32 %v3334, %v3751
    %v3753 = vpop.f32.mrb[0].mxu0
    %3754 = vmatprep.mubr.f32.mxu0 0.0
    %3755 = vmatmul.mubr.f32.gmra.mrb[0].mxu0 %v3617
    %v3756 = vpop.f32.mrb[0].mxu0
    %v3757 = vadd.f32 %v3339, %v3756
    %v3758 = vpop.f32.mrb[0].mxu0
    %3759 = vmatprep.mubr.f32.mxu0 0.0
    %3760 = vmatmul.mubr.f32.gmra.mrb[0].mxu0 %v3620
    %v3761 = vpop.f32.mrb[0].mxu0
    %v3762 = vadd.f32 %v3344, %v3761
    %v3763 = vpop.f32.mrb[0].mxu0
    %3764 = vmatprep.mubr.f32.mxu0 0.0
    %3765 = vmatmul.mubr.f32.gmra.mrb[0].mxu0 %v3623
    %v3766 = vpop.f32.mrb[0].mxu0
    %v3767 = vadd.f32 %v3349, %v3766
    %v3768 = vpop.f32.mrb[0].mxu0
    %3769 = vdwg.mxu0
    %v3770 = vsub.f32 %v3692, %v3467
    %v3771 = vsub.f32 %v3697, %v3472
    %v3772 = vsub.f32 %v3702, %v3477
    %v3773 = vsub.f32 %v3707, %v3482
    %v3774 = vsub.f32 %v3712, %v3487
    %v3775 = vsub.f32 %v3717, %v3492
    %v3776 = vsub.f32 %v3722, %v3497
    %v3777 = vsub.f32 %v3727, %v3502
    %v3778 = vsub.f32 %v3732, %v3507
    %v3779 = vsub.f32 %v3737, %v3512
    %v3780 = vsub.f32 %v3742, %v3517
    %v3781 = vsub.f32 %v3747, %v3522
    %v3782 = vsub.f32 %v3752, %v3527
    %v3783 = vsub.f32 %v3757, %v3532
    %v3784 = vsub.f32 %v3762, %v3537
    %v3785 = vsub.f32 %v3767, %v3542
    %3786 = vst.msk [vmem:[#allocation2] sm:$0xff] %vm77, %v3561
    %3787 = vst.msk [vmem:[#allocation2 + $0x8] sm:$0xff] %vm77, %v3562
    %3788 = vst.msk [vmem:[#allocation2 + $0x20] sm:$0xff] %vm77, %v3563
    %3789 = vst.msk [vmem:[#allocation2 + $0x28] sm:$0xff] %vm77, %v3564
    %3790 = vst.msk [vmem:[#allocation2 + $0x40] sm:$0xff] %vm77, %v3565
    %3791 = vst.msk [vmem:[#allocation2 + $0x48] sm:$0xff] %vm77, %v3566
    %3792 = vst.msk [vmem:[#allocation2 + $0x60] sm:$0xff] %vm77, %v3567
    %3793 = vst.msk [vmem:[#allocation2 + $0x68] sm:$0xff] %vm77, %v3568
    %3794 = vst.msk [vmem:[#allocation2 + $0x80] sm:$0xff] %vm77, %v3569
    %3795 = vst.msk [vmem:[#allocation2 + $0x88] sm:$0xff] %vm77, %v3570
    %3796 = vst.msk [vmem:[#allocation2 + $0xa0] sm:$0xff] %vm77, %v3571
    %3797 = vst.msk [vmem:[#allocation2 + $0xa8] sm:$0xff] %vm77, %v3572
    %3798 = vst.msk [vmem:[#allocation2 + $0xc0] sm:$0xff] %vm77, %v3573
    %3799 = vst.msk [vmem:[#allocation2 + $0xc8] sm:$0xff] %vm77, %v3574
    %3800 = vst.msk [vmem:[#allocation2 + $0xe0] sm:$0xff] %vm77, %v3575
    %3801 = vst.msk [vmem:[#allocation2 + $0xe8] sm:$0xff] %vm77, %v3576
    %s3802 = scalar_lea.vmem [#allocation2], 16
    %3803 = vst.msk [vmem:[%s3802] sm:$0xff] %vm77, %v3770
    %3804 = vst.msk [vmem:[%s3802 + $0x8] sm:$0xff] %vm77, %v3771
    %3805 = vst.msk [vmem:[%s3802 + $0x20] sm:$0xff] %vm77, %v3772
    %3806 = vst.msk [vmem:[%s3802 + $0x28] sm:$0xff] %vm77, %v3773
    %3807 = vst.msk [vmem:[%s3802 + $0x40] sm:$0xff] %vm77, %v3774
    %3808 = vst.msk [vmem:[%s3802 + $0x48] sm:$0xff] %vm77, %v3775
    %3809 = vst.msk [vmem:[%s3802 + $0x60] sm:$0xff] %vm77, %v3776
    %3810 = vst.msk [vmem:[%s3802 + $0x68] sm:$0xff] %vm77, %v3777
    %3811 = vst.msk [vmem:[%s3802 + $0x80] sm:$0xff] %vm77, %v3778
    %3812 = vst.msk [vmem:[%s3802 + $0x88] sm:$0xff] %vm77, %v3779
    %3813 = vst.msk [vmem:[%s3802 + $0xa0] sm:$0xff] %vm77, %v3780
    %3814 = vst.msk [vmem:[%s3802 + $0xa8] sm:$0xff] %vm77, %v3781
    %3815 = vst.msk [vmem:[%s3802 + $0xc0] sm:$0xff] %vm77, %v3782
    %3816 = vst.msk [vmem:[%s3802 + $0xc8] sm:$0xff] %vm77, %v3783
    %3817 = vst.msk [vmem:[%s3802 + $0xe0] sm:$0xff] %vm77, %v3784
    %3818 = vst.msk [vmem:[%s3802 + $0xe8] sm:$0xff] %vm77, %v3785
    // Predicated region
    $region38: #{data_consistency_layer.1} parent=1 // pred_check
      _
    $region39: #{data_consistency_layer.1} parent=1 // pred_check_branch
      %3820 = sbr.rel (0) target = $region41
    $region40: #{data_consistency_layer.1} parent=1 // pred_region
      %s3822 = ssub.s32 4096, 4096
      %3823 = vsyncadd [#allocation3], %s3822
      %s3824 = sshll.u32 [#allocation2], 4
      %s3825 = int_to_ptr.vmem [resolvable:$true] %s3824
      %3830 = dma.vmem_to_hbm [thread:$0]  %s3825, 4096, %s9, [#allocation3], 128, 128, 8
    $region41: #{data_consistency_layer.1} parent=1 // pred_fallthru
      _
    // Predicated region
    $region42: #{data_consistency_layer.1} parent=1 // pred_check
      _
    $region43: #{data_consistency_layer.1} parent=1 // pred_check_branch
      %3832 = sbr.rel (0) target = $region45
    $region44: #{data_consistency_layer.1} parent=1 // pred_region
      %3833 = dma.done [#allocation3], 4096
    $region45: #{data_consistency_layer.1} parent=1 // pred_fallthru
      _
    %3834 = vsyncpa [#allocation3], 1

</llo_original>
